<compile_context>
chip_gen: v6e
topology: v6e:2x2x1
jax: 0.10.0
libtpu: 0.0.40
codegen_flags: <defaults>
</compile_context>

<pallas_src>
import math

import jax
import jax.numpy as jnp
from jax.experimental import pallas as pl
from jax.experimental.pallas import tpu as pltpu

D_MODEL = 32
NHEAD = 4
HEAD_DIM = D_MODEL // NHEAD
DIM_FF = 64
EPS = 1e-5


# ---------------------------------------------------------------------------
# Packed-parameter slab layouts (static, shared by packer and kernel).
# ---------------------------------------------------------------------------
def _weight_layout():
    E, F = D_MODEL, DIM_FF
    defs = [
        ("sa_wqkv", 2 * E, 3 * E),   # [[Wq*s, Wk, Wv], [Wq*s, Wk, 0]]
        ("sa_wo",   E,     E),
        ("ca_wq",   E,     E),       # Wq*s
        ("ca_wkv",  2 * E, 2 * E),   # [[Wk, Wv], [Wk, 0]]
        ("ca_wo",   E,     E),
        ("w1",      E,     F),
        ("w2",      F,     E),
    ]
    layout, col, rmax = {}, 0, 0
    for name, r, c in defs:
        layout[name] = (r, col, c)
        col += ((c + 127) // 128) * 128      # 128-lane aligned column slots
        rmax = max(rmax, r)
    return layout, rmax, col


def _bias_layout():
    E, F = D_MODEL, DIM_FF
    defs = [
        ("sa_bqkv", 3 * E), ("sa_bo", E),
        ("ca_bq", E), ("ca_bkv", 2 * E), ("ca_bo", E),
        ("b1", F), ("b2", E),
        ("g1", E), ("be1", E), ("g2", E), ("be2", E), ("g3", E), ("be3", E),
    ]
    layout = {name: (i, w) for i, (name, w) in enumerate(defs)}
    return layout, len(defs), max(w for _, w in defs)


_W_LAYOUT, _W_ROWS, _W_COLS = _weight_layout()
_B_LAYOUT, _B_ROWS, _B_COLS = _bias_layout()


# ---------------------------------------------------------------------------
# Kernel
# ---------------------------------------------------------------------------
def _make_kernel(bt, t_len, s_len):
    """bt = batch elements per grid step; t_len/s_len = query / memory lengths."""
    E, H, HD = D_MODEL, NHEAD, HEAD_DIM

    def layernorm(x, g, b):
        mu = jnp.mean(x, axis=-1, keepdims=True)
        var = jnp.mean(jnp.square(x - mu), axis=-1, keepdims=True)
        return (x - mu) * jax.lax.rsqrt(var + EPS) * g + b

    def split_heads(x2d, n_chunks, seq):
        # x2d: (bt*seq, n_chunks*E), rows batch-major, cols (chunk, head, hd).
        # One relayout-transpose for the whole chunk group.
        rows = bt * seq
        x = x2d.reshape(rows, n_chunks * H, HD)
        x = jnp.transpose(x, (1, 0, 2))                   # (n*H, rows, hd)
        return x.reshape(n_chunks, H * bt, seq, HD)

    def merge_heads(o, seq):
        # (H*bt, seq, hd) -> (bt*seq, E), cols (head, hd) to match out-proj.
        x = o.reshape(H, bt * seq, HD)
        x = jnp.transpose(x, (1, 0, 2))                   # one relayout
        return x.reshape(bt * seq, E)

    def attention(q, k, v):
        # q already scaled by 1/sqrt(hd) (folded into the projection weights).
        s = jnp.einsum("bqd,bkd->bqk", q.astype(jnp.bfloat16),
                       k.astype(jnp.bfloat16),
                       preferred_element_type=jnp.float32)
        s = s - jnp.max(s, axis=-1, keepdims=True)
        p = jnp.exp(s)
        inv = pl.reciprocal(jnp.sum(p, axis=-1, keepdims=True), approx=True)  # EUP
        return jnp.einsum("bqk,bkd->bqd", (p * inv).astype(jnp.bfloat16),
                          v.astype(jnp.bfloat16),
                          preferred_element_type=jnp.float32)

    def kernel(tgt_ref, qpos_ref, mem_ref, pos_ref, w_ref, b_ref, out_ref):
        tgt = tgt_ref[...]                    # (bt*T, E) f32, batch-major rows
        qpos = qpos_ref[...]
        mem = mem_ref[...]                    # (bt*S, E)
        pos = pos_ref[...]
        bias = b_ref[...]                     # (_B_ROWS, _B_COLS) f32

        def bvec(name):
            r, w = _B_LAYOUT[name]
            return bias[r:r + 1, :w]          # (1, w), broadcasts over rows

        def mm(x, wname, bname=None):
            rr, c0, cc = _W_LAYOUT[wname]
            y = jnp.dot(x.astype(jnp.bfloat16), w_ref[0:rr, c0:c0 + cc],
                        preferred_element_type=jnp.float32)
            if bname is not None:
                y = y + bvec(bname)
            return y

        # --- stage 1: self-attention -> add + LN1 (q=k=tgt+qpos, v=tgt) ---
        qkv = mm(jnp.concatenate([tgt, qpos], axis=-1), "sa_wqkv", "sa_bqkv")
        qkv_h = split_heads(qkv, 3, t_len)                # (3, H*bt, T, hd)
        sa = attention(qkv_h[0], qkv_h[1], qkv_h[2])
        sa = mm(merge_heads(sa, t_len), "sa_wo", "sa_bo")
        x = layernorm(tgt + sa, bvec("g1"), bvec("be1"))

        # --- stage 2: cross-attention -> add + LN2 (q=x+qpos, k=mem+pos, v=mem)
        kv = mm(jnp.concatenate([mem, pos], axis=-1), "ca_wkv", "ca_bkv")
        kv_h = split_heads(kv, 2, s_len)                  # (2, H*bt, S, hd)
        q2 = mm(x + qpos, "ca_wq", "ca_bq")
        q2_h = split_heads(q2, 1, t_len)[0]               # (H*bt, T, hd)
        ca = attention(q2_h, kv_h[0], kv_h[1])
        ca = mm(merge_heads(ca, t_len), "ca_wo", "ca_bo")
        x = layernorm(x + ca, bvec("g2"), bvec("be2"))

        # --- stage 3: FFN (linear1 -> relu -> linear2) + residual + LN3 ---
        h1 = jnp.maximum(mm(x, "w1", "b1"), 0.0)
        ff = mm(h1, "w2", "b2")
        y = layernorm(x + ff, bvec("g3"), bvec("be3"))
        out_ref[...] = y.astype(out_ref.dtype)            # contiguous row store

    return kernel


# ---------------------------------------------------------------------------
# VMEM sizing / batch-tile choice
# ---------------------------------------------------------------------------
def _vmem_capacity_bytes():
    try:
        info = pltpu.get_tpu_info()
        cap = getattr(info, "vmem_capacity_bytes", None)
        if cap:
            return int(cap)
    except Exception:
        pass
    return 64 << 20      # conservative fallback (v7x physical VMEM per core)


def _per_batch_vmem_bytes(t, s, e, f, h):
    """Approximate f32 VMEM bytes one batch element needs inside the kernel:
    double-buffered I/O blocks + attention-score / qkv / FFN intermediates."""
    io_blocks = 2 * (2 * t * e + 2 * s * e) + 2 * t * e
    inter = (t * 2 * e + 2 * (t * 3 * e)          # self-attn concat + qkv (+split)
             + 2 * h * t * t                      # self-attn scores + probs
             + 4 * t * e                          # attn out / proj / residual / x
             + s * 2 * e + 2 * (s * 2 * e)        # cross concat + kv (+split)
             + 2 * t * e                          # cross q (+split)
             + 2 * h * t * s                      # cross scores + probs
             + 3 * t * e                          # cross out / proj / x
             + t * f + 2 * t * e)                 # FFN hidden + out + final
    return 4 * (io_blocks + inter)


def _choose_batch_tile(n, t, s, e, f, h, budget):
    per = _per_batch_vmem_bytes(t, s, e, f, h)
    divisors = [d for d in range(1, n + 1) if n % d == 0]
    # (8,128) rule: the blocks' second-minor dims (bt*T, bt*S) must be
    # multiples of 8 unless the block spans the whole array.
    legal = [d for d in divisors
             if ((d * t) % 8 == 0 or d == n) and ((d * s) % 8 == 0 or d == n)]
    fitting = [d for d in legal if d * per <= budget]
    if not fitting:
        return min(legal)          # shrink as far as legality allows
    bt = max(fitting)
    # v7x megacore: prefer >=2 parallel grid steps when it costs nothing
    # (weights stay VMEM-resident across steps, so the extra step is ~free).
    if bt == n and n > 1:
        smaller = [d for d in fitting if d < n]
        if smaller:
            bt = max(smaller)
    return bt


# ---------------------------------------------------------------------------
# One-time parameter packing (outside the jitted forward path)
# ---------------------------------------------------------------------------
def pack_params(params):
    """Pack PyTorch-layout parameters into a bf16 weight slab and an f32
    bias/LN slab.  Scale folding and q|k|v fusion happen here, once."""
    E = D_MODEL
    scale = 1.0 / math.sqrt(HEAD_DIM)

    def split_in_proj(w, b):
        return (w[0:E].T, w[E:2 * E].T, w[2 * E:3 * E].T,
                b[0:E], b[E:2 * E], b[2 * E:3 * E])

    wq, wk, wv, bq, bk, bv = split_in_proj(params["sa_in_proj_weight"],
                                           params["sa_in_proj_bias"])
    sa_wqkv = jnp.concatenate(
        [jnp.concatenate([wq * scale, wk, wv], axis=1),
         jnp.concatenate([wq * scale, wk, jnp.zeros_like(wv)], axis=1)], axis=0)
    sa_bqkv = jnp.concatenate([bq * scale, bk, bv])

    cwq, cwk, cwv, cbq, cbk, cbv = split_in_proj(params["ca_in_proj_weight"],
                                                 params["ca_in_proj_bias"])
    ca_wkv = jnp.concatenate(
        [jnp.concatenate([cwk, cwv], axis=1),
         jnp.concatenate([cwk, jnp.zeros_like(cwv)], axis=1)], axis=0)
    ca_bkv = jnp.concatenate([cbk, cbv])

    weights = {
        "sa_wqkv": sa_wqkv,
        "sa_wo": params["sa_out_proj_weight"].T,
        "ca_wq": cwq * scale,
        "ca_wkv": ca_wkv,
        "ca_wo": params["ca_out_proj_weight"].T,
        "w1": params["linear1_weight"].T,
        "w2": params["linear2_weight"].T,
    }
    biases = {
        "sa_bqkv": sa_bqkv,
        "sa_bo": params["sa_out_proj_bias"],
        "ca_bq": cbq * scale,
        "ca_bkv": ca_bkv,
        "ca_bo": params["ca_out_proj_bias"],
        "b1": params["linear1_bias"],
        "b2": params["linear2_bias"],
        "g1": params["norm1_weight"], "be1": params["norm1_bias"],
        "g2": params["norm2_weight"], "be2": params["norm2_bias"],
        "g3": params["norm3_weight"], "be3": params["norm3_bias"],
    }

    w_slab = jnp.zeros((_W_ROWS, _W_COLS), jnp.float32)
    for name, arr in weights.items():
        r, c0, cc = _W_LAYOUT[name]
        w_slab = w_slab.at[0:r, c0:c0 + cc].set(arr)
    b_slab = jnp.zeros((_B_ROWS, _B_COLS), jnp.float32)
    for name, vec in biases.items():
        r, w = _B_LAYOUT[name]
        b_slab = b_slab.at[r, 0:w].set(vec)
    return w_slab.astype(jnp.bfloat16), b_slab


# ---------------------------------------------------------------------------
# Forward
# ---------------------------------------------------------------------------
@jax.jit
def transformer_decoder_layer(tgt, memory, query_pos, pos, w_slab, b_slab):
    """TransformerDecoderLayer.forward_post (normalize_before=False, relu,
    eval mode).  tgt/query_pos: (T, N, E); memory/pos: (S, N, E) - PyTorch
    seq-first.  Returns (T, N, E)."""
    T, N, E = tgt.shape
    S = memory.shape[0]
    assert E == D_MODEL and memory.shape[1] == N

    # Batch-major, row-flattened activations (cheap XLA transposes outside the
    # kernel; removes all in-kernel block transposes).
    tgt_r = jnp.transpose(tgt, (1, 0, 2)).reshape(N * T, E)
    qp_r = jnp.transpose(query_pos, (1, 0, 2)).reshape(N * T, E)
    mem_r = jnp.transpose(memory, (1, 0, 2)).reshape(N * S, E)
    pos_r = jnp.transpose(pos, (1, 0, 2)).reshape(N * S, E)

    vmem_limit = min(int(_vmem_capacity_bytes() * 3 // 4), 100 << 20)
    bt = _choose_batch_tile(N, T, S, E, DIM_FF, NHEAD, budget=vmem_limit // 2)
    grid = (N // bt,)

    act_t = pl.BlockSpec((bt * T, E), lambda n: (n, 0))
    act_s = pl.BlockSpec((bt * S, E), lambda n: (n, 0))
    full_w = pl.BlockSpec((_W_ROWS, _W_COLS), lambda n: (0, 0))
    full_b = pl.BlockSpec((_B_ROWS, _B_COLS), lambda n: (0, 0))

    out = pl.pallas_call(
        _make_kernel(bt, T, S),
        out_shape=jax.ShapeDtypeStruct((N * T, E), jnp.float32),
        grid=grid,
        in_specs=[act_t, act_t, act_s, act_s, full_w, full_b],
        out_specs=pl.BlockSpec((bt * T, E), lambda n: (n, 0)),
        compiler_params=pltpu.CompilerParams(
            dimension_semantics=("parallel",),
            vmem_limit_bytes=vmem_limit),
    )(tgt_r, qp_r, mem_r, pos_r, w_slab, b_slab)

    return jnp.transpose(out.reshape(N, T, E), (1, 0, 2))


# ---------------------------------------------------------------------------
# Pure-JAX reference (f32) and parameter init
# ---------------------------------------------------------------------------
def reference_forward(tgt, memory, query_pos, pos, p):
    x = jnp.transpose(tgt, (1, 0, 2))
    mem = jnp.transpose(memory, (1, 0, 2))
    qp = jnp.transpose(query_pos, (1, 0, 2))
    pe = jnp.transpose(pos, (1, 0, 2))

    def layernorm(t, g, b):
        mu = jnp.mean(t, axis=-1, keepdims=True)
        var = jnp.mean((t - mu) ** 2, axis=-1, keepdims=True)
        return (t - mu) * jax.lax.rsqrt(var + EPS) * g + b

    def mha(q_in, k_in, v_in, w, b, wo, bo):
        E = q_in.shape[-1]
        hd = E // NHEAD
        wq, wk, wv = w[0:E], w[E:2 * E], w[2 * E:3 * E]
        bq, bk, bv = b[0:E], b[E:2 * E], b[2 * E:3 * E]
        q = q_in @ wq.T + bq
        k = k_in @ wk.T + bk
        v = v_in @ wv.T + bv

        def split(t):
            n, s, _ = t.shape
            return t.reshape(n, s, NHEAD, hd).transpose(0, 2, 1, 3)

        qh, kh, vh = split(q), split(k), split(v)
        s = jnp.einsum("nhqd,nhkd->nhqk", qh, kh) / math.sqrt(hd)
        a = jax.nn.softmax(s, axis=-1)
        o = jnp.einsum("nhqk,nhkd->nhqd", a, vh)
        n, _, tq, _ = o.shape
        o = o.transpose(0, 2, 1, 3).reshape(n, tq, E)
        return o @ wo.T + bo

    t2 = mha(x + qp, x + qp, x, p["sa_in_proj_weight"], p["sa_in_proj_bias"],
             p["sa_out_proj_weight"], p["sa_out_proj_bias"])
    x = layernorm(x + t2, p["norm1_weight"], p["norm1_bias"])
    t2 = mha(x + qp, mem + pe, mem, p["ca_in_proj_weight"], p["ca_in_proj_bias"],
             p["ca_out_proj_weight"], p["ca_out_proj_bias"])
    x = layernorm(x + t2, p["norm2_weight"], p["norm2_bias"])
    ff = jnp.maximum(x @ p["linear1_weight"].T + p["linear1_bias"], 0.0)
    ff = ff @ p["linear2_weight"].T + p["linear2_bias"]
    x = layernorm(x + ff, p["norm3_weight"], p["norm3_bias"])
    return jnp.transpose(x, (1, 0, 2))


def init_params(key):
    ks = jax.random.split(key, 12)
    E, F = D_MODEL, DIM_FF

    def w(k, shape, s=0.05):
        return s * jax.random.normal(k, shape, jnp.float32)

    return {
        "sa_in_proj_weight": w(ks[0], (3 * E, E)),
        "sa_in_proj_bias": w(ks[1], (3 * E,), 0.01),
        "sa_out_proj_weight": w(ks[2], (E, E)),
        "sa_out_proj_bias": w(ks[3], (E,), 0.01),
        "ca_in_proj_weight": w(ks[4], (3 * E, E)),
        "ca_in_proj_bias": w(ks[5], (3 * E,), 0.01),
        "ca_out_proj_weight": w(ks[6], (E, E)),
        "ca_out_proj_bias": w(ks[7], (E,), 0.01),
        "linear1_weight": w(ks[8], (F, E)),
        "linear1_bias": w(ks[9], (F,), 0.01),
        "linear2_weight": w(ks[10], (E, F)),
        "linear2_bias": w(ks[11], (E,), 0.01),
        "norm1_weight": jnp.ones((E,), jnp.float32),
        "norm1_bias": jnp.zeros((E,), jnp.float32),
        "norm2_weight": jnp.ones((E,), jnp.float32),
        "norm2_bias": jnp.zeros((E,), jnp.float32),
        "norm3_weight": jnp.ones((E,), jnp.float32),
        "norm3_bias": jnp.zeros((E,), jnp.float32),
    }


if __name__ == "__main__":
    # TODO(synk): dropout / dropout1-3 are identity (inference mode); attn and
    # key-padding masks are None as in the default DETR forward path.
    T, S, N, E = 8, 16, 2, D_MODEL   # num queries, memory length, batch, d_model
    key = jax.random.PRNGKey(0)
    kt, km, kq, kp, kpar = jax.random.split(key, 5)
    tgt = jax.random.normal(kt, (T, N, E), jnp.float32)
    memory = jax.random.normal(km, (S, N, E), jnp.float32)
    query_pos = jax.random.normal(kq, (T, N, E), jnp.float32)
    pos = jax.random.normal(kp, (S, N, E), jnp.float32)
    params = init_params(kpar)

    # Weight packing happens once, outside the per-call jit path.
    w_slab, b_slab = pack_params(params)

    out = transformer_decoder_layer(tgt, memory, query_pos, pos, w_slab, b_slab)
    out = jax.block_until_ready(out)

    ref = reference_forward(tgt, memory, query_pos, pos, params)
    assert out.shape == (T, N, E)
    # bf16 matmul operands + approx-reciprocal softmax -> loosened tolerance
    # vs the pure-f32 reference.
    assert jnp.allclose(out, ref, atol=2e-2, rtol=2e-2), "mismatch vs reference"
    print("KERNEL_OK")
</pallas_src>

<mosaic_0001>
module attributes {stable_mosaic.version = 11 : i64} {
  func.func @kernel(%arg0: i32, %arg1: memref<8x32xf32, #tpu.memory_space<vmem>>, %arg2: memref<8x32xf32, #tpu.memory_space<vmem>>, %arg3: memref<16x32xf32, #tpu.memory_space<vmem>>, %arg4: memref<16x32xf32, #tpu.memory_space<vmem>>, %arg5: memref<64x896xbf16, #tpu.memory_space<vmem>>, %arg6: memref<13x96xf32, #tpu.memory_space<vmem>>, %arg7: memref<8x32xf32, #tpu.memory_space<vmem>>) attributes {dimension_semantics = [#tpu.dimension_semantics<parallel>], iteration_bounds = array<i64: 2>, scalar_prefetch = 0 : i64, scratch_operands = 0 : i64, tpu.core_type = #tpu.core_type<tc>, window_params = [{transform_indices = @transform_0, window_bounds = array<i64: 8, 32>}, {transform_indices = @transform_1, window_bounds = array<i64: 8, 32>}, {transform_indices = @transform_2, window_bounds = array<i64: 16, 32>}, {transform_indices = @transform_3, window_bounds = array<i64: 16, 32>}, {pipeline_mode = #tpu.pipeline_mode<synchronous>, transform_indices = @transform_4, window_bounds = array<i64: 64, 896>}, {pipeline_mode = #tpu.pipeline_mode<synchronous>, transform_indices = @transform_5, window_bounds = array<i64: 13, 96>}, {transform_indices = @transform_6, window_bounds = array<i64: 8, 32>}]} {
    %c0 = arith.constant 0 : index
    %c0_0 = arith.constant 0 : index
    %0 = vector.load %arg1[%c0, %c0_0] : memref<8x32xf32, #tpu.memory_space<vmem>>, vector<8x32xf32>
    %c0_1 = arith.constant 0 : index
    %c0_2 = arith.constant 0 : index
    %1 = vector.load %arg2[%c0_1, %c0_2] : memref<8x32xf32, #tpu.memory_space<vmem>>, vector<8x32xf32>
    %c0_3 = arith.constant 0 : index
    %c0_4 = arith.constant 0 : index
    %2 = vector.load %arg3[%c0_3, %c0_4] : memref<16x32xf32, #tpu.memory_space<vmem>>, vector<16x32xf32>
    %c0_5 = arith.constant 0 : index
    %c0_6 = arith.constant 0 : index
    %3 = vector.load %arg4[%c0_5, %c0_6] : memref<16x32xf32, #tpu.memory_space<vmem>>, vector<16x32xf32>
    %c0_7 = arith.constant 0 : index
    %c0_8 = arith.constant 0 : index
    %4 = vector.load %arg6[%c0_7, %c0_8] : memref<13x96xf32, #tpu.memory_space<vmem>>, vector<13x96xf32>
    %5 = tpu.concatenate %0, %1 in 1 : vector<8x32xf32>, vector<8x32xf32> -> vector<8x64xf32>
    %6 = arith.truncf %5 : vector<8x64xf32> to vector<8x64xbf16>
    %c0_9 = arith.constant 0 : index
    %c0_10 = arith.constant 0 : index
    %7 = vector.load %arg5[%c0_9, %c0_10] : memref<64x896xbf16, #tpu.memory_space<vmem>>, vector<64x96xbf16>
    %cst = arith.constant dense<0.000000e+00> : vector<8x96xf32>
    %8 = tpu.matmul %6, %7, %cst {dimension_numbers = #tpu.dot_dimension_numbers<[1], [0], [0], [1], [0, 0, 1, 1], [], []>} : vector<8x64xbf16>, vector<64x96xbf16>, vector<8x96xf32> -> vector<8x96xf32>
    %9 = vector.extract_strided_slice %4 {offsets = [0, 0], sizes = [1, 96], strides = [1, 1]} : vector<13x96xf32> to vector<1x96xf32>
    %10 = vector.broadcast %9 : vector<1x96xf32> to vector<8x96xf32>
    %11 = arith.addf %8, %10 : vector<8x96xf32>
    %12 = vector.shape_cast %11 : vector<8x96xf32> to vector<8x12x8xf32>
    %13 = tpu.transpose %12, [1, 0, 2] : vector<8x12x8xf32> -> vector<12x8x8xf32>
    %14 = vector.shape_cast %13 : vector<12x8x8xf32> to vector<3x4x8x8xf32>
    %15 = vector.extract_strided_slice %14 {offsets = [0, 0, 0, 0], sizes = [1, 4, 8, 8], strides = [1, 1, 1, 1]} : vector<3x4x8x8xf32> to vector<1x4x8x8xf32>
    %16 = vector.shape_cast %15 : vector<1x4x8x8xf32> to vector<4x8x8xf32>
    %17 = vector.extract_strided_slice %14 {offsets = [1, 0, 0, 0], sizes = [1, 4, 8, 8], strides = [1, 1, 1, 1]} : vector<3x4x8x8xf32> to vector<1x4x8x8xf32>
    %18 = vector.shape_cast %17 : vector<1x4x8x8xf32> to vector<4x8x8xf32>
    %19 = vector.extract_strided_slice %14 {offsets = [2, 0, 0, 0], sizes = [1, 4, 8, 8], strides = [1, 1, 1, 1]} : vector<3x4x8x8xf32> to vector<1x4x8x8xf32>
    %20 = vector.shape_cast %19 : vector<1x4x8x8xf32> to vector<4x8x8xf32>
    %21 = arith.truncf %16 : vector<4x8x8xf32> to vector<4x8x8xbf16>
    %22 = arith.truncf %18 : vector<4x8x8xf32> to vector<4x8x8xbf16>
    "tpu.trace_start"() <{level = 10 : i32, message = "bqd,bkd->bqk"}> : () -> ()
    %cst_11 = arith.constant dense<0.000000e+00> : vector<4x8x8xf32>
    %23 = tpu.matmul %21, %22, %cst_11 {dimension_numbers = #tpu.dot_dimension_numbers<[2], [2], [1], [1], [0, 0, 0, 1, 1, 1], [0], [0]>} : vector<4x8x8xbf16>, vector<4x8x8xbf16>, vector<4x8x8xf32> -> vector<4x8x8xf32>
    "tpu.trace_stop"() : () -> ()
    %cst_12 = arith.constant dense<0xFF800000> : vector<4x8xf32>
    %24 = vector.multi_reduction <maximumf>, %23, %cst_12 [2] : vector<4x8x8xf32> to vector<4x8xf32>
    %25 = vector.shape_cast %24 : vector<4x8xf32> to vector<4x8x1xf32>
    %26 = vector.broadcast %25 : vector<4x8x1xf32> to vector<4x8x8xf32>
    %27 = arith.subf %23, %26 : vector<4x8x8xf32>
    %28 = math.exp %27 : vector<4x8x8xf32>
    %cst_13 = arith.constant dense<0.000000e+00> : vector<4x8xf32>
    %29 = vector.multi_reduction <add>, %28, %cst_13 [2] : vector<4x8x8xf32> to vector<4x8xf32>
    %30 = vector.shape_cast %29 : vector<4x8xf32> to vector<4x8x1xf32>
    %31 = tpu.reciprocal %30 {approx = true} : vector<4x8x1xf32> -> vector<4x8x1xf32>
    %32 = vector.broadcast %31 : vector<4x8x1xf32> to vector<4x8x8xf32>
    %33 = arith.mulf %28, %32 : vector<4x8x8xf32>
    %34 = arith.truncf %33 : vector<4x8x8xf32> to vector<4x8x8xbf16>
    %35 = arith.truncf %20 : vector<4x8x8xf32> to vector<4x8x8xbf16>
    "tpu.trace_start"() <{level = 10 : i32, message = "bqk,bkd->bqd"}> : () -> ()
    %cst_14 = arith.constant dense<0.000000e+00> : vector<4x8x8xf32>
    %36 = tpu.matmul %34, %35, %cst_14 {dimension_numbers = #tpu.dot_dimension_numbers<[2], [1], [1], [2], [0, 0, 0, 1, 1, 2], [0], [0]>} : vector<4x8x8xbf16>, vector<4x8x8xbf16>, vector<4x8x8xf32> -> vector<4x8x8xf32>
    "tpu.trace_stop"() : () -> ()
    %37 = tpu.transpose %36, [1, 0, 2] : vector<4x8x8xf32> -> vector<8x4x8xf32>
    %38 = vector.shape_cast %37 : vector<8x4x8xf32> to vector<8x32xf32>
    %39 = arith.truncf %38 : vector<8x32xf32> to vector<8x32xbf16>
    %c0_15 = arith.constant 0 : index
    %c128 = arith.constant 128 : index
    %40 = vector.load %arg5[%c0_15, %c128] : memref<64x896xbf16, #tpu.memory_space<vmem>>, vector<32x32xbf16>
    %cst_16 = arith.constant dense<0.000000e+00> : vector<8x32xf32>
    %41 = tpu.matmul %39, %40, %cst_16 {dimension_numbers = #tpu.dot_dimension_numbers<[1], [0], [0], [1], [0, 0, 1, 1], [], []>} : vector<8x32xbf16>, vector<32x32xbf16>, vector<8x32xf32> -> vector<8x32xf32>
    %42 = vector.extract_strided_slice %4 {offsets = [1, 0], sizes = [1, 32], strides = [1, 1]} : vector<13x96xf32> to vector<1x32xf32>
    %43 = vector.broadcast %42 : vector<1x32xf32> to vector<8x32xf32>
    %44 = arith.addf %41, %43 : vector<8x32xf32>
    %45 = arith.addf %0, %44 : vector<8x32xf32>
    %46 = vector.extract_strided_slice %4 {offsets = [7, 0], sizes = [1, 32], strides = [1, 1]} : vector<13x96xf32> to vector<1x32xf32>
    %47 = vector.extract_strided_slice %4 {offsets = [8, 0], sizes = [1, 32], strides = [1, 1]} : vector<13x96xf32> to vector<1x32xf32>
    %cst_17 = arith.constant dense<0.000000e+00> : vector<8xf32>
    %48 = vector.multi_reduction <add>, %45, %cst_17 [1] : vector<8x32xf32> to vector<8xf32>
    %49 = vector.shape_cast %48 : vector<8xf32> to vector<8x1xf32>
    %cst_18 = arith.constant 3.200000e+01 : f32
    %50 = vector.broadcast %cst_18 : f32 to vector<8x1xf32>
    %51 = arith.divf %49, %50 : vector<8x1xf32>
    %52 = vector.broadcast %51 : vector<8x1xf32> to vector<8x32xf32>
    %53 = arith.subf %45, %52 : vector<8x32xf32>
    %54 = arith.mulf %53, %53 : vector<8x32xf32>
    %cst_19 = arith.constant dense<0.000000e+00> : vector<8xf32>
    %55 = vector.multi_reduction <add>, %54, %cst_19 [1] : vector<8x32xf32> to vector<8xf32>
    %56 = vector.shape_cast %55 : vector<8xf32> to vector<8x1xf32>
    %cst_20 = arith.constant 3.200000e+01 : f32
    %57 = vector.broadcast %cst_20 : f32 to vector<8x1xf32>
    %58 = arith.divf %56, %57 : vector<8x1xf32>
    %59 = vector.broadcast %51 : vector<8x1xf32> to vector<8x32xf32>
    %60 = arith.subf %45, %59 : vector<8x32xf32>
    %cst_21 = arith.constant 9.99999974E-6 : f32
    %61 = vector.broadcast %cst_21 : f32 to vector<8x1xf32>
    %62 = arith.addf %58, %61 : vector<8x1xf32>
    %63 = math.rsqrt %62 : vector<8x1xf32>
    %64 = vector.broadcast %63 : vector<8x1xf32> to vector<8x32xf32>
    %65 = arith.mulf %60, %64 : vector<8x32xf32>
    %66 = vector.broadcast %46 : vector<1x32xf32> to vector<8x32xf32>
    %67 = arith.mulf %65, %66 : vector<8x32xf32>
    %68 = vector.broadcast %47 : vector<1x32xf32> to vector<8x32xf32>
    %69 = arith.addf %67, %68 : vector<8x32xf32>
    %70 = tpu.concatenate %2, %3 in 1 : vector<16x32xf32>, vector<16x32xf32> -> vector<16x64xf32>
    %71 = arith.truncf %70 : vector<16x64xf32> to vector<16x64xbf16>
    %c0_22 = arith.constant 0 : index
    %c384 = arith.constant 384 : index
    %72 = vector.load %arg5[%c0_22, %c384] : memref<64x896xbf16, #tpu.memory_space<vmem>>, vector<64x64xbf16>
    %cst_23 = arith.constant dense<0.000000e+00> : vector<16x64xf32>
    %73 = tpu.matmul %71, %72, %cst_23 {dimension_numbers = #tpu.dot_dimension_numbers<[1], [0], [0], [1], [0, 0, 1, 1], [], []>} : vector<16x64xbf16>, vector<64x64xbf16>, vector<16x64xf32> -> vector<16x64xf32>
    %74 = vector.extract_strided_slice %4 {offsets = [3, 0], sizes = [1, 64], strides = [1, 1]} : vector<13x96xf32> to vector<1x64xf32>
    %75 = vector.broadcast %74 : vector<1x64xf32> to vector<16x64xf32>
    %76 = arith.addf %73, %75 : vector<16x64xf32>
    %77 = vector.shape_cast %76 : vector<16x64xf32> to vector<16x8x8xf32>
    %78 = tpu.transpose %77, [1, 0, 2] : vector<16x8x8xf32> -> vector<8x16x8xf32>
    %79 = vector.shape_cast %78 : vector<8x16x8xf32> to vector<2x4x16x8xf32>
    %80 = arith.addf %69, %1 : vector<8x32xf32>
    %81 = arith.truncf %80 : vector<8x32xf32> to vector<8x32xbf16>
    %c0_24 = arith.constant 0 : index
    %c256 = arith.constant 256 : index
    %82 = vector.load %arg5[%c0_24, %c256] : memref<64x896xbf16, #tpu.memory_space<vmem>>, vector<32x32xbf16>
    %cst_25 = arith.constant dense<0.000000e+00> : vector<8x32xf32>
    %83 = tpu.matmul %81, %82, %cst_25 {dimension_numbers = #tpu.dot_dimension_numbers<[1], [0], [0], [1], [0, 0, 1, 1], [], []>} : vector<8x32xbf16>, vector<32x32xbf16>, vector<8x32xf32> -> vector<8x32xf32>
    %84 = vector.extract_strided_slice %4 {offsets = [2, 0], sizes = [1, 32], strides = [1, 1]} : vector<13x96xf32> to vector<1x32xf32>
    %85 = vector.broadcast %84 : vector<1x32xf32> to vector<8x32xf32>
    %86 = arith.addf %83, %85 : vector<8x32xf32>
    %87 = vector.shape_cast %86 : vector<8x32xf32> to vector<8x4x8xf32>
    %88 = tpu.transpose %87, [1, 0, 2] : vector<8x4x8xf32> -> vector<4x8x8xf32>
    %89 = vector.shape_cast %88 : vector<4x8x8xf32> to vector<1x4x8x8xf32>
    %90 = vector.shape_cast %89 : vector<1x4x8x8xf32> to vector<4x8x8xf32>
    %91 = vector.extract_strided_slice %79 {offsets = [0, 0, 0, 0], sizes = [1, 4, 16, 8], strides = [1, 1, 1, 1]} : vector<2x4x16x8xf32> to vector<1x4x16x8xf32>
    %92 = vector.shape_cast %91 : vector<1x4x16x8xf32> to vector<4x16x8xf32>
    %93 = vector.extract_strided_slice %79 {offsets = [1, 0, 0, 0], sizes = [1, 4, 16, 8], strides = [1, 1, 1, 1]} : vector<2x4x16x8xf32> to vector<1x4x16x8xf32>
    %94 = vector.shape_cast %93 : vector<1x4x16x8xf32> to vector<4x16x8xf32>
    %95 = arith.truncf %90 : vector<4x8x8xf32> to vector<4x8x8xbf16>
    %96 = arith.truncf %92 : vector<4x16x8xf32> to vector<4x16x8xbf16>
    "tpu.trace_start"() <{level = 10 : i32, message = "bqd,bkd->bqk"}> : () -> ()
    %cst_26 = arith.constant dense<0.000000e+00> : vector<4x8x16xf32>
    %97 = tpu.matmul %95, %96, %cst_26 {dimension_numbers = #tpu.dot_dimension_numbers<[2], [2], [1], [1], [0, 0, 0, 1, 1, 1], [0], [0]>} : vector<4x8x8xbf16>, vector<4x16x8xbf16>, vector<4x8x16xf32> -> vector<4x8x16xf32>
    "tpu.trace_stop"() : () -> ()
    %cst_27 = arith.constant dense<0xFF800000> : vector<4x8xf32>
    %98 = vector.multi_reduction <maximumf>, %97, %cst_27 [2] : vector<4x8x16xf32> to vector<4x8xf32>
    %99 = vector.shape_cast %98 : vector<4x8xf32> to vector<4x8x1xf32>
    %100 = vector.broadcast %99 : vector<4x8x1xf32> to vector<4x8x16xf32>
    %101 = arith.subf %97, %100 : vector<4x8x16xf32>
    %102 = math.exp %101 : vector<4x8x16xf32>
    %cst_28 = arith.constant dense<0.000000e+00> : vector<4x8xf32>
    %103 = vector.multi_reduction <add>, %102, %cst_28 [2] : vector<4x8x16xf32> to vector<4x8xf32>
    %104 = vector.shape_cast %103 : vector<4x8xf32> to vector<4x8x1xf32>
    %105 = tpu.reciprocal %104 {approx = true} : vector<4x8x1xf32> -> vector<4x8x1xf32>
    %106 = vector.broadcast %105 : vector<4x8x1xf32> to vector<4x8x16xf32>
    %107 = arith.mulf %102, %106 : vector<4x8x16xf32>
    %108 = arith.truncf %107 : vector<4x8x16xf32> to vector<4x8x16xbf16>
    %109 = arith.truncf %94 : vector<4x16x8xf32> to vector<4x16x8xbf16>
    "tpu.trace_start"() <{level = 10 : i32, message = "bqk,bkd->bqd"}> : () -> ()
    %cst_29 = arith.constant dense<0.000000e+00> : vector<4x8x8xf32>
    %110 = tpu.matmul %108, %109, %cst_29 {dimension_numbers = #tpu.dot_dimension_numbers<[2], [1], [1], [2], [0, 0, 0, 1, 1, 2], [0], [0]>} : vector<4x8x16xbf16>, vector<4x16x8xbf16>, vector<4x8x8xf32> -> vector<4x8x8xf32>
    "tpu.trace_stop"() : () -> ()
    %111 = tpu.transpose %110, [1, 0, 2] : vector<4x8x8xf32> -> vector<8x4x8xf32>
    %112 = vector.shape_cast %111 : vector<8x4x8xf32> to vector<8x32xf32>
    %113 = arith.truncf %112 : vector<8x32xf32> to vector<8x32xbf16>
    %c0_30 = arith.constant 0 : index
    %c512 = arith.constant 512 : index
    %114 = vector.load %arg5[%c0_30, %c512] : memref<64x896xbf16, #tpu.memory_space<vmem>>, vector<32x32xbf16>
    %cst_31 = arith.constant dense<0.000000e+00> : vector<8x32xf32>
    %115 = tpu.matmul %113, %114, %cst_31 {dimension_numbers = #tpu.dot_dimension_numbers<[1], [0], [0], [1], [0, 0, 1, 1], [], []>} : vector<8x32xbf16>, vector<32x32xbf16>, vector<8x32xf32> -> vector<8x32xf32>
    %116 = vector.extract_strided_slice %4 {offsets = [4, 0], sizes = [1, 32], strides = [1, 1]} : vector<13x96xf32> to vector<1x32xf32>
    %117 = vector.broadcast %116 : vector<1x32xf32> to vector<8x32xf32>
    %118 = arith.addf %115, %117 : vector<8x32xf32>
    %119 = arith.addf %69, %118 : vector<8x32xf32>
    %120 = vector.extract_strided_slice %4 {offsets = [9, 0], sizes = [1, 32], strides = [1, 1]} : vector<13x96xf32> to vector<1x32xf32>
    %121 = vector.extract_strided_slice %4 {offsets = [10, 0], sizes = [1, 32], strides = [1, 1]} : vector<13x96xf32> to vector<1x32xf32>
    %cst_32 = arith.constant dense<0.000000e+00> : vector<8xf32>
    %122 = vector.multi_reduction <add>, %119, %cst_32 [1] : vector<8x32xf32> to vector<8xf32>
    %123 = vector.shape_cast %122 : vector<8xf32> to vector<8x1xf32>
    %cst_33 = arith.constant 3.200000e+01 : f32
    %124 = vector.broadcast %cst_33 : f32 to vector<8x1xf32>
    %125 = arith.divf %123, %124 : vector<8x1xf32>
    %126 = vector.broadcast %125 : vector<8x1xf32> to vector<8x32xf32>
    %127 = arith.subf %119, %126 : vector<8x32xf32>
    %128 = arith.mulf %127, %127 : vector<8x32xf32>
    %cst_34 = arith.constant dense<0.000000e+00> : vector<8xf32>
    %129 = vector.multi_reduction <add>, %128, %cst_34 [1] : vector<8x32xf32> to vector<8xf32>
    %130 = vector.shape_cast %129 : vector<8xf32> to vector<8x1xf32>
    %cst_35 = arith.constant 3.200000e+01 : f32
    %131 = vector.broadcast %cst_35 : f32 to vector<8x1xf32>
    %132 = arith.divf %130, %131 : vector<8x1xf32>
    %133 = vector.broadcast %125 : vector<8x1xf32> to vector<8x32xf32>
    %134 = arith.subf %119, %133 : vector<8x32xf32>
    %cst_36 = arith.constant 9.99999974E-6 : f32
    %135 = vector.broadcast %cst_36 : f32 to vector<8x1xf32>
    %136 = arith.addf %132, %135 : vector<8x1xf32>
    %137 = math.rsqrt %136 : vector<8x1xf32>
    %138 = vector.broadcast %137 : vector<8x1xf32> to vector<8x32xf32>
    %139 = arith.mulf %134, %138 : vector<8x32xf32>
    %140 = vector.broadcast %120 : vector<1x32xf32> to vector<8x32xf32>
    %141 = arith.mulf %139, %140 : vector<8x32xf32>
    %142 = vector.broadcast %121 : vector<1x32xf32> to vector<8x32xf32>
    %143 = arith.addf %141, %142 : vector<8x32xf32>
    %144 = arith.truncf %143 : vector<8x32xf32> to vector<8x32xbf16>
    %c0_37 = arith.constant 0 : index
    %c640 = arith.constant 640 : index
    %145 = vector.load %arg5[%c0_37, %c640] : memref<64x896xbf16, #tpu.memory_space<vmem>>, vector<32x64xbf16>
    %cst_38 = arith.constant dense<0.000000e+00> : vector<8x64xf32>
    %146 = tpu.matmul %144, %145, %cst_38 {dimension_numbers = #tpu.dot_dimension_numbers<[1], [0], [0], [1], [0, 0, 1, 1], [], []>} : vector<8x32xbf16>, vector<32x64xbf16>, vector<8x64xf32> -> vector<8x64xf32>
    %147 = vector.extract_strided_slice %4 {offsets = [5, 0], sizes = [1, 64], strides = [1, 1]} : vector<13x96xf32> to vector<1x64xf32>
    %148 = vector.broadcast %147 : vector<1x64xf32> to vector<8x64xf32>
    %149 = arith.addf %146, %148 : vector<8x64xf32>
    %cst_39 = arith.constant 0.000000e+00 : f32
    %150 = vector.broadcast %cst_39 : f32 to vector<8x64xf32>
    %151 = arith.maximumf %149, %150 : vector<8x64xf32>
    %152 = arith.truncf %151 : vector<8x64xf32> to vector<8x64xbf16>
    %c0_40 = arith.constant 0 : index
    %c768 = arith.constant 768 : index
    %153 = vector.load %arg5[%c0_40, %c768] : memref<64x896xbf16, #tpu.memory_space<vmem>>, vector<64x32xbf16>
    %cst_41 = arith.constant dense<0.000000e+00> : vector<8x32xf32>
    %154 = tpu.matmul %152, %153, %cst_41 {dimension_numbers = #tpu.dot_dimension_numbers<[1], [0], [0], [1], [0, 0, 1, 1], [], []>} : vector<8x64xbf16>, vector<64x32xbf16>, vector<8x32xf32> -> vector<8x32xf32>
    %155 = vector.extract_strided_slice %4 {offsets = [6, 0], sizes = [1, 32], strides = [1, 1]} : vector<13x96xf32> to vector<1x32xf32>
    %156 = vector.broadcast %155 : vector<1x32xf32> to vector<8x32xf32>
    %157 = arith.addf %154, %156 : vector<8x32xf32>
    %158 = arith.addf %143, %157 : vector<8x32xf32>
    %159 = vector.extract_strided_slice %4 {offsets = [11, 0], sizes = [1, 32], strides = [1, 1]} : vector<13x96xf32> to vector<1x32xf32>
    %160 = vector.extract_strided_slice %4 {offsets = [12, 0], sizes = [1, 32], strides = [1, 1]} : vector<13x96xf32> to vector<1x32xf32>
    %cst_42 = arith.constant dense<0.000000e+00> : vector<8xf32>
    %161 = vector.multi_reduction <add>, %158, %cst_42 [1] : vector<8x32xf32> to vector<8xf32>
    %162 = vector.shape_cast %161 : vector<8xf32> to vector<8x1xf32>
    %cst_43 = arith.constant 3.200000e+01 : f32
    %163 = vector.broadcast %cst_43 : f32 to vector<8x1xf32>
    %164 = arith.divf %162, %163 : vector<8x1xf32>
    %165 = vector.broadcast %164 : vector<8x1xf32> to vector<8x32xf32>
    %166 = arith.subf %158, %165 : vector<8x32xf32>
    %167 = arith.mulf %166, %166 : vector<8x32xf32>
    %cst_44 = arith.constant dense<0.000000e+00> : vector<8xf32>
    %168 = vector.multi_reduction <add>, %167, %cst_44 [1] : vector<8x32xf32> to vector<8xf32>
    %169 = vector.shape_cast %168 : vector<8xf32> to vector<8x1xf32>
    %cst_45 = arith.constant 3.200000e+01 : f32
    %170 = vector.broadcast %cst_45 : f32 to vector<8x1xf32>
    %171 = arith.divf %169, %170 : vector<8x1xf32>
    %172 = vector.broadcast %164 : vector<8x1xf32> to vector<8x32xf32>
    %173 = arith.subf %158, %172 : vector<8x32xf32>
    %cst_46 = arith.constant 9.99999974E-6 : f32
    %174 = vector.broadcast %cst_46 : f32 to vector<8x1xf32>
    %175 = arith.addf %171, %174 : vector<8x1xf32>
    %176 = math.rsqrt %175 : vector<8x1xf32>
    %177 = vector.broadcast %176 : vector<8x1xf32> to vector<8x32xf32>
    %178 = arith.mulf %173, %177 : vector<8x32xf32>
    %179 = vector.broadcast %159 : vector<1x32xf32> to vector<8x32xf32>
    %180 = arith.mulf %178, %179 : vector<8x32xf32>
    %181 = vector.broadcast %160 : vector<1x32xf32> to vector<8x32xf32>
    %182 = arith.addf %180, %181 : vector<8x32xf32>
    %c0_47 = arith.constant 0 : index
    %c0_48 = arith.constant 0 : index
    %183 = vector.load %arg7[%c0_47, %c0_48] : memref<8x32xf32, #tpu.memory_space<vmem>>, vector<8x32xf32>
    tpu.vector_store %arg7[%c0_47, %c0_48], %182 {strides = array<i32>} : memref<8x32xf32, #tpu.memory_space<vmem>>, vector<8x32xf32>,
    return
  }
  func.func @transform_0(%arg0: i32) -> (i32, i32) {
    %c0_i32 = arith.constant 0 : i32
    %c0_i32_0 = arith.constant 0 : i32
    return %arg0, %c0_i32 : i32, i32
  }
  func.func @transform_1(%arg0: i32) -> (i32, i32) {
    %c0_i32 = arith.constant 0 : i32
    %c0_i32_0 = arith.constant 0 : i32
    return %arg0, %c0_i32 : i32, i32
  }
  func.func @transform_2(%arg0: i32) -> (i32, i32) {
    %c0_i32 = arith.constant 0 : i32
    %c0_i32_0 = arith.constant 0 : i32
    return %arg0, %c0_i32 : i32, i32
  }
  func.func @transform_3(%arg0: i32) -> (i32, i32) {
    %c0_i32 = arith.constant 0 : i32
    %c0_i32_0 = arith.constant 0 : i32
    return %arg0, %c0_i32 : i32, i32
  }
  func.func @transform_4(%arg0: i32) -> (i32, i32) {
    %c0_i32 = arith.constant 0 : i32
    %c0_i32_0 = arith.constant 0 : i32
    %c0_i32_1 = arith.constant 0 : i32
    return %c0_i32, %c0_i32_0 : i32, i32
  }
  func.func @transform_5(%arg0: i32) -> (i32, i32) {
    %c0_i32 = arith.constant 0 : i32
    %c0_i32_0 = arith.constant 0 : i32
    %c0_i32_1 = arith.constant 0 : i32
    return %c0_i32, %c0_i32_0 : i32, i32
  }
  func.func @transform_6(%arg0: i32) -> (i32, i32) {
    %c0_i32 = arith.constant 0 : i32
    %c0_i32_0 = arith.constant 0 : i32
    return %arg0, %c0_i32 : i32, i32
  }
}

</mosaic_0001>

<llo_original>
// kernel: transformer_decoder_layer.1
$region0: #{transformer_decoder_layer.1}
  #allocation0 [shape = 'u32[]', space=smem, size = 0x4, offset = 0x4, fixed_abs, tag = 'smem constant byte address 0x4 - core index']
  #allocation1 [shape = 'u32[144,128]{1,0:T(1,128)}', space=vmem, size = 0x12000, scoped, tag = 'internal scratch']
  %s0 = inlined_call_operand.vmem [shape: f32[16,32], index: 0, kind: input, shape index: {}]
  %s1 = inlined_call_operand.vmem [shape: f32[16,32], index: 1, kind: input, shape index: {}]
  %s2 = inlined_call_operand.vmem [shape: f32[32,32], index: 2, kind: input, shape index: {}]
  %s3 = inlined_call_operand.vmem [shape: f32[32,32], index: 3, kind: input, shape index: {}]
  %s4 = inlined_call_operand.hbm [shape: bf16[64,896], index: 4, kind: input, shape index: {}]
  %s5 = inlined_call_operand.vmem [shape: f32[13,96], index: 5, kind: input, shape index: {}]
  %s6 = inlined_call_operand.vmem [shape: f32[16,32], index: 6, kind: output, shape index: {}]
  %s7 = sld [smem:[#allocation0]]
  $region61: #{transformer_decoder_layer.1} parent=0
    _
  %s9 = ssub.s32 1, %s7
  %s10 = scalar_select 0, %s9, %s7
  $region1: #{transformer_decoder_layer.1} parent=0
    #allocation2 [shape = 'u8[114688]{0}', space=vmem, size = 0x1c000, scoped, tag = 'input window, operand 4, single buffered']
    #allocation3 [shape = 's32[2]{0}', space=sflag, size = 0x8, scoped, tag = 'scoped memory for transformer_decoder_layer.1']
    %11 = vsyncpa [#allocation3], 0
    loop: start=0, step=1, limit=4
    $region2: #{transformer_decoder_layer.1} parent=1 // loop_pre_header
      _
    $region3: #{transformer_decoder_layer.1} parent=1 // loop_header
      %s13 = sphi 0, %s17
      %p14 = scmp.ge.s32.totalorder %s13, 4
      %s23 = sphi 0, %s25
      %s26 = sphi 0, %s23
      %s27 = sphi 0, %s26
      %s43 = sphi 0, %s27
      %s49 = sphi 0, %s51
      %s52 = sphi 0, %s49
      %s53 = sphi 0, %s52
      %s69 = sphi 0, %s53
      %s75 = sphi 0, %s77
      %s78 = sphi 0, %s75
      %s79 = sphi 0, %s78
      %s95 = sphi 0, %s79
      %s101 = sphi 0, %s103
      %s104 = sphi 0, %s101
      %s105 = sphi 0, %s104
      %s121 = sphi 0, %s105
      %s125 = sphi 0, %s125
      %s127 = sphi 0, %s125
      %s128 = sphi 0, %s127
      %s142 = sphi 0, %s128
      %s146 = sphi 0, %s146
      %s148 = sphi 0, %s146
      %s149 = sphi 0, %s148
      %s163 = sphi 0, %s149
      %s169 = sphi 0, %s171
      %s172 = sphi 0, %s169
      %s173 = sphi 0, %s172
      %s189 = sphi 0, %s173
    $region4: #{transformer_decoder_layer.1} parent=1 // loop_header_branch
      %16 = sbr.rel (%p14) target = $region8
    $region5: #{transformer_decoder_layer.1} parent=1 // loop_body
      %s18 = ssub.s32 %s13, 1
      %s19 = ssub.s32 %s13, 2
      %s20 = sadd.s32 %s13, 1
      %s21 = ssub.s32 %s13, %s20
      %p22 = scmp.eq.s32.totalorder %s21, 0
      %s24 = sadd.s32 %s23, 1
      %s25 = scalar_select %p22, %s23, %s24
      %p28 = pneg %p22
      %p29 = scmp.eq.s32.totalorder %s13, 1
      %p30 = por %p28, %p29
      %p31 = scmp.ne.s32.totalorder %s23, %s26
      %p32 = scmp.eq.s32.totalorder %s13, 0
      %p33 = por %p31, %p32
      %p34 = scmp.ne.s32.totalorder %s23, %s26
      %p35 = scmp.eq.s32.totalorder %s18, 1
      %p36 = por %p34, %p35
      %p37 = scmp.ne.s32.totalorder %s26, %s27
      %p38 = scmp.eq.s32.totalorder %s18, 0
      %p39 = por %p37, %p38
      %p40 = scmp.ne.s32.totalorder %s26, %s27
      %p41 = scmp.eq.s32.totalorder %s19, 1
      %p42 = por %p40, %p41
      %p44 = scmp.ne.s32.totalorder %s27, %s43
      %p45 = scmp.eq.s32.totalorder %s19, 0
      %p46 = por %p44, %p45
      %s47 = ssub.s32 %s13, %s20
      %p48 = scmp.eq.s32.totalorder %s47, 0
      %s50 = sadd.s32 %s49, 1
      %s51 = scalar_select %p48, %s49, %s50
      %p54 = pneg %p48
      %p55 = scmp.eq.s32.totalorder %s13, 1
      %p56 = por %p54, %p55
      %p57 = scmp.ne.s32.totalorder %s49, %s52
      %p58 = scmp.eq.s32.totalorder %s13, 0
      %p59 = por %p57, %p58
      %p60 = scmp.ne.s32.totalorder %s49, %s52
      %p61 = scmp.eq.s32.totalorder %s18, 1
      %p62 = por %p60, %p61
      %p63 = scmp.ne.s32.totalorder %s52, %s53
      %p64 = scmp.eq.s32.totalorder %s18, 0
      %p65 = por %p63, %p64
      %p66 = scmp.ne.s32.totalorder %s52, %s53
      %p67 = scmp.eq.s32.totalorder %s19, 1
      %p68 = por %p66, %p67
      %p70 = scmp.ne.s32.totalorder %s53, %s69
      %p71 = scmp.eq.s32.totalorder %s19, 0
      %p72 = por %p70, %p71
      %s73 = ssub.s32 %s13, %s20
      %p74 = scmp.eq.s32.totalorder %s73, 0
      %s76 = sadd.s32 %s75, 1
      %s77 = scalar_select %p74, %s75, %s76
      %p80 = pneg %p74
      %p81 = scmp.eq.s32.totalorder %s13, 1
      %p82 = por %p80, %p81
      %p83 = scmp.ne.s32.totalorder %s75, %s78
      %p84 = scmp.eq.s32.totalorder %s13, 0
      %p85 = por %p83, %p84
      %p86 = scmp.ne.s32.totalorder %s75, %s78
      %p87 = scmp.eq.s32.totalorder %s18, 1
      %p88 = por %p86, %p87
      %p89 = scmp.ne.s32.totalorder %s78, %s79
      %p90 = scmp.eq.s32.totalorder %s18, 0
      %p91 = por %p89, %p90
      %p92 = scmp.ne.s32.totalorder %s78, %s79
      %p93 = scmp.eq.s32.totalorder %s19, 1
      %p94 = por %p92, %p93
      %p96 = scmp.ne.s32.totalorder %s79, %s95
      %p97 = scmp.eq.s32.totalorder %s19, 0
      %p98 = por %p96, %p97
      %s99 = ssub.s32 %s13, %s20
      %p100 = scmp.eq.s32.totalorder %s99, 0
      %s102 = sadd.s32 %s101, 1
      %s103 = scalar_select %p100, %s101, %s102
      %p106 = pneg %p100
      %p107 = scmp.eq.s32.totalorder %s13, 1
      %p108 = por %p106, %p107
      %p109 = scmp.ne.s32.totalorder %s101, %s104
      %p110 = scmp.eq.s32.totalorder %s13, 0
      %p111 = por %p109, %p110
      %p112 = scmp.ne.s32.totalorder %s101, %s104
      %p113 = scmp.eq.s32.totalorder %s18, 1
      %p114 = por %p112, %p113
      %p115 = scmp.ne.s32.totalorder %s104, %s105
      %p116 = scmp.eq.s32.totalorder %s18, 0
      %p117 = por %p115, %p116
      %p118 = scmp.ne.s32.totalorder %s104, %s105
      %p119 = scmp.eq.s32.totalorder %s19, 1
      %p120 = por %p118, %p119
      %p122 = scmp.ne.s32.totalorder %s105, %s121
      %p123 = scmp.eq.s32.totalorder %s19, 0
      %p124 = por %p122, %p123
      %s126 = sadd.s32 %s125, 1
      %p129 = scmp.eq.s32.totalorder %s13, 1
      %p130 = scmp.ne.s32.totalorder %s125, %s127
      %p131 = scmp.eq.s32.totalorder %s13, 0
      %p132 = por %p130, %p131
      %p133 = scmp.ne.s32.totalorder %s125, %s127
      %p134 = scmp.eq.s32.totalorder %s18, 1
      %p135 = por %p133, %p134
      %p136 = scmp.ne.s32.totalorder %s127, %s128
      %p137 = scmp.eq.s32.totalorder %s18, 0
      %p138 = por %p136, %p137
      %p139 = scmp.ne.s32.totalorder %s127, %s128
      %p140 = scmp.eq.s32.totalorder %s19, 1
      %p141 = por %p139, %p140
      %p143 = scmp.ne.s32.totalorder %s128, %s142
      %p144 = scmp.eq.s32.totalorder %s19, 0
      %p145 = por %p143, %p144
      %s147 = sadd.s32 %s146, 1
      %p150 = scmp.eq.s32.totalorder %s13, 1
      %p151 = scmp.ne.s32.totalorder %s146, %s148
      %p152 = scmp.eq.s32.totalorder %s13, 0
      %p153 = por %p151, %p152
      %p154 = scmp.ne.s32.totalorder %s146, %s148
      %p155 = scmp.eq.s32.totalorder %s18, 1
      %p156 = por %p154, %p155
      %p157 = scmp.ne.s32.totalorder %s148, %s149
      %p158 = scmp.eq.s32.totalorder %s18, 0
      %p159 = por %p157, %p158
      %p160 = scmp.ne.s32.totalorder %s148, %s149
      %p161 = scmp.eq.s32.totalorder %s19, 1
      %p162 = por %p160, %p161
      %p164 = scmp.ne.s32.totalorder %s149, %s163
      %p165 = scmp.eq.s32.totalorder %s19, 0
      %p166 = por %p164, %p165
      %s167 = ssub.s32 %s13, %s20
      %p168 = scmp.eq.s32.totalorder %s167, 0
      %s170 = sadd.s32 %s169, 1
      %s171 = scalar_select %p168, %s169, %s170
      %p174 = pneg %p168
      %p175 = scmp.eq.s32.totalorder %s13, 1
      %p176 = por %p174, %p175
      %p177 = scmp.ne.s32.totalorder %s169, %s172
      %p178 = scmp.eq.s32.totalorder %s13, 0
      %p179 = por %p177, %p178
      %p180 = scmp.ne.s32.totalorder %s169, %s172
      %p181 = scmp.eq.s32.totalorder %s18, 1
      %p182 = por %p180, %p181
      %p183 = scmp.ne.s32.totalorder %s172, %s173
      %p184 = scmp.eq.s32.totalorder %s18, 0
      %p185 = por %p183, %p184
      %p186 = scmp.ne.s32.totalorder %s172, %s173
      %p187 = scmp.eq.s32.totalorder %s19, 1
      %p188 = por %p186, %p187
      %p190 = scmp.ne.s32.totalorder %s173, %s189
      %p191 = scmp.eq.s32.totalorder %s19, 0
      %p192 = por %p190, %p191
      %p193 = scmp.le.s32.totalorder 1, %s13
      %p194 = scmp.lt.s32.totalorder %s13, 3
      %p195 = pnand %p193, %p194
      %p196 = pneg %p195
      // Predicated region
      $region9: #{transformer_decoder_layer.1} parent=5 // pred_check
        _
      $region10: #{transformer_decoder_layer.1} parent=5 // pred_check_branch
        %198 = sbr.rel (%p195) target = $region12
      $region11: #{transformer_decoder_layer.1} parent=5 // pred_region
        %s199 = ssub.s32 %s13, 1
        // Predicated region
        $region13: #{transformer_decoder_layer.1} parent=11 // pred_check
          %p200 = pneg %p138
        $region14: #{transformer_decoder_layer.1} parent=11 // pred_check_branch
          %202 = sbr.rel (%p200) target = $region16
        $region15: #{transformer_decoder_layer.1} parent=11 // pred_region
          %s204 = ssub.s32 3584, 3584
          %205 = vsyncadd [#allocation3], %s204
          %s206 = sshll.u32 [#allocation2], 4
          %s207 = int_to_ptr.vmem [resolvable:$true] %s206
          %212 = dma.hbm_to_vmem [thread:$0]  %s4, 3584, %s207, [#allocation3], 448, 448, 28
        $region16: #{transformer_decoder_layer.1} parent=11 // pred_fallthru
          _
        // Predicated region
        $region17: #{transformer_decoder_layer.1} parent=11 // pred_check
          %p213 = pneg %p159
        $region18: #{transformer_decoder_layer.1} parent=11 // pred_check_branch
          %215 = sbr.rel (%p213) target = $region20
        $region19: #{transformer_decoder_layer.1} parent=11 // pred_region
          _
        $region20: #{transformer_decoder_layer.1} parent=11 // pred_fallthru
          _
      $region12: #{transformer_decoder_layer.1} parent=5 // pred_fallthru
        _
      %p216 = scmp.lt.s32.totalorder %s13, 2
      // Predicated region
      $region21: #{transformer_decoder_layer.1} parent=5 // pred_check
        %p217 = pneg %p216
      $region22: #{transformer_decoder_layer.1} parent=5 // pred_check_branch
        %219 = sbr.rel (%p217) target = $region24
      $region23: #{transformer_decoder_layer.1} parent=5 // pred_region
        // Predicated region
        $region25: #{transformer_decoder_layer.1} parent=23 // pred_check
          %p220 = pneg %p33
        $region26: #{transformer_decoder_layer.1} parent=23 // pred_check_branch
          %222 = sbr.rel (%p220) target = $region28
        $region27: #{transformer_decoder_layer.1} parent=23 // pred_region
          %p223 = scmp.lt.s32.totalorder %s13, 1
          %s224 = scalar_select %p223, %s13, 1
          %s225 = smul.addr %s224, 8
          %s226 = scalar_lea.vmem %s0, %s225
        $region28: #{transformer_decoder_layer.1} parent=23 // pred_fallthru
          _
        // Predicated region
        $region29: #{transformer_decoder_layer.1} parent=23 // pred_check
          %p227 = pneg %p59
        $region30: #{transformer_decoder_layer.1} parent=23 // pred_check_branch
          %229 = sbr.rel (%p227) target = $region32
        $region31: #{transformer_decoder_layer.1} parent=23 // pred_region
          %p230 = scmp.lt.s32.totalorder %s13, 1
          %s231 = scalar_select %p230, %s13, 1
          %s232 = smul.addr %s231, 8
          %s233 = scalar_lea.vmem %s1, %s232
        $region32: #{transformer_decoder_layer.1} parent=23 // pred_fallthru
          _
        // Predicated region
        $region33: #{transformer_decoder_layer.1} parent=23 // pred_check
          %p234 = pneg %p85
        $region34: #{transformer_decoder_layer.1} parent=23 // pred_check_branch
          %236 = sbr.rel (%p234) target = $region36
        $region35: #{transformer_decoder_layer.1} parent=23 // pred_region
          %s237 = smul.u32 2, %s13
          %p238 = scmp.lt.s32.totalorder %s237, 3
          %s239 = scalar_select %p238, %s237, 3
          %s240 = smul.addr %s239, 8
          %s241 = scalar_lea.vmem %s2, %s240
          %s242 = smul.u32 2, %s13
        $region36: #{transformer_decoder_layer.1} parent=23 // pred_fallthru
          _
        // Predicated region
        $region37: #{transformer_decoder_layer.1} parent=23 // pred_check
          %p243 = pneg %p111
        $region38: #{transformer_decoder_layer.1} parent=23 // pred_check_branch
          %245 = sbr.rel (%p243) target = $region40
        $region39: #{transformer_decoder_layer.1} parent=23 // pred_region
          %s246 = smul.u32 2, %s13
          %p247 = scmp.lt.s32.totalorder %s246, 3
          %s248 = scalar_select %p247, %s246, 3
          %s249 = smul.addr %s248, 8
          %s250 = scalar_lea.vmem %s3, %s249
          %s251 = smul.u32 2, %s13
        $region40: #{transformer_decoder_layer.1} parent=23 // pred_fallthru
          _
      $region24: #{transformer_decoder_layer.1} parent=5 // pred_fallthru
        _
      %p252 = scmp.le.s32.totalorder 1, %s13
      %p253 = scmp.lt.s32.totalorder %s13, 3
      %p254 = pnand %p252, %p253
      %p255 = pneg %p254
      // Predicated region
      $region41: #{transformer_decoder_layer.1} parent=5 // pred_check
        _
      $region42: #{transformer_decoder_layer.1} parent=5 // pred_check_branch
        %257 = sbr.rel (%p254) target = $region44
      $region43: #{transformer_decoder_layer.1} parent=5 // pred_region
        %s258 = ssub.s32 %s13, 1
        // Predicated region
        $region45: #{transformer_decoder_layer.1} parent=43 // pred_check
          %p259 = pneg %p138
        $region46: #{transformer_decoder_layer.1} parent=43 // pred_check_branch
          %261 = sbr.rel (%p259) target = $region48
        $region47: #{transformer_decoder_layer.1} parent=43 // pred_region
          %262 = dma.done [#allocation3], 3584
        $region48: #{transformer_decoder_layer.1} parent=43 // pred_fallthru
          _
        %p263 = scmp.lt.s32.totalorder %s18, 1
        %s264 = scalar_select %p263, %s18, 1
        %s265 = smul.addr %s264, 8
        %s266 = scalar_lea.vmem %s0, %s265
        %p267 = pneg %p39
        %p268 = pneg %p36
        %p269 = scmp.lt.s32.totalorder %s18, 1
        %s270 = scalar_select %p269, %s18, 1
        %s271 = smul.addr %s270, 8
        %s272 = scalar_lea.vmem %s1, %s271
        %p273 = pneg %p65
        %p274 = pneg %p62
        %s275 = smul.u32 2, %s18
        %p276 = scmp.lt.s32.totalorder %s275, 3
        %s277 = scalar_select %p276, %s275, 3
        %s278 = smul.addr %s277, 8
        %s279 = scalar_lea.vmem %s2, %s278
        %p280 = pneg %p91
        %p281 = pneg %p88
        %s282 = smul.u32 2, %s18
        %p283 = scmp.lt.s32.totalorder %s282, 3
        %s284 = scalar_select %p283, %s282, 3
        %s285 = smul.addr %s284, 8
        %s286 = scalar_lea.vmem %s3, %s285
        %p287 = pneg %p117
        %p288 = pneg %p114
        %p289 = pneg %p138
        %p290 = pneg %p135
        %p291 = pneg %p159
        %p292 = pneg %p156
        %p293 = pneg %p185
        %p294 = pneg %p182
        %p295 = scmp.lt.s32.totalorder %s18, 1
        %s296 = scalar_select %p295, %s18, 1
        %s297 = smul.addr %s296, 8
        %s298 = scalar_lea.vmem %s6, %s297
        %p299 = scmp.lt.s32.totalorder %s18, 1
        %s300 = scalar_select %p299, %s18, 1
        %s301 = smul.addr %s300, 8
        %s302 = scalar_lea.vmem %s0, %s301
        %p303 = scmp.lt.s32.totalorder %s18, 1
        %s304 = scalar_select %p303, %s18, 1
        %s305 = smul.addr %s304, 8
        %s306 = scalar_lea.vmem %s1, %s305
        %s307 = smul.u32 2, %s18
        %p308 = scmp.lt.s32.totalorder %s307, 3
        %s309 = scalar_select %p308, %s307, 3
        %s310 = smul.addr %s309, 8
        %s311 = scalar_lea.vmem %s2, %s310
        %s312 = smul.u32 2, %s18
        %s313 = smul.u32 2, %s18
        %p314 = scmp.lt.s32.totalorder %s313, 3
        %s315 = scalar_select %p314, %s313, 3
        %s316 = smul.addr %s315, 8
        %s317 = scalar_lea.vmem %s3, %s316
        %s318 = smul.u32 2, %s18
        %p319 = scmp.lt.s32.totalorder %s18, 1
        %s320 = scalar_select %p319, %s18, 1
        %s321 = smul.addr %s320, 8
        %s322 = scalar_lea.vmem %s6, %s321
        %v324 = vld [vmem:[%s302] sm:$0xff]
        %v325 = vld [vmem:[%s306] sm:$0xff]
        %v326 = vld [vmem:[%s311] sm:$0xff]
        %v327 = vld [vmem:[%s311 + $0x8] sm:$0xff]
        %v328 = vld [vmem:[%s317] sm:$0xff]
        %v329 = vld [vmem:[%s317 + $0x8] sm:$0xff]
        %v330 = vld [vmem:[%s5] sm:$0xff]
        %v331 = vld [vmem:[%s5 + $0x8] sm:$0x1f]
        %333 = vrot.lane.b32.xlu0 %v325, 32
        %v334 = vpop.permute.xlu0 %333
        %vm336 = vcmask 261120
        %v337 = vsel %vm336, %v324, %v334
        %v338 = vpack.c.bf16 %v337, %v337
        %v339 = vld [vmem:[#allocation2] sm:$0xf]
        %v340 = vld [vmem:[#allocation2 + $0x1c] sm:$0xf]
        %v341 = vld [vmem:[#allocation2 + $0x38] sm:$0xf]
        %v342 = vld [vmem:[#allocation2 + $0x54] sm:$0xf]
        %v343 = vld [vmem:[#allocation2 + $0x70] sm:$0xf]
        %v344 = vld [vmem:[#allocation2 + $0x8c] sm:$0xf]
        %v345 = vld [vmem:[#allocation2 + $0xa8] sm:$0xf]
        %v346 = vld [vmem:[#allocation2 + $0xc4] sm:$0xf]
        %v347 = vlaneseq
        %v348 = vshrl.u32 %v347, 7
        %v349 = vsub.s32 0, %v348
        %v350 = vrot.slane %v330, %v349
        %v359 = vunpack.c.l.b16 %v339
        %v360 = vunpack.c.l.b16 %v340
        %v361 = vunpack.c.l.b16 %v341
        %v362 = vunpack.c.l.b16 %v342
        %v363 = vunpack.c.l.b16 %v343
        %v364 = vunpack.c.l.b16 %v344
        %v365 = vunpack.c.l.b16 %v345
        %v366 = vunpack.c.l.b16 %v346
        %v367 = vpack.c.b16 %v360, %v359
        %v368 = vpack.c.b16 %v362, %v361
        %v369 = vpack.c.b16 %v364, %v363
        %v370 = vpack.c.b16 %v366, %v365
        %vm375 = vcmask 523264
        %v377 = vsel %vm375, %v338, 0
        %379 = vmatprep.subr.bf16.mxu0 0
        %380 = vmatpush1.bf16.msra.mxu0 0
        %381 = vmatprep.subr.bf16.mxu0 0
        %382 = vmatpush1.bf16.msra.mxu0 0
        %383 = vmatprep.subr.bf16.mxu0 0
        %384 = vmatpush1.bf16.msra.mxu0 0
        %385 = vmatprep.subr.bf16.mxu0 0
        %386 = vmatpush1.bf16.msra.mxu0 0
        %387 = vmatprep.subr.bf16.mxu0 0
        %388 = vmatpush1.bf16.msra.mxu0 %v370
        %389 = vmatprep.subr.bf16.mxu0 0
        %390 = vmatpush1.bf16.msra.mxu0 %v369
        %391 = vmatprep.subr.bf16.mxu0 0
        %392 = vmatpush1.bf16.msra.mxu0 %v368
        %393 = vmatprep.subr.bf16.mxu0 0
        %394 = vmatpush1.bf16.msra.mxu0 %v367
        %395 = vmatprep.subr.bf16.mxu0 0
        %396 = vmatpush2.bf16.msra.mxu0 0
        %397 = vmatprep.subr.bf16.mxu0 0
        %398 = vmatpush2.bf16.msra.mxu0 0
        %399 = vmatprep.subr.bf16.mxu0 0
        %400 = vmatpush2.bf16.msra.mxu0 0
        %401 = vmatprep.subr.bf16.mxu0 0
        %402 = vmatpush2.bf16.msra.mxu0 0
        %403 = vmatprep.subr.bf16.mxu0 0
        %404 = vmatpush2.bf16.msra.mxu0 0
        %405 = vmatprep.subr.bf16.mxu0 0
        %406 = vmatpush2.bf16.msra.mxu0 0
        %407 = vmatprep.subr.bf16.mxu0 0
        %408 = vmatpush2.bf16.msra.mxu0 0
        %409 = vmatprep.subr.bf16.mxu0 0
        %410 = vmatpush2.bf16.msra.mxu0 0
        %411 = vmatprep.mubr.bf16.mxu0 0
        %412 = vmatmul.mubr.bf16.gmra.mxu0 %v377
        %v413 = vpop.f32.mrf.mxu0
        %v414 = vadd.f32 %v350, %v413
        %v415 = vpop.f32.mrf.mxu0
        %v416 = vpop.f32.mrf.mxu0
        %v417 = vpop.f32.mrf.mxu0
        %418 = vdwg.mxu0
        %420 = vrot.lane.b32.xlu0 %v414, 120
        %v421 = vpop.permute.xlu0 %420
        %423 = vrot.lane.b32.xlu0 %v414, 112
        %v424 = vpop.permute.xlu0 %423
        %426 = vrot.lane.b32.xlu0 %v414, 104
        %v427 = vpop.permute.xlu0 %426
        %429 = vrot.lane.b32.xlu0 %v414, 96
        %v430 = vpop.permute.xlu0 %429
        %432 = vrot.lane.b32.xlu0 %v414, 88
        %v433 = vpop.permute.xlu0 %432
        %435 = vrot.lane.b32.xlu0 %v414, 80
        %v436 = vpop.permute.xlu0 %435
        %438 = vrot.lane.b32.xlu0 %v414, 72
        %v439 = vpop.permute.xlu0 %438
        %441 = vrot.lane.b32.xlu0 %v414, 64
        %v442 = vpop.permute.xlu0 %441
        %444 = vrot.lane.b32.xlu0 %v414, 56
        %v445 = vpop.permute.xlu0 %444
        %447 = vrot.lane.b32.xlu0 %v414, 48
        %v448 = vpop.permute.xlu0 %447
        %450 = vrot.lane.b32.xlu0 %v414, 40
        %v451 = vpop.permute.xlu0 %450
        %v453 = vcombine.low %v414, %v424
        %v454 = vcombine.high %v414, %v424
        %v456 = vunpack.c.l.s4 1983009808
        %v457 = vunpack.c.0.s8 %v456
        %v458 = vlaneseq
        %v459 = vshrl.u32 %v458, 7
        %v460 = vsub.s32 %v457, %v459
        %v461 = vrot.slane %v453, %v460
        %v463 = vunpack.c.l.s4 1983009808
        %v464 = vunpack.c.0.s8 %v463
        %v465 = vlaneseq
        %v466 = vshrl.u32 %v465, 7
        %v467 = vsub.s32 %v464, %v466
        %v468 = vrot.slane %v454, %v467
        %v469 = vcombine.low %v421, %v427
        %v470 = vcombine.high %v421, %v427
        %v472 = vunpack.c.l.s4 1983009808
        %v473 = vunpack.c.0.s8 %v472
        %v474 = vlaneseq
        %v475 = vshrl.u32 %v474, 7
        %v476 = vsub.s32 %v473, %v475
        %v477 = vrot.slane %v469, %v476
        %v479 = vunpack.c.l.s4 1983009808
        %v480 = vunpack.c.0.s8 %v479
        %v481 = vlaneseq
        %v482 = vshrl.u32 %v481, 7
        %v483 = vsub.s32 %v480, %v482
        %v484 = vrot.slane %v470, %v483
        %v485 = vcombine.low %v430, %v436
        %v486 = vcombine.high %v430, %v436
        %v488 = vunpack.c.l.s4 1983009808
        %v489 = vunpack.c.0.s8 %v488
        %v490 = vlaneseq
        %v491 = vshrl.u32 %v490, 7
        %v492 = vsub.s32 %v489, %v491
        %v493 = vrot.slane %v485, %v492
        %v495 = vunpack.c.l.s4 1983009808
        %v496 = vunpack.c.0.s8 %v495
        %v497 = vlaneseq
        %v498 = vshrl.u32 %v497, 7
        %v499 = vsub.s32 %v496, %v498
        %v500 = vrot.slane %v486, %v499
        %v501 = vcombine.low %v433, %v439
        %v502 = vcombine.high %v433, %v439
        %v504 = vunpack.c.l.s4 1983009808
        %v505 = vunpack.c.0.s8 %v504
        %v506 = vlaneseq
        %v507 = vshrl.u32 %v506, 7
        %v508 = vsub.s32 %v505, %v507
        %v509 = vrot.slane %v501, %v508
        %v511 = vunpack.c.l.s4 1983009808
        %v512 = vunpack.c.0.s8 %v511
        %v513 = vlaneseq
        %v514 = vshrl.u32 %v513, 7
        %v515 = vsub.s32 %v512, %v514
        %v516 = vrot.slane %v502, %v515
        %v517 = vcombine.low %v461, %v477
        %v518 = vcombine.high %v461, %v477
        %v520 = vunpack.c.l.s4 1934713408
        %v521 = vunpack.c.0.s8 %v520
        %v522 = vlaneseq
        %v523 = vshrl.u32 %v522, 7
        %v524 = vsub.s32 %v521, %v523
        %v525 = vrot.slane %v517, %v524
        %v527 = vunpack.c.l.s4 1934713408
        %v528 = vunpack.c.0.s8 %v527
        %v529 = vlaneseq
        %v530 = vshrl.u32 %v529, 7
        %v531 = vsub.s32 %v528, %v530
        %v532 = vrot.slane %v518, %v531
        %v533 = vcombine.low %v468, %v484
        %v534 = vcombine.high %v468, %v484
        %v536 = vunpack.c.l.s4 1934713408
        %v537 = vunpack.c.0.s8 %v536
        %v538 = vlaneseq
        %v539 = vshrl.u32 %v538, 7
        %v540 = vsub.s32 %v537, %v539
        %v541 = vrot.slane %v533, %v540
        %v543 = vunpack.c.l.s4 1934713408
        %v544 = vunpack.c.0.s8 %v543
        %v545 = vlaneseq
        %v546 = vshrl.u32 %v545, 7
        %v547 = vsub.s32 %v544, %v546
        %v548 = vrot.slane %v534, %v547
        %v549 = vcombine.low %v493, %v509
        %v550 = vcombine.high %v493, %v509
        %v552 = vunpack.c.l.s4 1934713408
        %v553 = vunpack.c.0.s8 %v552
        %v554 = vlaneseq
        %v555 = vshrl.u32 %v554, 7
        %v556 = vsub.s32 %v553, %v555
        %v557 = vrot.slane %v549, %v556
        %v559 = vunpack.c.l.s4 1934713408
        %v560 = vunpack.c.0.s8 %v559
        %v561 = vlaneseq
        %v562 = vshrl.u32 %v561, 7
        %v563 = vsub.s32 %v560, %v562
        %v564 = vrot.slane %v550, %v563
        %v565 = vcombine.low %v500, %v516
        %v566 = vcombine.high %v500, %v516
        %v568 = vunpack.c.l.s4 1934713408
        %v569 = vunpack.c.0.s8 %v568
        %v570 = vlaneseq
        %v571 = vshrl.u32 %v570, 7
        %v572 = vsub.s32 %v569, %v571
        %v573 = vrot.slane %v565, %v572
        %v575 = vunpack.c.l.s4 1934713408
        %v576 = vunpack.c.0.s8 %v575
        %v577 = vlaneseq
        %v578 = vshrl.u32 %v577, 7
        %v579 = vsub.s32 %v576, %v578
        %v580 = vrot.slane %v566, %v579
        %v581 = vcombine.low %v525, %v557
        %v582 = vcombine.high %v525, %v557
        %v583 = vcombine.low %v532, %v564
        %v584 = vcombine.high %v532, %v564
        %v585 = vcombine.low %v541, %v573
        %v586 = vcombine.high %v541, %v573
        %v587 = vcombine.low %v548, %v580
        %v588 = vcombine.high %v548, %v580
        %v589 = vcombine.low %v442, %v448
        %v590 = vcombine.high %v442, %v448
        %v592 = vunpack.c.l.s4 1983009808
        %v593 = vunpack.c.0.s8 %v592
        %v594 = vlaneseq
        %v595 = vshrl.u32 %v594, 7
        %v596 = vsub.s32 %v593, %v595
        %v597 = vrot.slane %v589, %v596
        %v599 = vunpack.c.l.s4 1983009808
        %v600 = vunpack.c.0.s8 %v599
        %v601 = vlaneseq
        %v602 = vshrl.u32 %v601, 7
        %v603 = vsub.s32 %v600, %v602
        %v604 = vrot.slane %v590, %v603
        %v605 = vcombine.low %v445, %v451
        %v606 = vcombine.high %v445, %v451
        %v608 = vunpack.c.l.s4 1983009808
        %v609 = vunpack.c.0.s8 %v608
        %v610 = vlaneseq
        %v611 = vshrl.u32 %v610, 7
        %v612 = vsub.s32 %v609, %v611
        %v613 = vrot.slane %v605, %v612
        %v615 = vunpack.c.l.s4 1983009808
        %v616 = vunpack.c.0.s8 %v615
        %v617 = vlaneseq
        %v618 = vshrl.u32 %v617, 7
        %v619 = vsub.s32 %v616, %v618
        %v620 = vrot.slane %v606, %v619
        %v621 = vcombine.low %v597, %v613
        %v622 = vcombine.high %v597, %v613
        %v624 = vunpack.c.l.s4 1934713408
        %v625 = vunpack.c.0.s8 %v624
        %v626 = vlaneseq
        %v627 = vshrl.u32 %v626, 7
        %v628 = vsub.s32 %v625, %v627
        %v629 = vrot.slane %v621, %v628
        %v631 = vunpack.c.l.s4 1934713408
        %v632 = vunpack.c.0.s8 %v631
        %v633 = vlaneseq
        %v634 = vshrl.u32 %v633, 7
        %v635 = vsub.s32 %v632, %v634
        %v636 = vrot.slane %v622, %v635
        %v637 = vcombine.low %v604, %v620
        %v638 = vcombine.high %v604, %v620
        %v640 = vunpack.c.l.s4 1934713408
        %v641 = vunpack.c.0.s8 %v640
        %v642 = vlaneseq
        %v643 = vshrl.u32 %v642, 7
        %v644 = vsub.s32 %v641, %v643
        %v645 = vrot.slane %v637, %v644
        %v647 = vunpack.c.l.s4 1934713408
        %v648 = vunpack.c.0.s8 %v647
        %v649 = vlaneseq
        %v650 = vshrl.u32 %v649, 7
        %v651 = vsub.s32 %v648, %v650
        %v652 = vrot.slane %v638, %v651
        %v653 = vcombine.high %v629, 0.0
        %v654 = vcombine.high %v636, 0.0
        %v655 = vcombine.high %v645, 0.0
        %v656 = vcombine.high %v652, 0.0
        %v657 = vcombine.low %v581, %v583
        %v658 = vcombine.high %v581, %v583
        %v660 = vunpack.c.l.s4 1983009808
        %v661 = vunpack.c.0.s8 %v660
        %v662 = vlaneseq
        %v663 = vshrl.u32 %v662, 7
        %v664 = vsub.s32 %v661, %v663
        %v665 = vrot.slane %v657, %v664
        %v667 = vunpack.c.l.s4 1983009808
        %v668 = vunpack.c.0.s8 %v667
        %v669 = vlaneseq
        %v670 = vshrl.u32 %v669, 7
        %v671 = vsub.s32 %v668, %v670
        %v672 = vrot.slane %v658, %v671
        %v673 = vcombine.low %v582, %v584
        %v674 = vcombine.high %v582, %v584
        %v676 = vunpack.c.l.s4 1983009808
        %v677 = vunpack.c.0.s8 %v676
        %v678 = vlaneseq
        %v679 = vshrl.u32 %v678, 7
        %v680 = vsub.s32 %v677, %v679
        %v681 = vrot.slane %v673, %v680
        %v683 = vunpack.c.l.s4 1983009808
        %v684 = vunpack.c.0.s8 %v683
        %v685 = vlaneseq
        %v686 = vshrl.u32 %v685, 7
        %v687 = vsub.s32 %v684, %v686
        %v688 = vrot.slane %v674, %v687
        %v689 = vcombine.low %v585, %v587
        %v690 = vcombine.high %v585, %v587
        %v692 = vunpack.c.l.s4 1983009808
        %v693 = vunpack.c.0.s8 %v692
        %v694 = vlaneseq
        %v695 = vshrl.u32 %v694, 7
        %v696 = vsub.s32 %v693, %v695
        %v697 = vrot.slane %v689, %v696
        %v699 = vunpack.c.l.s4 1983009808
        %v700 = vunpack.c.0.s8 %v699
        %v701 = vlaneseq
        %v702 = vshrl.u32 %v701, 7
        %v703 = vsub.s32 %v700, %v702
        %v704 = vrot.slane %v690, %v703
        %v705 = vcombine.low %v586, %v588
        %v706 = vcombine.high %v586, %v588
        %v708 = vunpack.c.l.s4 1983009808
        %v709 = vunpack.c.0.s8 %v708
        %v710 = vlaneseq
        %v711 = vshrl.u32 %v710, 7
        %v712 = vsub.s32 %v709, %v711
        %v713 = vrot.slane %v705, %v712
        %v715 = vunpack.c.l.s4 1983009808
        %v716 = vunpack.c.0.s8 %v715
        %v717 = vlaneseq
        %v718 = vshrl.u32 %v717, 7
        %v719 = vsub.s32 %v716, %v718
        %v720 = vrot.slane %v706, %v719
        %v721 = vcombine.low %v665, %v681
        %v722 = vcombine.high %v665, %v681
        %v724 = vunpack.c.l.s4 1934713408
        %v725 = vunpack.c.0.s8 %v724
        %v726 = vlaneseq
        %v727 = vshrl.u32 %v726, 7
        %v728 = vsub.s32 %v725, %v727
        %v729 = vrot.slane %v721, %v728
        %v731 = vunpack.c.l.s4 1934713408
        %v732 = vunpack.c.0.s8 %v731
        %v733 = vlaneseq
        %v734 = vshrl.u32 %v733, 7
        %v735 = vsub.s32 %v732, %v734
        %v736 = vrot.slane %v722, %v735
        %v737 = vcombine.low %v672, %v688
        %v738 = vcombine.high %v672, %v688
        %v740 = vunpack.c.l.s4 1934713408
        %v741 = vunpack.c.0.s8 %v740
        %v742 = vlaneseq
        %v743 = vshrl.u32 %v742, 7
        %v744 = vsub.s32 %v741, %v743
        %v745 = vrot.slane %v737, %v744
        %v747 = vunpack.c.l.s4 1934713408
        %v748 = vunpack.c.0.s8 %v747
        %v749 = vlaneseq
        %v750 = vshrl.u32 %v749, 7
        %v751 = vsub.s32 %v748, %v750
        %v752 = vrot.slane %v738, %v751
        %v753 = vcombine.low %v697, %v713
        %v754 = vcombine.high %v697, %v713
        %v756 = vunpack.c.l.s4 1934713408
        %v757 = vunpack.c.0.s8 %v756
        %v758 = vlaneseq
        %v759 = vshrl.u32 %v758, 7
        %v760 = vsub.s32 %v757, %v759
        %v761 = vrot.slane %v753, %v760
        %v763 = vunpack.c.l.s4 1934713408
        %v764 = vunpack.c.0.s8 %v763
        %v765 = vlaneseq
        %v766 = vshrl.u32 %v765, 7
        %v767 = vsub.s32 %v764, %v766
        %v768 = vrot.slane %v754, %v767
        %v769 = vcombine.low %v704, %v720
        %v770 = vcombine.high %v704, %v720
        %v772 = vunpack.c.l.s4 1934713408
        %v773 = vunpack.c.0.s8 %v772
        %v774 = vlaneseq
        %v775 = vshrl.u32 %v774, 7
        %v776 = vsub.s32 %v773, %v775
        %v777 = vrot.slane %v769, %v776
        %v779 = vunpack.c.l.s4 1934713408
        %v780 = vunpack.c.0.s8 %v779
        %v781 = vlaneseq
        %v782 = vshrl.u32 %v781, 7
        %v783 = vsub.s32 %v780, %v782
        %v784 = vrot.slane %v770, %v783
        %v785 = vcombine.low %v729, %v761
        %v786 = vcombine.high %v729, %v761
        %v787 = vcombine.low %v736, %v768
        %v788 = vcombine.high %v736, %v768
        %v789 = vcombine.low %v745, %v777
        %v790 = vcombine.high %v745, %v777
        %v791 = vcombine.low %v752, %v784
        %v792 = vcombine.high %v752, %v784
        %v793 = vcombine.low %v629, %v636
        %v795 = vunpack.c.l.s4 1983009808
        %v796 = vunpack.c.0.s8 %v795
        %v797 = vlaneseq
        %v798 = vshrl.u32 %v797, 7
        %v799 = vsub.s32 %v796, %v798
        %v800 = vrot.slane %v793, %v799
        %v801 = vcombine.low %v653, %v654
        %v803 = vunpack.c.l.s4 1983009808
        %v804 = vunpack.c.0.s8 %v803
        %v805 = vlaneseq
        %v806 = vshrl.u32 %v805, 7
        %v807 = vsub.s32 %v804, %v806
        %v808 = vrot.slane %v801, %v807
        %v809 = vcombine.low %v645, %v652
        %v811 = vunpack.c.l.s4 1983009808
        %v812 = vunpack.c.0.s8 %v811
        %v813 = vlaneseq
        %v814 = vshrl.u32 %v813, 7
        %v815 = vsub.s32 %v812, %v814
        %v816 = vrot.slane %v809, %v815
        %v817 = vcombine.low %v655, %v656
        %v819 = vunpack.c.l.s4 1983009808
        %v820 = vunpack.c.0.s8 %v819
        %v821 = vlaneseq
        %v822 = vshrl.u32 %v821, 7
        %v823 = vsub.s32 %v820, %v822
        %v824 = vrot.slane %v817, %v823
        %v825 = vcombine.low %v800, %v808
        %v826 = vcombine.high %v800, %v808
        %v828 = vunpack.c.l.s4 1934713408
        %v829 = vunpack.c.0.s8 %v828
        %v830 = vlaneseq
        %v831 = vshrl.u32 %v830, 7
        %v832 = vsub.s32 %v829, %v831
        %v833 = vrot.slane %v825, %v832
        %v835 = vunpack.c.l.s4 1934713408
        %v836 = vunpack.c.0.s8 %v835
        %v837 = vlaneseq
        %v838 = vshrl.u32 %v837, 7
        %v839 = vsub.s32 %v836, %v838
        %v840 = vrot.slane %v826, %v839
        %v841 = vcombine.low %v816, %v824
        %v842 = vcombine.high %v816, %v824
        %v844 = vunpack.c.l.s4 1934713408
        %v845 = vunpack.c.0.s8 %v844
        %v846 = vlaneseq
        %v847 = vshrl.u32 %v846, 7
        %v848 = vsub.s32 %v845, %v847
        %v849 = vrot.slane %v841, %v848
        %v851 = vunpack.c.l.s4 1934713408
        %v852 = vunpack.c.0.s8 %v851
        %v853 = vlaneseq
        %v854 = vshrl.u32 %v853, 7
        %v855 = vsub.s32 %v852, %v854
        %v856 = vrot.slane %v842, %v855
        %v857 = vcombine.low %v833, %v849
        %v858 = vcombine.high %v833, %v849
        %v859 = vcombine.low %v840, %v856
        %v860 = vcombine.high %v840, %v856
        %v861 = vpack.c.bf16 %v785, %v785
        %v862 = vpack.c.bf16 %v786, %v786
        %v863 = vpack.c.bf16 %v787, %v787
        %v864 = vpack.c.bf16 %v788, %v788
        %v865 = vpack.c.bf16 %v789, %v789
        %v866 = vpack.c.bf16 %v790, %v790
        %v867 = vpack.c.bf16 %v791, %v791
        %v868 = vpack.c.bf16 %v792, %v792
        %vm869 = vcmask 64512
        %v871 = vsel %vm869, %v861, 0
        %v874 = vsel %vm869, %v865, 0
        %876 = vmatprep.subr.bf16.mxu0 0
        %877 = vmatpush1.bf16.xpose.msra.mxu0 0
        %878 = vmatprep.subr.bf16.mxu0 0
        %879 = vmatpush1.bf16.xpose.msra.mxu0 0
        %880 = vmatprep.subr.bf16.mxu0 0
        %881 = vmatpush1.bf16.xpose.msra.mxu0 0
        %882 = vmatprep.subr.bf16.mxu0 0
        %883 = vmatpush1.bf16.xpose.msra.mxu0 0
        %884 = vmatprep.subr.bf16.mxu0 0
        %885 = vmatpush1.bf16.xpose.msra.mxu0 0
        %886 = vmatprep.subr.bf16.mxu0 0
        %887 = vmatpush1.bf16.xpose.msra.mxu0 0
        %888 = vmatprep.subr.bf16.mxu0 0
        %889 = vmatpush1.bf16.xpose.msra.mxu0 0
        %890 = vmatprep.subr.bf16.mxu0 0
        %891 = vmatpush1.bf16.xpose.msra.mxu0 %v874
        %892 = vmatprep.subr.bf16.mxu0 0
        %893 = vmatpush2.bf16.xpose.msra.mxu0 0
        %894 = vmatprep.subr.bf16.mxu0 0
        %895 = vmatpush2.bf16.xpose.msra.mxu0 0
        %896 = vmatprep.subr.bf16.mxu0 0
        %897 = vmatpush2.bf16.xpose.msra.mxu0 0
        %898 = vmatprep.subr.bf16.mxu0 0
        %899 = vmatpush2.bf16.xpose.msra.mxu0 0
        %900 = vmatprep.subr.bf16.mxu0 0
        %901 = vmatpush2.bf16.xpose.msra.mxu0 0
        %902 = vmatprep.subr.bf16.mxu0 0
        %903 = vmatpush2.bf16.xpose.msra.mxu0 0
        %904 = vmatprep.subr.bf16.mxu0 0
        %905 = vmatpush2.bf16.xpose.msra.mxu0 0
        %906 = vmatprep.subr.bf16.mxu0 0
        %907 = vmatpush2.bf16.xpose.msra.mxu0 0
        %908 = vmatprep.mubr.bf16.mxu0 0
        %909 = vmatmul.mubr.bf16.gmra.mxu0 %v871
        %v910 = vpop.f32.mrf.mxu0
        %v911 = vadd.f32 0.0, %v910
        %v912 = vpop.f32.mrf.mxu0
        %v913 = vpop.f32.mrf.mxu0
        %v914 = vpop.f32.mrf.mxu0
        %915 = vdwg.mxu0
        %v917 = vsel %vm869, %v862, 0
        %v920 = vsel %vm869, %v866, 0
        %922 = vmatprep.subr.bf16.mxu0 0
        %923 = vmatpush1.bf16.xpose.msra.mxu0 0
        %924 = vmatprep.subr.bf16.mxu0 0
        %925 = vmatpush1.bf16.xpose.msra.mxu0 0
        %926 = vmatprep.subr.bf16.mxu0 0
        %927 = vmatpush1.bf16.xpose.msra.mxu0 0
        %928 = vmatprep.subr.bf16.mxu0 0
        %929 = vmatpush1.bf16.xpose.msra.mxu0 0
        %930 = vmatprep.subr.bf16.mxu0 0
        %931 = vmatpush1.bf16.xpose.msra.mxu0 0
        %932 = vmatprep.subr.bf16.mxu0 0
        %933 = vmatpush1.bf16.xpose.msra.mxu0 0
        %934 = vmatprep.subr.bf16.mxu0 0
        %935 = vmatpush1.bf16.xpose.msra.mxu0 0
        %936 = vmatprep.subr.bf16.mxu0 0
        %937 = vmatpush1.bf16.xpose.msra.mxu0 %v920
        %938 = vmatprep.subr.bf16.mxu0 0
        %939 = vmatpush2.bf16.xpose.msra.mxu0 0
        %940 = vmatprep.subr.bf16.mxu0 0
        %941 = vmatpush2.bf16.xpose.msra.mxu0 0
        %942 = vmatprep.subr.bf16.mxu0 0
        %943 = vmatpush2.bf16.xpose.msra.mxu0 0
        %944 = vmatprep.subr.bf16.mxu0 0
        %945 = vmatpush2.bf16.xpose.msra.mxu0 0
        %946 = vmatprep.subr.bf16.mxu0 0
        %947 = vmatpush2.bf16.xpose.msra.mxu0 0
        %948 = vmatprep.subr.bf16.mxu0 0
        %949 = vmatpush2.bf16.xpose.msra.mxu0 0
        %950 = vmatprep.subr.bf16.mxu0 0
        %951 = vmatpush2.bf16.xpose.msra.mxu0 0
        %952 = vmatprep.subr.bf16.mxu0 0
        %953 = vmatpush2.bf16.xpose.msra.mxu0 0
        %954 = vmatprep.mubr.bf16.mxu0 0
        %955 = vmatmul.mubr.bf16.gmra.mxu0 %v917
        %v956 = vpop.f32.mrf.mxu0
        %v957 = vadd.f32 0.0, %v956
        %v958 = vpop.f32.mrf.mxu0
        %v959 = vpop.f32.mrf.mxu0
        %v960 = vpop.f32.mrf.mxu0
        %961 = vdwg.mxu0
        %v963 = vsel %vm869, %v863, 0
        %v966 = vsel %vm869, %v867, 0
        %968 = vmatprep.subr.bf16.mxu0 0
        %969 = vmatpush1.bf16.xpose.msra.mxu0 0
        %970 = vmatprep.subr.bf16.mxu0 0
        %971 = vmatpush1.bf16.xpose.msra.mxu0 0
        %972 = vmatprep.subr.bf16.mxu0 0
        %973 = vmatpush1.bf16.xpose.msra.mxu0 0
        %974 = vmatprep.subr.bf16.mxu0 0
        %975 = vmatpush1.bf16.xpose.msra.mxu0 0
        %976 = vmatprep.subr.bf16.mxu0 0
        %977 = vmatpush1.bf16.xpose.msra.mxu0 0
        %978 = vmatprep.subr.bf16.mxu0 0
        %979 = vmatpush1.bf16.xpose.msra.mxu0 0
        %980 = vmatprep.subr.bf16.mxu0 0
        %981 = vmatpush1.bf16.xpose.msra.mxu0 0
        %982 = vmatprep.subr.bf16.mxu0 0
        %983 = vmatpush1.bf16.xpose.msra.mxu0 %v966
        %984 = vmatprep.subr.bf16.mxu0 0
        %985 = vmatpush2.bf16.xpose.msra.mxu0 0
        %986 = vmatprep.subr.bf16.mxu0 0
        %987 = vmatpush2.bf16.xpose.msra.mxu0 0
        %988 = vmatprep.subr.bf16.mxu0 0
        %989 = vmatpush2.bf16.xpose.msra.mxu0 0
        %990 = vmatprep.subr.bf16.mxu0 0
        %991 = vmatpush2.bf16.xpose.msra.mxu0 0
        %992 = vmatprep.subr.bf16.mxu0 0
        %993 = vmatpush2.bf16.xpose.msra.mxu0 0
        %994 = vmatprep.subr.bf16.mxu0 0
        %995 = vmatpush2.bf16.xpose.msra.mxu0 0
        %996 = vmatprep.subr.bf16.mxu0 0
        %997 = vmatpush2.bf16.xpose.msra.mxu0 0
        %998 = vmatprep.subr.bf16.mxu0 0
        %999 = vmatpush2.bf16.xpose.msra.mxu0 0
        %1000 = vmatprep.mubr.bf16.mxu0 0
        %1001 = vmatmul.mubr.bf16.gmra.mxu0 %v963
        %v1002 = vpop.f32.mrf.mxu0
        %v1003 = vadd.f32 0.0, %v1002
        %v1004 = vpop.f32.mrf.mxu0
        %v1005 = vpop.f32.mrf.mxu0
        %v1006 = vpop.f32.mrf.mxu0
        %1007 = vdwg.mxu0
        %v1009 = vsel %vm869, %v864, 0
        %v1012 = vsel %vm869, %v868, 0
        %1014 = vmatprep.subr.bf16.mxu0 0
        %1015 = vmatpush1.bf16.xpose.msra.mxu0 0
        %1016 = vmatprep.subr.bf16.mxu0 0
        %1017 = vmatpush1.bf16.xpose.msra.mxu0 0
        %1018 = vmatprep.subr.bf16.mxu0 0
        %1019 = vmatpush1.bf16.xpose.msra.mxu0 0
        %1020 = vmatprep.subr.bf16.mxu0 0
        %1021 = vmatpush1.bf16.xpose.msra.mxu0 0
        %1022 = vmatprep.subr.bf16.mxu0 0
        %1023 = vmatpush1.bf16.xpose.msra.mxu0 0
        %1024 = vmatprep.subr.bf16.mxu0 0
        %1025 = vmatpush1.bf16.xpose.msra.mxu0 0
        %1026 = vmatprep.subr.bf16.mxu0 0
        %1027 = vmatpush1.bf16.xpose.msra.mxu0 0
        %1028 = vmatprep.subr.bf16.mxu0 0
        %1029 = vmatpush1.bf16.xpose.msra.mxu0 %v1012
        %1030 = vmatprep.subr.bf16.mxu0 0
        %1031 = vmatpush2.bf16.xpose.msra.mxu0 0
        %1032 = vmatprep.subr.bf16.mxu0 0
        %1033 = vmatpush2.bf16.xpose.msra.mxu0 0
        %1034 = vmatprep.subr.bf16.mxu0 0
        %1035 = vmatpush2.bf16.xpose.msra.mxu0 0
        %1036 = vmatprep.subr.bf16.mxu0 0
        %1037 = vmatpush2.bf16.xpose.msra.mxu0 0
        %1038 = vmatprep.subr.bf16.mxu0 0
        %1039 = vmatpush2.bf16.xpose.msra.mxu0 0
        %1040 = vmatprep.subr.bf16.mxu0 0
        %1041 = vmatpush2.bf16.xpose.msra.mxu0 0
        %1042 = vmatprep.subr.bf16.mxu0 0
        %1043 = vmatpush2.bf16.xpose.msra.mxu0 0
        %1044 = vmatprep.subr.bf16.mxu0 0
        %1045 = vmatpush2.bf16.xpose.msra.mxu0 0
        %1046 = vmatprep.mubr.bf16.mxu0 0
        %1047 = vmatmul.mubr.bf16.gmra.mxu0 %v1009
        %v1048 = vpop.f32.mrf.mxu0
        %v1049 = vadd.f32 0.0, %v1048
        %v1050 = vpop.f32.mrf.mxu0
        %v1051 = vpop.f32.mrf.mxu0
        %v1052 = vpop.f32.mrf.mxu0
        %1053 = vdwg.mxu0
        %v1054 = vsel %vm869, %v911, -inf
        %1055 = vmax.xlane.f32.xlu0 %v1054
        %v1056 = vpop.xlane.xlu0 %1055
        %v1057 = vsel %vm869, %v957, -inf
        %1058 = vmax.xlane.f32.xlu0 %v1057
        %v1059 = vpop.xlane.xlu0 %1058
        %v1060 = vsel %vm869, %v1003, -inf
        %1061 = vmax.xlane.f32.xlu0 %v1060
        %v1062 = vpop.xlane.xlu0 %1061
        %v1063 = vsel %vm869, %v1049, -inf
        %1064 = vmax.xlane.f32.xlu0 %v1063
        %v1065 = vpop.xlane.xlu0 %1064
        %v1066 = vsub.f32 %v911, %v1056
        %v1067 = vsub.f32 %v957, %v1059
        %v1068 = vsub.f32 %v1003, %v1062
        %v1069 = vsub.f32 %v1049, %v1065
        %v1070 = vmul.f32 %v1066, 1.442695
        %v1071 = vpow.pop %v1070
        %v1072 = vmul.f32 %v1067, 1.442695
        %v1073 = vpow.pop %v1072
        %v1074 = vmul.f32 %v1068, 1.442695
        %v1075 = vpow.pop %v1074
        %v1076 = vmul.f32 %v1069, 1.442695
        %v1077 = vpow.pop %v1076
        %v1078 = vsel %vm869, %v1071, 0.0
        %1079 = vadd.xlane.f32.xlu0 %v1078
        %v1080 = vpop.xlane.xlu0 %1079
        %v1081 = vsel %vm869, %v1073, 0.0
        %1082 = vadd.xlane.f32.xlu0 %v1081
        %v1083 = vpop.xlane.xlu0 %1082
        %v1084 = vsel %vm869, %v1075, 0.0
        %1085 = vadd.xlane.f32.xlu0 %v1084
        %v1086 = vpop.xlane.xlu0 %1085
        %v1087 = vsel %vm869, %v1077, 0.0
        %1088 = vadd.xlane.f32.xlu0 %v1087
        %v1089 = vpop.xlane.xlu0 %1088
        %v1090 = vrcp.pop %v1080
        %v1091 = vrcp.pop %v1083
        %v1092 = vrcp.pop %v1086
        %v1093 = vrcp.pop %v1089
        %v1094 = vmul.f32 %v1071, %v1090
        %v1095 = vmul.f32 %v1073, %v1091
        %v1096 = vmul.f32 %v1075, %v1092
        %v1097 = vmul.f32 %v1077, %v1093
        %v1098 = vpack.c.bf16 %v1094, %v1094
        %v1099 = vpack.c.bf16 %v1095, %v1095
        %v1100 = vpack.c.bf16 %v1096, %v1096
        %v1101 = vpack.c.bf16 %v1097, %v1097
        %v1102 = vpack.c.bf16 %v857, %v857
        %v1103 = vpack.c.bf16 %v858, %v858
        %v1104 = vpack.c.bf16 %v859, %v859
        %v1105 = vpack.c.bf16 %v860, %v860
        %v1107 = vsel %vm869, %v1098, 0
        %vm1109 = vcmask 1043456
        %v1111 = vsel %vm1109, %v1102, 0
        %1113 = vmatprep.subr.bf16.mxu0 0
        %1114 = vmatpush1.bf16.msra.mxu0 0
        %1115 = vmatprep.subr.bf16.mxu0 0
        %1116 = vmatpush1.bf16.msra.mxu0 0
        %1117 = vmatprep.subr.bf16.mxu0 0
        %1118 = vmatpush1.bf16.msra.mxu0 0
        %1119 = vmatprep.subr.bf16.mxu0 0
        %1120 = vmatpush1.bf16.msra.mxu0 0
        %1121 = vmatprep.subr.bf16.mxu0 0
        %1122 = vmatpush1.bf16.msra.mxu0 0
        %1123 = vmatprep.subr.bf16.mxu0 0
        %1124 = vmatpush1.bf16.msra.mxu0 0
        %1125 = vmatprep.subr.bf16.mxu0 0
        %1126 = vmatpush1.bf16.msra.mxu0 0
        %1127 = vmatprep.subr.bf16.mxu0 0
        %1128 = vmatpush1.bf16.msra.mxu0 %v1111
        %1129 = vmatprep.subr.bf16.mxu0 0
        %1130 = vmatpush2.bf16.msra.mxu0 0
        %1131 = vmatprep.subr.bf16.mxu0 0
        %1132 = vmatpush2.bf16.msra.mxu0 0
        %1133 = vmatprep.subr.bf16.mxu0 0
        %1134 = vmatpush2.bf16.msra.mxu0 0
        %1135 = vmatprep.subr.bf16.mxu0 0
        %1136 = vmatpush2.bf16.msra.mxu0 0
        %1137 = vmatprep.subr.bf16.mxu0 0
        %1138 = vmatpush2.bf16.msra.mxu0 0
        %1139 = vmatprep.subr.bf16.mxu0 0
        %1140 = vmatpush2.bf16.msra.mxu0 0
        %1141 = vmatprep.subr.bf16.mxu0 0
        %1142 = vmatpush2.bf16.msra.mxu0 0
        %1143 = vmatprep.subr.bf16.mxu0 0
        %1144 = vmatpush2.bf16.msra.mxu0 0
        %1145 = vmatprep.mubr.bf16.mxu0 0
        %1146 = vmatmul.mubr.bf16.gmra.mxu0 %v1107
        %v1147 = vpop.f32.mrf.mxu0
        %v1148 = vadd.f32 0.0, %v1147
        %v1149 = vpop.f32.mrf.mxu0
        %v1150 = vpop.f32.mrf.mxu0
        %v1151 = vpop.f32.mrf.mxu0
        %1152 = vdwg.mxu0
        %v1154 = vsel %vm869, %v1099, 0
        %v1157 = vsel %vm1109, %v1103, 0
        %1159 = vmatprep.subr.bf16.mxu0 0
        %1160 = vmatpush1.bf16.msra.mxu0 0
        %1161 = vmatprep.subr.bf16.mxu0 0
        %1162 = vmatpush1.bf16.msra.mxu0 0
        %1163 = vmatprep.subr.bf16.mxu0 0
        %1164 = vmatpush1.bf16.msra.mxu0 0
        %1165 = vmatprep.subr.bf16.mxu0 0
        %1166 = vmatpush1.bf16.msra.mxu0 0
        %1167 = vmatprep.subr.bf16.mxu0 0
        %1168 = vmatpush1.bf16.msra.mxu0 0
        %1169 = vmatprep.subr.bf16.mxu0 0
        %1170 = vmatpush1.bf16.msra.mxu0 0
        %1171 = vmatprep.subr.bf16.mxu0 0
        %1172 = vmatpush1.bf16.msra.mxu0 0
        %1173 = vmatprep.subr.bf16.mxu0 0
        %1174 = vmatpush1.bf16.msra.mxu0 %v1157
        %1175 = vmatprep.subr.bf16.mxu0 0
        %1176 = vmatpush2.bf16.msra.mxu0 0
        %1177 = vmatprep.subr.bf16.mxu0 0
        %1178 = vmatpush2.bf16.msra.mxu0 0
        %1179 = vmatprep.subr.bf16.mxu0 0
        %1180 = vmatpush2.bf16.msra.mxu0 0
        %1181 = vmatprep.subr.bf16.mxu0 0
        %1182 = vmatpush2.bf16.msra.mxu0 0
        %1183 = vmatprep.subr.bf16.mxu0 0
        %1184 = vmatpush2.bf16.msra.mxu0 0
        %1185 = vmatprep.subr.bf16.mxu0 0
        %1186 = vmatpush2.bf16.msra.mxu0 0
        %1187 = vmatprep.subr.bf16.mxu0 0
        %1188 = vmatpush2.bf16.msra.mxu0 0
        %1189 = vmatprep.subr.bf16.mxu0 0
        %1190 = vmatpush2.bf16.msra.mxu0 0
        %1191 = vmatprep.mubr.bf16.mxu0 0
        %1192 = vmatmul.mubr.bf16.gmra.mxu0 %v1154
        %v1193 = vpop.f32.mrf.mxu0
        %v1194 = vadd.f32 0.0, %v1193
        %v1195 = vpop.f32.mrf.mxu0
        %v1196 = vpop.f32.mrf.mxu0
        %v1197 = vpop.f32.mrf.mxu0
        %1198 = vdwg.mxu0
        %v1200 = vsel %vm869, %v1100, 0
        %v1203 = vsel %vm1109, %v1104, 0
        %1205 = vmatprep.subr.bf16.mxu0 0
        %1206 = vmatpush1.bf16.msra.mxu0 0
        %1207 = vmatprep.subr.bf16.mxu0 0
        %1208 = vmatpush1.bf16.msra.mxu0 0
        %1209 = vmatprep.subr.bf16.mxu0 0
        %1210 = vmatpush1.bf16.msra.mxu0 0
        %1211 = vmatprep.subr.bf16.mxu0 0
        %1212 = vmatpush1.bf16.msra.mxu0 0
        %1213 = vmatprep.subr.bf16.mxu0 0
        %1214 = vmatpush1.bf16.msra.mxu0 0
        %1215 = vmatprep.subr.bf16.mxu0 0
        %1216 = vmatpush1.bf16.msra.mxu0 0
        %1217 = vmatprep.subr.bf16.mxu0 0
        %1218 = vmatpush1.bf16.msra.mxu0 0
        %1219 = vmatprep.subr.bf16.mxu0 0
        %1220 = vmatpush1.bf16.msra.mxu0 %v1203
        %1221 = vmatprep.subr.bf16.mxu0 0
        %1222 = vmatpush2.bf16.msra.mxu0 0
        %1223 = vmatprep.subr.bf16.mxu0 0
        %1224 = vmatpush2.bf16.msra.mxu0 0
        %1225 = vmatprep.subr.bf16.mxu0 0
        %1226 = vmatpush2.bf16.msra.mxu0 0
        %1227 = vmatprep.subr.bf16.mxu0 0
        %1228 = vmatpush2.bf16.msra.mxu0 0
        %1229 = vmatprep.subr.bf16.mxu0 0
        %1230 = vmatpush2.bf16.msra.mxu0 0
        %1231 = vmatprep.subr.bf16.mxu0 0
        %1232 = vmatpush2.bf16.msra.mxu0 0
        %1233 = vmatprep.subr.bf16.mxu0 0
        %1234 = vmatpush2.bf16.msra.mxu0 0
        %1235 = vmatprep.subr.bf16.mxu0 0
        %1236 = vmatpush2.bf16.msra.mxu0 0
        %1237 = vmatprep.mubr.bf16.mxu0 0
        %1238 = vmatmul.mubr.bf16.gmra.mxu0 %v1200
        %v1239 = vpop.f32.mrf.mxu0
        %v1240 = vadd.f32 0.0, %v1239
        %v1241 = vpop.f32.mrf.mxu0
        %v1242 = vpop.f32.mrf.mxu0
        %v1243 = vpop.f32.mrf.mxu0
        %1244 = vdwg.mxu0
        %v1246 = vsel %vm869, %v1101, 0
        %v1249 = vsel %vm1109, %v1105, 0
        %1251 = vmatprep.subr.bf16.mxu0 0
        %1252 = vmatpush1.bf16.msra.mxu0 0
        %1253 = vmatprep.subr.bf16.mxu0 0
        %1254 = vmatpush1.bf16.msra.mxu0 0
        %1255 = vmatprep.subr.bf16.mxu0 0
        %1256 = vmatpush1.bf16.msra.mxu0 0
        %1257 = vmatprep.subr.bf16.mxu0 0
        %1258 = vmatpush1.bf16.msra.mxu0 0
        %1259 = vmatprep.subr.bf16.mxu0 0
        %1260 = vmatpush1.bf16.msra.mxu0 0
        %1261 = vmatprep.subr.bf16.mxu0 0
        %1262 = vmatpush1.bf16.msra.mxu0 0
        %1263 = vmatprep.subr.bf16.mxu0 0
        %1264 = vmatpush1.bf16.msra.mxu0 0
        %1265 = vmatprep.subr.bf16.mxu0 0
        %1266 = vmatpush1.bf16.msra.mxu0 %v1249
        %1267 = vmatprep.subr.bf16.mxu0 0
        %1268 = vmatpush2.bf16.msra.mxu0 0
        %1269 = vmatprep.subr.bf16.mxu0 0
        %1270 = vmatpush2.bf16.msra.mxu0 0
        %1271 = vmatprep.subr.bf16.mxu0 0
        %1272 = vmatpush2.bf16.msra.mxu0 0
        %1273 = vmatprep.subr.bf16.mxu0 0
        %1274 = vmatpush2.bf16.msra.mxu0 0
        %1275 = vmatprep.subr.bf16.mxu0 0
        %1276 = vmatpush2.bf16.msra.mxu0 0
        %1277 = vmatprep.subr.bf16.mxu0 0
        %1278 = vmatpush2.bf16.msra.mxu0 0
        %1279 = vmatprep.subr.bf16.mxu0 0
        %1280 = vmatpush2.bf16.msra.mxu0 0
        %1281 = vmatprep.subr.bf16.mxu0 0
        %1282 = vmatpush2.bf16.msra.mxu0 0
        %1283 = vmatprep.mubr.bf16.mxu0 0
        %1284 = vmatmul.mubr.bf16.gmra.mxu0 %v1246
        %v1285 = vpop.f32.mrf.mxu0
        %v1286 = vadd.f32 0.0, %v1285
        %v1287 = vpop.f32.mrf.mxu0
        %v1288 = vpop.f32.mrf.mxu0
        %v1289 = vpop.f32.mrf.mxu0
        %1290 = vdwg.mxu0
        %v1291 = vcombine.low %v1148, %v1240
        %v1292 = vcombine.high %v1148, %v1240
        %v1294 = vunpack.c.l.s4 1983009808
        %v1295 = vunpack.c.0.s8 %v1294
        %v1296 = vlaneseq
        %v1297 = vshrl.u32 %v1296, 7
        %v1298 = vsub.s32 %v1295, %v1297
        %v1299 = vrot.slane %v1291, %v1298
        %v1301 = vunpack.c.l.s4 1983009808
        %v1302 = vunpack.c.0.s8 %v1301
        %v1303 = vlaneseq
        %v1304 = vshrl.u32 %v1303, 7
        %v1305 = vsub.s32 %v1302, %v1304
        %v1306 = vrot.slane %v1292, %v1305
        %v1307 = vcombine.low %v1194, %v1286
        %v1308 = vcombine.high %v1194, %v1286
        %v1310 = vunpack.c.l.s4 1983009808
        %v1311 = vunpack.c.0.s8 %v1310
        %v1312 = vlaneseq
        %v1313 = vshrl.u32 %v1312, 7
        %v1314 = vsub.s32 %v1311, %v1313
        %v1315 = vrot.slane %v1307, %v1314
        %v1317 = vunpack.c.l.s4 1983009808
        %v1318 = vunpack.c.0.s8 %v1317
        %v1319 = vlaneseq
        %v1320 = vshrl.u32 %v1319, 7
        %v1321 = vsub.s32 %v1318, %v1320
        %v1322 = vrot.slane %v1308, %v1321
        %v1323 = vcombine.low %v1299, %v1315
        %v1324 = vcombine.high %v1299, %v1315
        %v1326 = vunpack.c.l.s4 1934713408
        %v1327 = vunpack.c.0.s8 %v1326
        %v1328 = vlaneseq
        %v1329 = vshrl.u32 %v1328, 7
        %v1330 = vsub.s32 %v1327, %v1329
        %v1331 = vrot.slane %v1323, %v1330
        %v1333 = vunpack.c.l.s4 1934713408
        %v1334 = vunpack.c.0.s8 %v1333
        %v1335 = vlaneseq
        %v1336 = vshrl.u32 %v1335, 7
        %v1337 = vsub.s32 %v1334, %v1336
        %v1338 = vrot.slane %v1324, %v1337
        %v1339 = vcombine.low %v1306, %v1322
        %v1340 = vcombine.high %v1306, %v1322
        %v1342 = vunpack.c.l.s4 1934713408
        %v1343 = vunpack.c.0.s8 %v1342
        %v1344 = vlaneseq
        %v1345 = vshrl.u32 %v1344, 7
        %v1346 = vsub.s32 %v1343, %v1345
        %v1347 = vrot.slane %v1339, %v1346
        %v1349 = vunpack.c.l.s4 1934713408
        %v1350 = vunpack.c.0.s8 %v1349
        %v1351 = vlaneseq
        %v1352 = vshrl.u32 %v1351, 7
        %v1353 = vsub.s32 %v1350, %v1352
        %v1354 = vrot.slane %v1340, %v1353
        %v1355 = vcombine.high %v1331, 0.0
        %v1356 = vcombine.high %v1338, 0.0
        %v1357 = vcombine.high %v1347, 0.0
        %v1358 = vcombine.high %v1354, 0.0
        %v1359 = vcombine.low %v1331, %v1338
        %v1361 = vunpack.c.l.s4 1983009808
        %v1362 = vunpack.c.0.s8 %v1361
        %v1363 = vlaneseq
        %v1364 = vshrl.u32 %v1363, 7
        %v1365 = vsub.s32 %v1362, %v1364
        %v1366 = vrot.slane %v1359, %v1365
        %v1367 = vcombine.low %v1355, %v1356
        %v1369 = vunpack.c.l.s4 1983009808
        %v1370 = vunpack.c.0.s8 %v1369
        %v1371 = vlaneseq
        %v1372 = vshrl.u32 %v1371, 7
        %v1373 = vsub.s32 %v1370, %v1372
        %v1374 = vrot.slane %v1367, %v1373
        %v1375 = vcombine.low %v1347, %v1354
        %v1377 = vunpack.c.l.s4 1983009808
        %v1378 = vunpack.c.0.s8 %v1377
        %v1379 = vlaneseq
        %v1380 = vshrl.u32 %v1379, 7
        %v1381 = vsub.s32 %v1378, %v1380
        %v1382 = vrot.slane %v1375, %v1381
        %v1383 = vcombine.low %v1357, %v1358
        %v1385 = vunpack.c.l.s4 1983009808
        %v1386 = vunpack.c.0.s8 %v1385
        %v1387 = vlaneseq
        %v1388 = vshrl.u32 %v1387, 7
        %v1389 = vsub.s32 %v1386, %v1388
        %v1390 = vrot.slane %v1383, %v1389
        %v1391 = vcombine.low %v1366, %v1374
        %v1392 = vcombine.high %v1366, %v1374
        %v1394 = vunpack.c.l.s4 1934713408
        %v1395 = vunpack.c.0.s8 %v1394
        %v1396 = vlaneseq
        %v1397 = vshrl.u32 %v1396, 7
        %v1398 = vsub.s32 %v1395, %v1397
        %v1399 = vrot.slane %v1391, %v1398
        %v1401 = vunpack.c.l.s4 1934713408
        %v1402 = vunpack.c.0.s8 %v1401
        %v1403 = vlaneseq
        %v1404 = vshrl.u32 %v1403, 7
        %v1405 = vsub.s32 %v1402, %v1404
        %v1406 = vrot.slane %v1392, %v1405
        %v1407 = vcombine.low %v1382, %v1390
        %v1408 = vcombine.high %v1382, %v1390
        %v1410 = vunpack.c.l.s4 1934713408
        %v1411 = vunpack.c.0.s8 %v1410
        %v1412 = vlaneseq
        %v1413 = vshrl.u32 %v1412, 7
        %v1414 = vsub.s32 %v1411, %v1413
        %v1415 = vrot.slane %v1407, %v1414
        %v1417 = vunpack.c.l.s4 1934713408
        %v1418 = vunpack.c.0.s8 %v1417
        %v1419 = vlaneseq
        %v1420 = vshrl.u32 %v1419, 7
        %v1421 = vsub.s32 %v1418, %v1420
        %v1422 = vrot.slane %v1408, %v1421
        %v1423 = vcombine.low %v1399, %v1415
        %v1424 = vcombine.high %v1399, %v1415
        %v1425 = vcombine.low %v1406, %v1422
        %v1426 = vcombine.high %v1406, %v1422
        %1428 = vrot.lane.b32.xlu0 %v1424, 8
        %v1429 = vpop.permute.xlu0 %1428
        %1432 = vrot.lane.b32.xlu0 %v1425, 16
        %v1433 = vpop.permute.xlu0 %1432
        %1436 = vrot.lane.b32.xlu0 %v1426, 24
        %v1437 = vpop.permute.xlu0 %1436
        %v1439 = vsel %vm869, %v1423, %v1429
        %vm1440 = vcmask 130048
        %v1441 = vsel %vm1440, %v1439, %v1433
        %vm1442 = vcmask 195584
        %v1443 = vsel %vm1442, %v1441, %v1437
        %v1444 = vpack.c.bf16 %v1443, %v1443
        %v1445 = vld [vmem:[#allocation2 + $0x4] sm:$0xf]
        %v1446 = vld [vmem:[#allocation2 + $0x20] sm:$0xf]
        %v1447 = vld [vmem:[#allocation2 + $0x3c] sm:$0xf]
        %v1448 = vld [vmem:[#allocation2 + $0x58] sm:$0xf]
        %v1449 = vlaneseq
        %v1450 = vshrl.u32 %v1449, 7
        %v1451 = vsub.s32 1, %v1450
        %v1452 = vrot.slane %v330, %v1451
        %v1457 = vunpack.c.l.b16 %v1445
        %v1458 = vunpack.c.l.b16 %v1446
        %v1459 = vunpack.c.l.b16 %v1447
        %v1460 = vunpack.c.l.b16 %v1448
        %v1461 = vpack.c.b16 %v1458, %v1457
        %v1462 = vpack.c.b16 %v1460, %v1459
        %v1466 = vsel %vm336, %v1444, 0
        %1468 = vmatprep.subr.bf16.mxu0 0
        %1469 = vmatpush1.bf16.msra.mxu0 0
        %1470 = vmatprep.subr.bf16.mxu0 0
        %1471 = vmatpush1.bf16.msra.mxu0 0
        %1472 = vmatprep.subr.bf16.mxu0 0
        %1473 = vmatpush1.bf16.msra.mxu0 0
        %1474 = vmatprep.subr.bf16.mxu0 0
        %1475 = vmatpush1.bf16.msra.mxu0 0
        %1476 = vmatprep.subr.bf16.mxu0 0
        %1477 = vmatpush1.bf16.msra.mxu0 0
        %1478 = vmatprep.subr.bf16.mxu0 0
        %1479 = vmatpush1.bf16.msra.mxu0 0
        %1480 = vmatprep.subr.bf16.mxu0 0
        %1481 = vmatpush1.bf16.msra.mxu0 %v1462
        %1482 = vmatprep.subr.bf16.mxu0 0
        %1483 = vmatpush1.bf16.msra.mxu0 %v1461
        %1484 = vmatprep.subr.bf16.mxu0 0
        %1485 = vmatpush2.bf16.msra.mxu0 0
        %1486 = vmatprep.subr.bf16.mxu0 0
        %1487 = vmatpush2.bf16.msra.mxu0 0
        %1488 = vmatprep.subr.bf16.mxu0 0
        %1489 = vmatpush2.bf16.msra.mxu0 0
        %1490 = vmatprep.subr.bf16.mxu0 0
        %1491 = vmatpush2.bf16.msra.mxu0 0
        %1492 = vmatprep.subr.bf16.mxu0 0
        %1493 = vmatpush2.bf16.msra.mxu0 0
        %1494 = vmatprep.subr.bf16.mxu0 0
        %1495 = vmatpush2.bf16.msra.mxu0 0
        %1496 = vmatprep.subr.bf16.mxu0 0
        %1497 = vmatpush2.bf16.msra.mxu0 0
        %1498 = vmatprep.subr.bf16.mxu0 0
        %1499 = vmatpush2.bf16.msra.mxu0 0
        %1500 = vmatprep.mubr.bf16.mxu0 0
        %1501 = vmatmul.mubr.bf16.gmra.mxu0 %v1466
        %v1502 = vpop.f32.mrf.mxu0
        %v1503 = vadd.f32 %v1452, %v1502
        %v1504 = vpop.f32.mrf.mxu0
        %v1505 = vpop.f32.mrf.mxu0
        %v1506 = vpop.f32.mrf.mxu0
        %1507 = vdwg.mxu0
        %v1508 = vadd.f32 %v324, %v1503
        %v1509 = vsel %vm336, %v1508, 0.0
        %1510 = vadd.xlane.f32.xlu0 %v1509
        %v1511 = vpop.xlane.xlu0 %1510
        %v1512 = vrcp.pop 32.0
        %v1513 = vmul.f32 %v1511, %v1512
        %v1514 = vsub.f32 %v1508, %v1513
        %v1515 = vmul.f32 %v1514, %v1514
        %v1516 = vsel %vm336, %v1515, 0.0
        %1517 = vadd.xlane.f32.xlu0 %v1516
        %v1518 = vpop.xlane.xlu0 %1517
        %v1519 = vmul.f32 %v1518, %v1512
        %v1520 = vadd.f32 %v1519, 1e-05
        %v1521 = vrsqrt.pop %v1520
        %v1522 = vmul.f32 %v1514, %v1521
        %v1523 = vlaneseq
        %v1524 = vshrl.u32 %v1523, 7
        %v1525 = vsub.s32 7, %v1524
        %v1526 = vrot.slane %v330, %v1525
        %v1527 = vmul.f32 %v1522, %v1526
        %v1528 = vlaneseq
        %v1529 = vshrl.u32 %v1528, 7
        %v1530 = vsub.s32 0, %v1529
        %v1531 = vrot.slane %v331, %v1530
        %v1532 = vadd.f32 %v1527, %v1531
        %1535 = vrot.lane.b32.xlu0 %v328, 32
        %v1536 = vpop.permute.xlu0 %1535
        %1537 = vrot.lane.b32.xlu0 %v329, 32
        %v1538 = vpop.permute.xlu0 %1537
        %v1541 = vsel %vm336, %v326, %v1536
        %v1542 = vsel %vm336, %v327, %v1538
        %v1543 = vpack.c.bf16 %v1542, %v1541
        %v1544 = vld [vmem:[#allocation2 + $0xc] sm:$0xf]
        %v1545 = vld [vmem:[#allocation2 + $0x28] sm:$0xf]
        %v1546 = vld [vmem:[#allocation2 + $0x44] sm:$0xf]
        %v1547 = vld [vmem:[#allocation2 + $0x60] sm:$0xf]
        %v1548 = vld [vmem:[#allocation2 + $0x7c] sm:$0xf]
        %v1549 = vld [vmem:[#allocation2 + $0x98] sm:$0xf]
        %v1550 = vld [vmem:[#allocation2 + $0xb4] sm:$0xf]
        %v1551 = vld [vmem:[#allocation2 + $0xd0] sm:$0xf]
        %v1552 = vlaneseq
        %v1553 = vshrl.u32 %v1552, 7
        %v1554 = vsub.s32 3, %v1553
        %v1555 = vrot.slane %v330, %v1554
        %v1564 = vunpack.c.l.b16 %v1544
        %v1565 = vunpack.c.l.b16 %v1545
        %v1566 = vunpack.c.l.b16 %v1546
        %v1567 = vunpack.c.l.b16 %v1547
        %v1568 = vunpack.c.l.b16 %v1548
        %v1569 = vunpack.c.l.b16 %v1549
        %v1570 = vunpack.c.l.b16 %v1550
        %v1571 = vunpack.c.l.b16 %v1551
        %v1572 = vpack.c.b16 %v1565, %v1564
        %v1573 = vpack.c.b16 %v1567, %v1566
        %v1574 = vpack.c.b16 %v1569, %v1568
        %v1575 = vpack.c.b16 %v1571, %v1570
        %v1581 = vsel %vm375, %v1543, 0
        %1583 = vmatprep.subr.bf16.mxu0 0
        %1584 = vmatpush1.bf16.msra.mxu0 0
        %1585 = vmatprep.subr.bf16.mxu0 0
        %1586 = vmatpush1.bf16.msra.mxu0 0
        %1587 = vmatprep.subr.bf16.mxu0 0
        %1588 = vmatpush1.bf16.msra.mxu0 0
        %1589 = vmatprep.subr.bf16.mxu0 0
        %1590 = vmatpush1.bf16.msra.mxu0 0
        %1591 = vmatprep.subr.bf16.mxu0 0
        %1592 = vmatpush1.bf16.msra.mxu0 %v1575
        %1593 = vmatprep.subr.bf16.mxu0 0
        %1594 = vmatpush1.bf16.msra.mxu0 %v1574
        %1595 = vmatprep.subr.bf16.mxu0 0
        %1596 = vmatpush1.bf16.msra.mxu0 %v1573
        %1597 = vmatprep.subr.bf16.mxu0 0
        %1598 = vmatpush1.bf16.msra.mxu0 %v1572
        %1599 = vmatprep.subr.bf16.mxu0 0
        %1600 = vmatpush2.bf16.msra.mxu0 0
        %1601 = vmatprep.subr.bf16.mxu0 0
        %1602 = vmatpush2.bf16.msra.mxu0 0
        %1603 = vmatprep.subr.bf16.mxu0 0
        %1604 = vmatpush2.bf16.msra.mxu0 0
        %1605 = vmatprep.subr.bf16.mxu0 0
        %1606 = vmatpush2.bf16.msra.mxu0 0
        %1607 = vmatprep.subr.bf16.mxu0 0
        %1608 = vmatpush2.bf16.msra.mxu0 0
        %1609 = vmatprep.subr.bf16.mxu0 0
        %1610 = vmatpush2.bf16.msra.mxu0 0
        %1611 = vmatprep.subr.bf16.mxu0 0
        %1612 = vmatpush2.bf16.msra.mxu0 0
        %1613 = vmatprep.subr.bf16.mxu0 0
        %1614 = vmatpush2.bf16.msra.mxu0 0
        %1615 = vmatprep.mubr.bf16.mxu0 0
        %1616 = vmatmul.mubr.bf16.gmra.mxu0 %v1581
        %v1617 = vpop.f32.mrf.mxu0
        %v1618 = vadd.f32 %v1555, %v1617
        %v1619 = vpop.f32.mrf.mxu0
        %v1620 = vpop.f32.mrf.mxu0
        %v1621 = vadd.f32 %v1555, %v1620
        %v1622 = vpop.f32.mrf.mxu0
        %1623 = vdwg.mxu0
        %1626 = vrot.lane.b32.xlu0 %v1618, 120
        %v1627 = vpop.permute.xlu0 %1626
        %1628 = vrot.lane.b32.xlu0 %v1621, 120
        %v1629 = vpop.permute.xlu0 %1628
        %1632 = vrot.lane.b32.xlu0 %v1618, 112
        %v1633 = vpop.permute.xlu0 %1632
        %1634 = vrot.lane.b32.xlu0 %v1621, 112
        %v1635 = vpop.permute.xlu0 %1634
        %1638 = vrot.lane.b32.xlu0 %v1618, 104
        %v1639 = vpop.permute.xlu0 %1638
        %1640 = vrot.lane.b32.xlu0 %v1621, 104
        %v1641 = vpop.permute.xlu0 %1640
        %1644 = vrot.lane.b32.xlu0 %v1618, 96
        %v1645 = vpop.permute.xlu0 %1644
        %1646 = vrot.lane.b32.xlu0 %v1621, 96
        %v1647 = vpop.permute.xlu0 %1646
        %1650 = vrot.lane.b32.xlu0 %v1618, 88
        %v1651 = vpop.permute.xlu0 %1650
        %1652 = vrot.lane.b32.xlu0 %v1621, 88
        %v1653 = vpop.permute.xlu0 %1652
        %1656 = vrot.lane.b32.xlu0 %v1618, 80
        %v1657 = vpop.permute.xlu0 %1656
        %1658 = vrot.lane.b32.xlu0 %v1621, 80
        %v1659 = vpop.permute.xlu0 %1658
        %1662 = vrot.lane.b32.xlu0 %v1618, 72
        %v1663 = vpop.permute.xlu0 %1662
        %1664 = vrot.lane.b32.xlu0 %v1621, 72
        %v1665 = vpop.permute.xlu0 %1664
        %v1668 = vcombine.low %v1618, %v1633
        %v1669 = vcombine.high %v1618, %v1633
        %v1671 = vunpack.c.l.s4 1983009808
        %v1672 = vunpack.c.0.s8 %v1671
        %v1673 = vlaneseq
        %v1674 = vshrl.u32 %v1673, 7
        %v1675 = vsub.s32 %v1672, %v1674
        %v1676 = vrot.slane %v1668, %v1675
        %v1678 = vunpack.c.l.s4 1983009808
        %v1679 = vunpack.c.0.s8 %v1678
        %v1680 = vlaneseq
        %v1681 = vshrl.u32 %v1680, 7
        %v1682 = vsub.s32 %v1679, %v1681
        %v1683 = vrot.slane %v1669, %v1682
        %v1684 = vcombine.low %v1627, %v1639
        %v1685 = vcombine.high %v1627, %v1639
        %v1687 = vunpack.c.l.s4 1983009808
        %v1688 = vunpack.c.0.s8 %v1687
        %v1689 = vlaneseq
        %v1690 = vshrl.u32 %v1689, 7
        %v1691 = vsub.s32 %v1688, %v1690
        %v1692 = vrot.slane %v1684, %v1691
        %v1694 = vunpack.c.l.s4 1983009808
        %v1695 = vunpack.c.0.s8 %v1694
        %v1696 = vlaneseq
        %v1697 = vshrl.u32 %v1696, 7
        %v1698 = vsub.s32 %v1695, %v1697
        %v1699 = vrot.slane %v1685, %v1698
        %v1700 = vcombine.low %v1645, %v1657
        %v1701 = vcombine.high %v1645, %v1657
        %v1703 = vunpack.c.l.s4 1983009808
        %v1704 = vunpack.c.0.s8 %v1703
        %v1705 = vlaneseq
        %v1706 = vshrl.u32 %v1705, 7
        %v1707 = vsub.s32 %v1704, %v1706
        %v1708 = vrot.slane %v1700, %v1707
        %v1710 = vunpack.c.l.s4 1983009808
        %v1711 = vunpack.c.0.s8 %v1710
        %v1712 = vlaneseq
        %v1713 = vshrl.u32 %v1712, 7
        %v1714 = vsub.s32 %v1711, %v1713
        %v1715 = vrot.slane %v1701, %v1714
        %v1716 = vcombine.low %v1651, %v1663
        %v1717 = vcombine.high %v1651, %v1663
        %v1719 = vunpack.c.l.s4 1983009808
        %v1720 = vunpack.c.0.s8 %v1719
        %v1721 = vlaneseq
        %v1722 = vshrl.u32 %v1721, 7
        %v1723 = vsub.s32 %v1720, %v1722
        %v1724 = vrot.slane %v1716, %v1723
        %v1726 = vunpack.c.l.s4 1983009808
        %v1727 = vunpack.c.0.s8 %v1726
        %v1728 = vlaneseq
        %v1729 = vshrl.u32 %v1728, 7
        %v1730 = vsub.s32 %v1727, %v1729
        %v1731 = vrot.slane %v1717, %v1730
        %v1732 = vcombine.low %v1676, %v1692
        %v1733 = vcombine.high %v1676, %v1692
        %v1735 = vunpack.c.l.s4 1934713408
        %v1736 = vunpack.c.0.s8 %v1735
        %v1737 = vlaneseq
        %v1738 = vshrl.u32 %v1737, 7
        %v1739 = vsub.s32 %v1736, %v1738
        %v1740 = vrot.slane %v1732, %v1739
        %v1742 = vunpack.c.l.s4 1934713408
        %v1743 = vunpack.c.0.s8 %v1742
        %v1744 = vlaneseq
        %v1745 = vshrl.u32 %v1744, 7
        %v1746 = vsub.s32 %v1743, %v1745
        %v1747 = vrot.slane %v1733, %v1746
        %v1748 = vcombine.low %v1683, %v1699
        %v1749 = vcombine.high %v1683, %v1699
        %v1751 = vunpack.c.l.s4 1934713408
        %v1752 = vunpack.c.0.s8 %v1751
        %v1753 = vlaneseq
        %v1754 = vshrl.u32 %v1753, 7
        %v1755 = vsub.s32 %v1752, %v1754
        %v1756 = vrot.slane %v1748, %v1755
        %v1758 = vunpack.c.l.s4 1934713408
        %v1759 = vunpack.c.0.s8 %v1758
        %v1760 = vlaneseq
        %v1761 = vshrl.u32 %v1760, 7
        %v1762 = vsub.s32 %v1759, %v1761
        %v1763 = vrot.slane %v1749, %v1762
        %v1764 = vcombine.low %v1708, %v1724
        %v1765 = vcombine.high %v1708, %v1724
        %v1767 = vunpack.c.l.s4 1934713408
        %v1768 = vunpack.c.0.s8 %v1767
        %v1769 = vlaneseq
        %v1770 = vshrl.u32 %v1769, 7
        %v1771 = vsub.s32 %v1768, %v1770
        %v1772 = vrot.slane %v1764, %v1771
        %v1774 = vunpack.c.l.s4 1934713408
        %v1775 = vunpack.c.0.s8 %v1774
        %v1776 = vlaneseq
        %v1777 = vshrl.u32 %v1776, 7
        %v1778 = vsub.s32 %v1775, %v1777
        %v1779 = vrot.slane %v1765, %v1778
        %v1780 = vcombine.low %v1715, %v1731
        %v1781 = vcombine.high %v1715, %v1731
        %v1783 = vunpack.c.l.s4 1934713408
        %v1784 = vunpack.c.0.s8 %v1783
        %v1785 = vlaneseq
        %v1786 = vshrl.u32 %v1785, 7
        %v1787 = vsub.s32 %v1784, %v1786
        %v1788 = vrot.slane %v1780, %v1787
        %v1790 = vunpack.c.l.s4 1934713408
        %v1791 = vunpack.c.0.s8 %v1790
        %v1792 = vlaneseq
        %v1793 = vshrl.u32 %v1792, 7
        %v1794 = vsub.s32 %v1791, %v1793
        %v1795 = vrot.slane %v1781, %v1794
        %v1796 = vcombine.low %v1740, %v1772
        %v1797 = vcombine.high %v1740, %v1772
        %v1798 = vcombine.low %v1747, %v1779
        %v1799 = vcombine.high %v1747, %v1779
        %v1800 = vcombine.low %v1756, %v1788
        %v1801 = vcombine.high %v1756, %v1788
        %v1802 = vcombine.low %v1763, %v1795
        %v1803 = vcombine.high %v1763, %v1795
        %v1804 = vcombine.low %v1621, %v1635
        %v1805 = vcombine.high %v1621, %v1635
        %v1807 = vunpack.c.l.s4 1983009808
        %v1808 = vunpack.c.0.s8 %v1807
        %v1809 = vlaneseq
        %v1810 = vshrl.u32 %v1809, 7
        %v1811 = vsub.s32 %v1808, %v1810
        %v1812 = vrot.slane %v1804, %v1811
        %v1814 = vunpack.c.l.s4 1983009808
        %v1815 = vunpack.c.0.s8 %v1814
        %v1816 = vlaneseq
        %v1817 = vshrl.u32 %v1816, 7
        %v1818 = vsub.s32 %v1815, %v1817
        %v1819 = vrot.slane %v1805, %v1818
        %v1820 = vcombine.low %v1629, %v1641
        %v1821 = vcombine.high %v1629, %v1641
        %v1823 = vunpack.c.l.s4 1983009808
        %v1824 = vunpack.c.0.s8 %v1823
        %v1825 = vlaneseq
        %v1826 = vshrl.u32 %v1825, 7
        %v1827 = vsub.s32 %v1824, %v1826
        %v1828 = vrot.slane %v1820, %v1827
        %v1830 = vunpack.c.l.s4 1983009808
        %v1831 = vunpack.c.0.s8 %v1830
        %v1832 = vlaneseq
        %v1833 = vshrl.u32 %v1832, 7
        %v1834 = vsub.s32 %v1831, %v1833
        %v1835 = vrot.slane %v1821, %v1834
        %v1836 = vcombine.low %v1647, %v1659
        %v1837 = vcombine.high %v1647, %v1659
        %v1839 = vunpack.c.l.s4 1983009808
        %v1840 = vunpack.c.0.s8 %v1839
        %v1841 = vlaneseq
        %v1842 = vshrl.u32 %v1841, 7
        %v1843 = vsub.s32 %v1840, %v1842
        %v1844 = vrot.slane %v1836, %v1843
        %v1846 = vunpack.c.l.s4 1983009808
        %v1847 = vunpack.c.0.s8 %v1846
        %v1848 = vlaneseq
        %v1849 = vshrl.u32 %v1848, 7
        %v1850 = vsub.s32 %v1847, %v1849
        %v1851 = vrot.slane %v1837, %v1850
        %v1852 = vcombine.low %v1653, %v1665
        %v1853 = vcombine.high %v1653, %v1665
        %v1855 = vunpack.c.l.s4 1983009808
        %v1856 = vunpack.c.0.s8 %v1855
        %v1857 = vlaneseq
        %v1858 = vshrl.u32 %v1857, 7
        %v1859 = vsub.s32 %v1856, %v1858
        %v1860 = vrot.slane %v1852, %v1859
        %v1862 = vunpack.c.l.s4 1983009808
        %v1863 = vunpack.c.0.s8 %v1862
        %v1864 = vlaneseq
        %v1865 = vshrl.u32 %v1864, 7
        %v1866 = vsub.s32 %v1863, %v1865
        %v1867 = vrot.slane %v1853, %v1866
        %v1868 = vcombine.low %v1812, %v1828
        %v1869 = vcombine.high %v1812, %v1828
        %v1871 = vunpack.c.l.s4 1934713408
        %v1872 = vunpack.c.0.s8 %v1871
        %v1873 = vlaneseq
        %v1874 = vshrl.u32 %v1873, 7
        %v1875 = vsub.s32 %v1872, %v1874
        %v1876 = vrot.slane %v1868, %v1875
        %v1878 = vunpack.c.l.s4 1934713408
        %v1879 = vunpack.c.0.s8 %v1878
        %v1880 = vlaneseq
        %v1881 = vshrl.u32 %v1880, 7
        %v1882 = vsub.s32 %v1879, %v1881
        %v1883 = vrot.slane %v1869, %v1882
        %v1884 = vcombine.low %v1819, %v1835
        %v1885 = vcombine.high %v1819, %v1835
        %v1887 = vunpack.c.l.s4 1934713408
        %v1888 = vunpack.c.0.s8 %v1887
        %v1889 = vlaneseq
        %v1890 = vshrl.u32 %v1889, 7
        %v1891 = vsub.s32 %v1888, %v1890
        %v1892 = vrot.slane %v1884, %v1891
        %v1894 = vunpack.c.l.s4 1934713408
        %v1895 = vunpack.c.0.s8 %v1894
        %v1896 = vlaneseq
        %v1897 = vshrl.u32 %v1896, 7
        %v1898 = vsub.s32 %v1895, %v1897
        %v1899 = vrot.slane %v1885, %v1898
        %v1900 = vcombine.low %v1844, %v1860
        %v1901 = vcombine.high %v1844, %v1860
        %v1903 = vunpack.c.l.s4 1934713408
        %v1904 = vunpack.c.0.s8 %v1903
        %v1905 = vlaneseq
        %v1906 = vshrl.u32 %v1905, 7
        %v1907 = vsub.s32 %v1904, %v1906
        %v1908 = vrot.slane %v1900, %v1907
        %v1910 = vunpack.c.l.s4 1934713408
        %v1911 = vunpack.c.0.s8 %v1910
        %v1912 = vlaneseq
        %v1913 = vshrl.u32 %v1912, 7
        %v1914 = vsub.s32 %v1911, %v1913
        %v1915 = vrot.slane %v1901, %v1914
        %v1916 = vcombine.low %v1851, %v1867
        %v1917 = vcombine.high %v1851, %v1867
        %v1919 = vunpack.c.l.s4 1934713408
        %v1920 = vunpack.c.0.s8 %v1919
        %v1921 = vlaneseq
        %v1922 = vshrl.u32 %v1921, 7
        %v1923 = vsub.s32 %v1920, %v1922
        %v1924 = vrot.slane %v1916, %v1923
        %v1926 = vunpack.c.l.s4 1934713408
        %v1927 = vunpack.c.0.s8 %v1926
        %v1928 = vlaneseq
        %v1929 = vshrl.u32 %v1928, 7
        %v1930 = vsub.s32 %v1927, %v1929
        %v1931 = vrot.slane %v1917, %v1930
        %v1932 = vcombine.low %v1876, %v1908
        %v1933 = vcombine.high %v1876, %v1908
        %v1934 = vcombine.low %v1883, %v1915
        %v1935 = vcombine.high %v1883, %v1915
        %v1936 = vcombine.low %v1892, %v1924
        %v1937 = vcombine.high %v1892, %v1924
        %v1938 = vcombine.low %v1899, %v1931
        %v1939 = vcombine.high %v1899, %v1931
        %v1940 = vcombine.low %v1796, %v1798
        %v1941 = vcombine.high %v1796, %v1798
        %v1943 = vunpack.c.l.s4 1983009808
        %v1944 = vunpack.c.0.s8 %v1943
        %v1945 = vlaneseq
        %v1946 = vshrl.u32 %v1945, 7
        %v1947 = vsub.s32 %v1944, %v1946
        %v1948 = vrot.slane %v1940, %v1947
        %v1950 = vunpack.c.l.s4 1983009808
        %v1951 = vunpack.c.0.s8 %v1950
        %v1952 = vlaneseq
        %v1953 = vshrl.u32 %v1952, 7
        %v1954 = vsub.s32 %v1951, %v1953
        %v1955 = vrot.slane %v1941, %v1954
        %v1956 = vcombine.low %v1797, %v1799
        %v1957 = vcombine.high %v1797, %v1799
        %v1959 = vunpack.c.l.s4 1983009808
        %v1960 = vunpack.c.0.s8 %v1959
        %v1961 = vlaneseq
        %v1962 = vshrl.u32 %v1961, 7
        %v1963 = vsub.s32 %v1960, %v1962
        %v1964 = vrot.slane %v1956, %v1963
        %v1966 = vunpack.c.l.s4 1983009808
        %v1967 = vunpack.c.0.s8 %v1966
        %v1968 = vlaneseq
        %v1969 = vshrl.u32 %v1968, 7
        %v1970 = vsub.s32 %v1967, %v1969
        %v1971 = vrot.slane %v1957, %v1970
        %v1972 = vcombine.low %v1800, %v1802
        %v1973 = vcombine.high %v1800, %v1802
        %v1975 = vunpack.c.l.s4 1983009808
        %v1976 = vunpack.c.0.s8 %v1975
        %v1977 = vlaneseq
        %v1978 = vshrl.u32 %v1977, 7
        %v1979 = vsub.s32 %v1976, %v1978
        %v1980 = vrot.slane %v1972, %v1979
        %v1982 = vunpack.c.l.s4 1983009808
        %v1983 = vunpack.c.0.s8 %v1982
        %v1984 = vlaneseq
        %v1985 = vshrl.u32 %v1984, 7
        %v1986 = vsub.s32 %v1983, %v1985
        %v1987 = vrot.slane %v1973, %v1986
        %v1988 = vcombine.low %v1801, %v1803
        %v1989 = vcombine.high %v1801, %v1803
        %v1991 = vunpack.c.l.s4 1983009808
        %v1992 = vunpack.c.0.s8 %v1991
        %v1993 = vlaneseq
        %v1994 = vshrl.u32 %v1993, 7
        %v1995 = vsub.s32 %v1992, %v1994
        %v1996 = vrot.slane %v1988, %v1995
        %v1998 = vunpack.c.l.s4 1983009808
        %v1999 = vunpack.c.0.s8 %v1998
        %v2000 = vlaneseq
        %v2001 = vshrl.u32 %v2000, 7
        %v2002 = vsub.s32 %v1999, %v2001
        %v2003 = vrot.slane %v1989, %v2002
        %v2004 = vcombine.low %v1948, %v1964
        %v2005 = vcombine.high %v1948, %v1964
        %v2007 = vunpack.c.l.s4 1934713408
        %v2008 = vunpack.c.0.s8 %v2007
        %v2009 = vlaneseq
        %v2010 = vshrl.u32 %v2009, 7
        %v2011 = vsub.s32 %v2008, %v2010
        %v2012 = vrot.slane %v2004, %v2011
        %v2014 = vunpack.c.l.s4 1934713408
        %v2015 = vunpack.c.0.s8 %v2014
        %v2016 = vlaneseq
        %v2017 = vshrl.u32 %v2016, 7
        %v2018 = vsub.s32 %v2015, %v2017
        %v2019 = vrot.slane %v2005, %v2018
        %v2020 = vcombine.low %v1955, %v1971
        %v2021 = vcombine.high %v1955, %v1971
        %v2023 = vunpack.c.l.s4 1934713408
        %v2024 = vunpack.c.0.s8 %v2023
        %v2025 = vlaneseq
        %v2026 = vshrl.u32 %v2025, 7
        %v2027 = vsub.s32 %v2024, %v2026
        %v2028 = vrot.slane %v2020, %v2027
        %v2030 = vunpack.c.l.s4 1934713408
        %v2031 = vunpack.c.0.s8 %v2030
        %v2032 = vlaneseq
        %v2033 = vshrl.u32 %v2032, 7
        %v2034 = vsub.s32 %v2031, %v2033
        %v2035 = vrot.slane %v2021, %v2034
        %v2036 = vcombine.low %v1980, %v1996
        %v2037 = vcombine.high %v1980, %v1996
        %v2039 = vunpack.c.l.s4 1934713408
        %v2040 = vunpack.c.0.s8 %v2039
        %v2041 = vlaneseq
        %v2042 = vshrl.u32 %v2041, 7
        %v2043 = vsub.s32 %v2040, %v2042
        %v2044 = vrot.slane %v2036, %v2043
        %v2046 = vunpack.c.l.s4 1934713408
        %v2047 = vunpack.c.0.s8 %v2046
        %v2048 = vlaneseq
        %v2049 = vshrl.u32 %v2048, 7
        %v2050 = vsub.s32 %v2047, %v2049
        %v2051 = vrot.slane %v2037, %v2050
        %v2052 = vcombine.low %v1987, %v2003
        %v2053 = vcombine.high %v1987, %v2003
        %v2055 = vunpack.c.l.s4 1934713408
        %v2056 = vunpack.c.0.s8 %v2055
        %v2057 = vlaneseq
        %v2058 = vshrl.u32 %v2057, 7
        %v2059 = vsub.s32 %v2056, %v2058
        %v2060 = vrot.slane %v2052, %v2059
        %v2062 = vunpack.c.l.s4 1934713408
        %v2063 = vunpack.c.0.s8 %v2062
        %v2064 = vlaneseq
        %v2065 = vshrl.u32 %v2064, 7
        %v2066 = vsub.s32 %v2063, %v2065
        %v2067 = vrot.slane %v2053, %v2066
        %v2068 = vcombine.low %v2012, %v2044
        %v2069 = vcombine.high %v2012, %v2044
        %v2070 = vcombine.low %v2019, %v2051
        %v2071 = vcombine.high %v2019, %v2051
        %v2072 = vcombine.low %v2028, %v2060
        %v2073 = vcombine.high %v2028, %v2060
        %v2074 = vcombine.low %v2035, %v2067
        %v2075 = vcombine.high %v2035, %v2067
        %v2076 = vcombine.low %v1932, %v1934
        %v2077 = vcombine.high %v1932, %v1934
        %v2079 = vunpack.c.l.s4 1983009808
        %v2080 = vunpack.c.0.s8 %v2079
        %v2081 = vlaneseq
        %v2082 = vshrl.u32 %v2081, 7
        %v2083 = vsub.s32 %v2080, %v2082
        %v2084 = vrot.slane %v2076, %v2083
        %v2086 = vunpack.c.l.s4 1983009808
        %v2087 = vunpack.c.0.s8 %v2086
        %v2088 = vlaneseq
        %v2089 = vshrl.u32 %v2088, 7
        %v2090 = vsub.s32 %v2087, %v2089
        %v2091 = vrot.slane %v2077, %v2090
        %v2092 = vcombine.low %v1933, %v1935
        %v2093 = vcombine.high %v1933, %v1935
        %v2095 = vunpack.c.l.s4 1983009808
        %v2096 = vunpack.c.0.s8 %v2095
        %v2097 = vlaneseq
        %v2098 = vshrl.u32 %v2097, 7
        %v2099 = vsub.s32 %v2096, %v2098
        %v2100 = vrot.slane %v2092, %v2099
        %v2102 = vunpack.c.l.s4 1983009808
        %v2103 = vunpack.c.0.s8 %v2102
        %v2104 = vlaneseq
        %v2105 = vshrl.u32 %v2104, 7
        %v2106 = vsub.s32 %v2103, %v2105
        %v2107 = vrot.slane %v2093, %v2106
        %v2108 = vcombine.low %v1936, %v1938
        %v2109 = vcombine.high %v1936, %v1938
        %v2111 = vunpack.c.l.s4 1983009808
        %v2112 = vunpack.c.0.s8 %v2111
        %v2113 = vlaneseq
        %v2114 = vshrl.u32 %v2113, 7
        %v2115 = vsub.s32 %v2112, %v2114
        %v2116 = vrot.slane %v2108, %v2115
        %v2118 = vunpack.c.l.s4 1983009808
        %v2119 = vunpack.c.0.s8 %v2118
        %v2120 = vlaneseq
        %v2121 = vshrl.u32 %v2120, 7
        %v2122 = vsub.s32 %v2119, %v2121
        %v2123 = vrot.slane %v2109, %v2122
        %v2124 = vcombine.low %v1937, %v1939
        %v2125 = vcombine.high %v1937, %v1939
        %v2127 = vunpack.c.l.s4 1983009808
        %v2128 = vunpack.c.0.s8 %v2127
        %v2129 = vlaneseq
        %v2130 = vshrl.u32 %v2129, 7
        %v2131 = vsub.s32 %v2128, %v2130
        %v2132 = vrot.slane %v2124, %v2131
        %v2134 = vunpack.c.l.s4 1983009808
        %v2135 = vunpack.c.0.s8 %v2134
        %v2136 = vlaneseq
        %v2137 = vshrl.u32 %v2136, 7
        %v2138 = vsub.s32 %v2135, %v2137
        %v2139 = vrot.slane %v2125, %v2138
        %v2140 = vcombine.low %v2084, %v2100
        %v2141 = vcombine.high %v2084, %v2100
        %v2143 = vunpack.c.l.s4 1934713408
        %v2144 = vunpack.c.0.s8 %v2143
        %v2145 = vlaneseq
        %v2146 = vshrl.u32 %v2145, 7
        %v2147 = vsub.s32 %v2144, %v2146
        %v2148 = vrot.slane %v2140, %v2147
        %v2150 = vunpack.c.l.s4 1934713408
        %v2151 = vunpack.c.0.s8 %v2150
        %v2152 = vlaneseq
        %v2153 = vshrl.u32 %v2152, 7
        %v2154 = vsub.s32 %v2151, %v2153
        %v2155 = vrot.slane %v2141, %v2154
        %v2156 = vcombine.low %v2091, %v2107
        %v2157 = vcombine.high %v2091, %v2107
        %v2159 = vunpack.c.l.s4 1934713408
        %v2160 = vunpack.c.0.s8 %v2159
        %v2161 = vlaneseq
        %v2162 = vshrl.u32 %v2161, 7
        %v2163 = vsub.s32 %v2160, %v2162
        %v2164 = vrot.slane %v2156, %v2163
        %v2166 = vunpack.c.l.s4 1934713408
        %v2167 = vunpack.c.0.s8 %v2166
        %v2168 = vlaneseq
        %v2169 = vshrl.u32 %v2168, 7
        %v2170 = vsub.s32 %v2167, %v2169
        %v2171 = vrot.slane %v2157, %v2170
        %v2172 = vcombine.low %v2116, %v2132
        %v2173 = vcombine.high %v2116, %v2132
        %v2175 = vunpack.c.l.s4 1934713408
        %v2176 = vunpack.c.0.s8 %v2175
        %v2177 = vlaneseq
        %v2178 = vshrl.u32 %v2177, 7
        %v2179 = vsub.s32 %v2176, %v2178
        %v2180 = vrot.slane %v2172, %v2179
        %v2182 = vunpack.c.l.s4 1934713408
        %v2183 = vunpack.c.0.s8 %v2182
        %v2184 = vlaneseq
        %v2185 = vshrl.u32 %v2184, 7
        %v2186 = vsub.s32 %v2183, %v2185
        %v2187 = vrot.slane %v2173, %v2186
        %v2188 = vcombine.low %v2123, %v2139
        %v2189 = vcombine.high %v2123, %v2139
        %v2191 = vunpack.c.l.s4 1934713408
        %v2192 = vunpack.c.0.s8 %v2191
        %v2193 = vlaneseq
        %v2194 = vshrl.u32 %v2193, 7
        %v2195 = vsub.s32 %v2192, %v2194
        %v2196 = vrot.slane %v2188, %v2195
        %v2198 = vunpack.c.l.s4 1934713408
        %v2199 = vunpack.c.0.s8 %v2198
        %v2200 = vlaneseq
        %v2201 = vshrl.u32 %v2200, 7
        %v2202 = vsub.s32 %v2199, %v2201
        %v2203 = vrot.slane %v2189, %v2202
        %v2204 = vcombine.low %v2148, %v2180
        %v2205 = vcombine.high %v2148, %v2180
        %v2206 = vcombine.low %v2155, %v2187
        %v2207 = vcombine.high %v2155, %v2187
        %v2208 = vcombine.low %v2164, %v2196
        %v2209 = vcombine.high %v2164, %v2196
        %v2210 = vcombine.low %v2171, %v2203
        %v2211 = vcombine.high %v2171, %v2203
        %v2212 = vadd.f32 %v1532, %v325
        %v2213 = vpack.c.bf16 %v2212, %v2212
        %v2214 = vld [vmem:[#allocation2 + $0x8] sm:$0xf]
        %v2215 = vld [vmem:[#allocation2 + $0x24] sm:$0xf]
        %v2216 = vld [vmem:[#allocation2 + $0x40] sm:$0xf]
        %v2217 = vld [vmem:[#allocation2 + $0x5c] sm:$0xf]
        %v2218 = vlaneseq
        %v2219 = vshrl.u32 %v2218, 7
        %v2220 = vsub.s32 2, %v2219
        %v2221 = vrot.slane %v330, %v2220
        %v2226 = vunpack.c.l.b16 %v2214
        %v2227 = vunpack.c.l.b16 %v2215
        %v2228 = vunpack.c.l.b16 %v2216
        %v2229 = vunpack.c.l.b16 %v2217
        %v2230 = vpack.c.b16 %v2227, %v2226
        %v2231 = vpack.c.b16 %v2229, %v2228
        %v2235 = vsel %vm336, %v2213, 0
        %2237 = vmatprep.subr.bf16.mxu0 0
        %2238 = vmatpush1.bf16.msra.mxu0 0
        %2239 = vmatprep.subr.bf16.mxu0 0
        %2240 = vmatpush1.bf16.msra.mxu0 0
        %2241 = vmatprep.subr.bf16.mxu0 0
        %2242 = vmatpush1.bf16.msra.mxu0 0
        %2243 = vmatprep.subr.bf16.mxu0 0
        %2244 = vmatpush1.bf16.msra.mxu0 0
        %2245 = vmatprep.subr.bf16.mxu0 0
        %2246 = vmatpush1.bf16.msra.mxu0 0
        %2247 = vmatprep.subr.bf16.mxu0 0
        %2248 = vmatpush1.bf16.msra.mxu0 0
        %2249 = vmatprep.subr.bf16.mxu0 0
        %2250 = vmatpush1.bf16.msra.mxu0 %v2231
        %2251 = vmatprep.subr.bf16.mxu0 0
        %2252 = vmatpush1.bf16.msra.mxu0 %v2230
        %2253 = vmatprep.subr.bf16.mxu0 0
        %2254 = vmatpush2.bf16.msra.mxu0 0
        %2255 = vmatprep.subr.bf16.mxu0 0
        %2256 = vmatpush2.bf16.msra.mxu0 0
        %2257 = vmatprep.subr.bf16.mxu0 0
        %2258 = vmatpush2.bf16.msra.mxu0 0
        %2259 = vmatprep.subr.bf16.mxu0 0
        %2260 = vmatpush2.bf16.msra.mxu0 0
        %2261 = vmatprep.subr.bf16.mxu0 0
        %2262 = vmatpush2.bf16.msra.mxu0 0
        %2263 = vmatprep.subr.bf16.mxu0 0
        %2264 = vmatpush2.bf16.msra.mxu0 0
        %2265 = vmatprep.subr.bf16.mxu0 0
        %2266 = vmatpush2.bf16.msra.mxu0 0
        %2267 = vmatprep.subr.bf16.mxu0 0
        %2268 = vmatpush2.bf16.msra.mxu0 0
        %2269 = vmatprep.mubr.bf16.mxu0 0
        %2270 = vmatmul.mubr.bf16.gmra.mxu0 %v2235
        %v2271 = vpop.f32.mrf.mxu0
        %v2272 = vadd.f32 %v2221, %v2271
        %v2273 = vpop.f32.mrf.mxu0
        %v2274 = vpop.f32.mrf.mxu0
        %v2275 = vpop.f32.mrf.mxu0
        %2276 = vdwg.mxu0
        %2278 = vrot.lane.b32.xlu0 %v2272, 120
        %v2279 = vpop.permute.xlu0 %2278
        %2281 = vrot.lane.b32.xlu0 %v2272, 112
        %v2282 = vpop.permute.xlu0 %2281
        %2284 = vrot.lane.b32.xlu0 %v2272, 104
        %v2285 = vpop.permute.xlu0 %2284
        %v2287 = vcombine.low %v2272, %v2282
        %v2288 = vcombine.high %v2272, %v2282
        %v2290 = vunpack.c.l.s4 1983009808
        %v2291 = vunpack.c.0.s8 %v2290
        %v2292 = vlaneseq
        %v2293 = vshrl.u32 %v2292, 7
        %v2294 = vsub.s32 %v2291, %v2293
        %v2295 = vrot.slane %v2287, %v2294
        %v2297 = vunpack.c.l.s4 1983009808
        %v2298 = vunpack.c.0.s8 %v2297
        %v2299 = vlaneseq
        %v2300 = vshrl.u32 %v2299, 7
        %v2301 = vsub.s32 %v2298, %v2300
        %v2302 = vrot.slane %v2288, %v2301
        %v2303 = vcombine.low %v2279, %v2285
        %v2304 = vcombine.high %v2279, %v2285
        %v2306 = vunpack.c.l.s4 1983009808
        %v2307 = vunpack.c.0.s8 %v2306
        %v2308 = vlaneseq
        %v2309 = vshrl.u32 %v2308, 7
        %v2310 = vsub.s32 %v2307, %v2309
        %v2311 = vrot.slane %v2303, %v2310
        %v2313 = vunpack.c.l.s4 1983009808
        %v2314 = vunpack.c.0.s8 %v2313
        %v2315 = vlaneseq
        %v2316 = vshrl.u32 %v2315, 7
        %v2317 = vsub.s32 %v2314, %v2316
        %v2318 = vrot.slane %v2304, %v2317
        %v2319 = vcombine.low %v2295, %v2311
        %v2320 = vcombine.high %v2295, %v2311
        %v2322 = vunpack.c.l.s4 1934713408
        %v2323 = vunpack.c.0.s8 %v2322
        %v2324 = vlaneseq
        %v2325 = vshrl.u32 %v2324, 7
        %v2326 = vsub.s32 %v2323, %v2325
        %v2327 = vrot.slane %v2319, %v2326
        %v2329 = vunpack.c.l.s4 1934713408
        %v2330 = vunpack.c.0.s8 %v2329
        %v2331 = vlaneseq
        %v2332 = vshrl.u32 %v2331, 7
        %v2333 = vsub.s32 %v2330, %v2332
        %v2334 = vrot.slane %v2320, %v2333
        %v2335 = vcombine.low %v2302, %v2318
        %v2336 = vcombine.high %v2302, %v2318
        %v2338 = vunpack.c.l.s4 1934713408
        %v2339 = vunpack.c.0.s8 %v2338
        %v2340 = vlaneseq
        %v2341 = vshrl.u32 %v2340, 7
        %v2342 = vsub.s32 %v2339, %v2341
        %v2343 = vrot.slane %v2335, %v2342
        %v2345 = vunpack.c.l.s4 1934713408
        %v2346 = vunpack.c.0.s8 %v2345
        %v2347 = vlaneseq
        %v2348 = vshrl.u32 %v2347, 7
        %v2349 = vsub.s32 %v2346, %v2348
        %v2350 = vrot.slane %v2336, %v2349
        %v2351 = vcombine.high %v2327, 0.0
        %v2352 = vcombine.high %v2334, 0.0
        %v2353 = vcombine.high %v2343, 0.0
        %v2354 = vcombine.high %v2350, 0.0
        %v2355 = vcombine.low %v2327, %v2334
        %v2357 = vunpack.c.l.s4 1983009808
        %v2358 = vunpack.c.0.s8 %v2357
        %v2359 = vlaneseq
        %v2360 = vshrl.u32 %v2359, 7
        %v2361 = vsub.s32 %v2358, %v2360
        %v2362 = vrot.slane %v2355, %v2361
        %v2363 = vcombine.low %v2351, %v2352
        %v2365 = vunpack.c.l.s4 1983009808
        %v2366 = vunpack.c.0.s8 %v2365
        %v2367 = vlaneseq
        %v2368 = vshrl.u32 %v2367, 7
        %v2369 = vsub.s32 %v2366, %v2368
        %v2370 = vrot.slane %v2363, %v2369
        %v2371 = vcombine.low %v2343, %v2350
        %v2373 = vunpack.c.l.s4 1983009808
        %v2374 = vunpack.c.0.s8 %v2373
        %v2375 = vlaneseq
        %v2376 = vshrl.u32 %v2375, 7
        %v2377 = vsub.s32 %v2374, %v2376
        %v2378 = vrot.slane %v2371, %v2377
        %v2379 = vcombine.low %v2353, %v2354
        %v2381 = vunpack.c.l.s4 1983009808
        %v2382 = vunpack.c.0.s8 %v2381
        %v2383 = vlaneseq
        %v2384 = vshrl.u32 %v2383, 7
        %v2385 = vsub.s32 %v2382, %v2384
        %v2386 = vrot.slane %v2379, %v2385
        %v2387 = vcombine.low %v2362, %v2370
        %v2388 = vcombine.high %v2362, %v2370
        %v2390 = vunpack.c.l.s4 1934713408
        %v2391 = vunpack.c.0.s8 %v2390
        %v2392 = vlaneseq
        %v2393 = vshrl.u32 %v2392, 7
        %v2394 = vsub.s32 %v2391, %v2393
        %v2395 = vrot.slane %v2387, %v2394
        %v2397 = vunpack.c.l.s4 1934713408
        %v2398 = vunpack.c.0.s8 %v2397
        %v2399 = vlaneseq
        %v2400 = vshrl.u32 %v2399, 7
        %v2401 = vsub.s32 %v2398, %v2400
        %v2402 = vrot.slane %v2388, %v2401
        %v2403 = vcombine.low %v2378, %v2386
        %v2404 = vcombine.high %v2378, %v2386
        %v2406 = vunpack.c.l.s4 1934713408
        %v2407 = vunpack.c.0.s8 %v2406
        %v2408 = vlaneseq
        %v2409 = vshrl.u32 %v2408, 7
        %v2410 = vsub.s32 %v2407, %v2409
        %v2411 = vrot.slane %v2403, %v2410
        %v2413 = vunpack.c.l.s4 1934713408
        %v2414 = vunpack.c.0.s8 %v2413
        %v2415 = vlaneseq
        %v2416 = vshrl.u32 %v2415, 7
        %v2417 = vsub.s32 %v2414, %v2416
        %v2418 = vrot.slane %v2404, %v2417
        %v2419 = vcombine.low %v2395, %v2411
        %v2420 = vcombine.high %v2395, %v2411
        %v2421 = vcombine.low %v2402, %v2418
        %v2422 = vcombine.high %v2402, %v2418
        %v2423 = vpack.c.bf16 %v2419, %v2419
        %v2424 = vpack.c.bf16 %v2420, %v2420
        %v2425 = vpack.c.bf16 %v2421, %v2421
        %v2426 = vpack.c.bf16 %v2422, %v2422
        %v2427 = vpack.c.bf16 %v2204, %v2068
        %v2428 = vpack.c.bf16 %v2205, %v2069
        %v2429 = vpack.c.bf16 %v2206, %v2070
        %v2430 = vpack.c.bf16 %v2207, %v2071
        %v2432 = vsel %vm869, %v2423, 0
        %v2435 = vsel %vm869, %v2427, 0
        %2437 = vmatprep.subr.bf16.mxu0 0
        %2438 = vmatpush1.bf16.xpose.msra.mxu0 0
        %2439 = vmatprep.subr.bf16.mxu0 0
        %2440 = vmatpush1.bf16.xpose.msra.mxu0 0
        %2441 = vmatprep.subr.bf16.mxu0 0
        %2442 = vmatpush1.bf16.xpose.msra.mxu0 0
        %2443 = vmatprep.subr.bf16.mxu0 0
        %2444 = vmatpush1.bf16.xpose.msra.mxu0 0
        %2445 = vmatprep.subr.bf16.mxu0 0
        %2446 = vmatpush1.bf16.xpose.msra.mxu0 0
        %2447 = vmatprep.subr.bf16.mxu0 0
        %2448 = vmatpush1.bf16.xpose.msra.mxu0 0
        %2449 = vmatprep.subr.bf16.mxu0 0
        %2450 = vmatpush1.bf16.xpose.msra.mxu0 0
        %2451 = vmatprep.subr.bf16.mxu0 0
        %2452 = vmatpush1.bf16.xpose.msra.mxu0 %v2435
        %2453 = vmatprep.subr.bf16.mxu0 0
        %2454 = vmatpush2.bf16.xpose.msra.mxu0 0
        %2455 = vmatprep.subr.bf16.mxu0 0
        %2456 = vmatpush2.bf16.xpose.msra.mxu0 0
        %2457 = vmatprep.subr.bf16.mxu0 0
        %2458 = vmatpush2.bf16.xpose.msra.mxu0 0
        %2459 = vmatprep.subr.bf16.mxu0 0
        %2460 = vmatpush2.bf16.xpose.msra.mxu0 0
        %2461 = vmatprep.subr.bf16.mxu0 0
        %2462 = vmatpush2.bf16.xpose.msra.mxu0 0
        %2463 = vmatprep.subr.bf16.mxu0 0
        %2464 = vmatpush2.bf16.xpose.msra.mxu0 0
        %2465 = vmatprep.subr.bf16.mxu0 0
        %2466 = vmatpush2.bf16.xpose.msra.mxu0 0
        %2467 = vmatprep.subr.bf16.mxu0 0
        %2468 = vmatpush2.bf16.xpose.msra.mxu0 0
        %2469 = vmatprep.mubr.bf16.mxu0 0
        %2470 = vmatmul.mubr.bf16.gmra.mxu0 %v2432
        %v2471 = vpop.f32.mrf.mxu0
        %v2472 = vadd.f32 0.0, %v2471
        %v2473 = vpop.f32.mrf.mxu0
        %v2474 = vpop.f32.mrf.mxu0
        %v2475 = vpop.f32.mrf.mxu0
        %2476 = vdwg.mxu0
        %v2478 = vsel %vm869, %v2424, 0
        %v2481 = vsel %vm869, %v2428, 0
        %2483 = vmatprep.subr.bf16.mxu0 0
        %2484 = vmatpush1.bf16.xpose.msra.mxu0 0
        %2485 = vmatprep.subr.bf16.mxu0 0
        %2486 = vmatpush1.bf16.xpose.msra.mxu0 0
        %2487 = vmatprep.subr.bf16.mxu0 0
        %2488 = vmatpush1.bf16.xpose.msra.mxu0 0
        %2489 = vmatprep.subr.bf16.mxu0 0
        %2490 = vmatpush1.bf16.xpose.msra.mxu0 0
        %2491 = vmatprep.subr.bf16.mxu0 0
        %2492 = vmatpush1.bf16.xpose.msra.mxu0 0
        %2493 = vmatprep.subr.bf16.mxu0 0
        %2494 = vmatpush1.bf16.xpose.msra.mxu0 0
        %2495 = vmatprep.subr.bf16.mxu0 0
        %2496 = vmatpush1.bf16.xpose.msra.mxu0 0
        %2497 = vmatprep.subr.bf16.mxu0 0
        %2498 = vmatpush1.bf16.xpose.msra.mxu0 %v2481
        %2499 = vmatprep.subr.bf16.mxu0 0
        %2500 = vmatpush2.bf16.xpose.msra.mxu0 0
        %2501 = vmatprep.subr.bf16.mxu0 0
        %2502 = vmatpush2.bf16.xpose.msra.mxu0 0
        %2503 = vmatprep.subr.bf16.mxu0 0
        %2504 = vmatpush2.bf16.xpose.msra.mxu0 0
        %2505 = vmatprep.subr.bf16.mxu0 0
        %2506 = vmatpush2.bf16.xpose.msra.mxu0 0
        %2507 = vmatprep.subr.bf16.mxu0 0
        %2508 = vmatpush2.bf16.xpose.msra.mxu0 0
        %2509 = vmatprep.subr.bf16.mxu0 0
        %2510 = vmatpush2.bf16.xpose.msra.mxu0 0
        %2511 = vmatprep.subr.bf16.mxu0 0
        %2512 = vmatpush2.bf16.xpose.msra.mxu0 0
        %2513 = vmatprep.subr.bf16.mxu0 0
        %2514 = vmatpush2.bf16.xpose.msra.mxu0 0
        %2515 = vmatprep.mubr.bf16.mxu0 0
        %2516 = vmatmul.mubr.bf16.gmra.mxu0 %v2478
        %v2517 = vpop.f32.mrf.mxu0
        %v2518 = vadd.f32 0.0, %v2517
        %v2519 = vpop.f32.mrf.mxu0
        %v2520 = vpop.f32.mrf.mxu0
        %v2521 = vpop.f32.mrf.mxu0
        %2522 = vdwg.mxu0
        %v2524 = vsel %vm869, %v2425, 0
        %v2527 = vsel %vm869, %v2429, 0
        %2529 = vmatprep.subr.bf16.mxu0 0
        %2530 = vmatpush1.bf16.xpose.msra.mxu0 0
        %2531 = vmatprep.subr.bf16.mxu0 0
        %2532 = vmatpush1.bf16.xpose.msra.mxu0 0
        %2533 = vmatprep.subr.bf16.mxu0 0
        %2534 = vmatpush1.bf16.xpose.msra.mxu0 0
        %2535 = vmatprep.subr.bf16.mxu0 0
        %2536 = vmatpush1.bf16.xpose.msra.mxu0 0
        %2537 = vmatprep.subr.bf16.mxu0 0
        %2538 = vmatpush1.bf16.xpose.msra.mxu0 0
        %2539 = vmatprep.subr.bf16.mxu0 0
        %2540 = vmatpush1.bf16.xpose.msra.mxu0 0
        %2541 = vmatprep.subr.bf16.mxu0 0
        %2542 = vmatpush1.bf16.xpose.msra.mxu0 0
        %2543 = vmatprep.subr.bf16.mxu0 0
        %2544 = vmatpush1.bf16.xpose.msra.mxu0 %v2527
        %2545 = vmatprep.subr.bf16.mxu0 0
        %2546 = vmatpush2.bf16.xpose.msra.mxu0 0
        %2547 = vmatprep.subr.bf16.mxu0 0
        %2548 = vmatpush2.bf16.xpose.msra.mxu0 0
        %2549 = vmatprep.subr.bf16.mxu0 0
        %2550 = vmatpush2.bf16.xpose.msra.mxu0 0
        %2551 = vmatprep.subr.bf16.mxu0 0
        %2552 = vmatpush2.bf16.xpose.msra.mxu0 0
        %2553 = vmatprep.subr.bf16.mxu0 0
        %2554 = vmatpush2.bf16.xpose.msra.mxu0 0
        %2555 = vmatprep.subr.bf16.mxu0 0
        %2556 = vmatpush2.bf16.xpose.msra.mxu0 0
        %2557 = vmatprep.subr.bf16.mxu0 0
        %2558 = vmatpush2.bf16.xpose.msra.mxu0 0
        %2559 = vmatprep.subr.bf16.mxu0 0
        %2560 = vmatpush2.bf16.xpose.msra.mxu0 0
        %2561 = vmatprep.mubr.bf16.mxu0 0
        %2562 = vmatmul.mubr.bf16.gmra.mxu0 %v2524
        %v2563 = vpop.f32.mrf.mxu0
        %v2564 = vadd.f32 0.0, %v2563
        %v2565 = vpop.f32.mrf.mxu0
        %v2566 = vpop.f32.mrf.mxu0
        %v2567 = vpop.f32.mrf.mxu0
        %2568 = vdwg.mxu0
        %v2570 = vsel %vm869, %v2426, 0
        %v2573 = vsel %vm869, %v2430, 0
        %2575 = vmatprep.subr.bf16.mxu0 0
        %2576 = vmatpush1.bf16.xpose.msra.mxu0 0
        %2577 = vmatprep.subr.bf16.mxu0 0
        %2578 = vmatpush1.bf16.xpose.msra.mxu0 0
        %2579 = vmatprep.subr.bf16.mxu0 0
        %2580 = vmatpush1.bf16.xpose.msra.mxu0 0
        %2581 = vmatprep.subr.bf16.mxu0 0
        %2582 = vmatpush1.bf16.xpose.msra.mxu0 0
        %2583 = vmatprep.subr.bf16.mxu0 0
        %2584 = vmatpush1.bf16.xpose.msra.mxu0 0
        %2585 = vmatprep.subr.bf16.mxu0 0
        %2586 = vmatpush1.bf16.xpose.msra.mxu0 0
        %2587 = vmatprep.subr.bf16.mxu0 0
        %2588 = vmatpush1.bf16.xpose.msra.mxu0 0
        %2589 = vmatprep.subr.bf16.mxu0 0
        %2590 = vmatpush1.bf16.xpose.msra.mxu0 %v2573
        %2591 = vmatprep.subr.bf16.mxu0 0
        %2592 = vmatpush2.bf16.xpose.msra.mxu0 0
        %2593 = vmatprep.subr.bf16.mxu0 0
        %2594 = vmatpush2.bf16.xpose.msra.mxu0 0
        %2595 = vmatprep.subr.bf16.mxu0 0
        %2596 = vmatpush2.bf16.xpose.msra.mxu0 0
        %2597 = vmatprep.subr.bf16.mxu0 0
        %2598 = vmatpush2.bf16.xpose.msra.mxu0 0
        %2599 = vmatprep.subr.bf16.mxu0 0
        %2600 = vmatpush2.bf16.xpose.msra.mxu0 0
        %2601 = vmatprep.subr.bf16.mxu0 0
        %2602 = vmatpush2.bf16.xpose.msra.mxu0 0
        %2603 = vmatprep.subr.bf16.mxu0 0
        %2604 = vmatpush2.bf16.xpose.msra.mxu0 0
        %2605 = vmatprep.subr.bf16.mxu0 0
        %2606 = vmatpush2.bf16.xpose.msra.mxu0 0
        %2607 = vmatprep.mubr.bf16.mxu0 0
        %2608 = vmatmul.mubr.bf16.gmra.mxu0 %v2570
        %v2609 = vpop.f32.mrf.mxu0
        %v2610 = vadd.f32 0.0, %v2609
        %v2611 = vpop.f32.mrf.mxu0
        %v2612 = vpop.f32.mrf.mxu0
        %v2613 = vpop.f32.mrf.mxu0
        %2614 = vdwg.mxu0
        %v2615 = vsel %vm1440, %v2472, -inf
        %2616 = vmax.xlane.f32.xlu0 %v2615
        %v2617 = vpop.xlane.xlu0 %2616
        %v2618 = vsel %vm1440, %v2518, -inf
        %2619 = vmax.xlane.f32.xlu0 %v2618
        %v2620 = vpop.xlane.xlu0 %2619
        %v2621 = vsel %vm1440, %v2564, -inf
        %2622 = vmax.xlane.f32.xlu0 %v2621
        %v2623 = vpop.xlane.xlu0 %2622
        %v2624 = vsel %vm1440, %v2610, -inf
        %2625 = vmax.xlane.f32.xlu0 %v2624
        %v2626 = vpop.xlane.xlu0 %2625
        %v2627 = vsub.f32 %v2472, %v2617
        %v2628 = vsub.f32 %v2518, %v2620
        %v2629 = vsub.f32 %v2564, %v2623
        %v2630 = vsub.f32 %v2610, %v2626
        %v2631 = vmul.f32 %v2627, 1.442695
        %v2632 = vpow.pop %v2631
        %v2633 = vmul.f32 %v2628, 1.442695
        %v2634 = vpow.pop %v2633
        %v2635 = vmul.f32 %v2629, 1.442695
        %v2636 = vpow.pop %v2635
        %v2637 = vmul.f32 %v2630, 1.442695
        %v2638 = vpow.pop %v2637
        %v2639 = vsel %vm1440, %v2632, 0.0
        %2640 = vadd.xlane.f32.xlu0 %v2639
        %v2641 = vpop.xlane.xlu0 %2640
        %v2642 = vsel %vm1440, %v2634, 0.0
        %2643 = vadd.xlane.f32.xlu0 %v2642
        %v2644 = vpop.xlane.xlu0 %2643
        %v2645 = vsel %vm1440, %v2636, 0.0
        %2646 = vadd.xlane.f32.xlu0 %v2645
        %v2647 = vpop.xlane.xlu0 %2646
        %v2648 = vsel %vm1440, %v2638, 0.0
        %2649 = vadd.xlane.f32.xlu0 %v2648
        %v2650 = vpop.xlane.xlu0 %2649
        %v2651 = vrcp.pop %v2641
        %v2652 = vrcp.pop %v2644
        %v2653 = vrcp.pop %v2647
        %v2654 = vrcp.pop %v2650
        %v2655 = vmul.f32 %v2632, %v2651
        %v2656 = vmul.f32 %v2634, %v2652
        %v2657 = vmul.f32 %v2636, %v2653
        %v2658 = vmul.f32 %v2638, %v2654
        %v2659 = vpack.c.bf16 %v2655, %v2655
        %v2660 = vpack.c.bf16 %v2656, %v2656
        %v2661 = vpack.c.bf16 %v2657, %v2657
        %v2662 = vpack.c.bf16 %v2658, %v2658
        %v2663 = vpack.c.bf16 %v2208, %v2072
        %v2664 = vpack.c.bf16 %v2209, %v2073
        %v2665 = vpack.c.bf16 %v2210, %v2074
        %v2666 = vpack.c.bf16 %v2211, %v2075
        %v2668 = vsel %vm1440, %v2659, 0
        %2670 = vmatprep.subr.bf16.mxu0 0
        %2671 = vmatpush1.bf16.msra.mxu0 0
        %2672 = vmatprep.subr.bf16.mxu0 0
        %2673 = vmatpush1.bf16.msra.mxu0 0
        %2674 = vmatprep.subr.bf16.mxu0 0
        %2675 = vmatpush1.bf16.msra.mxu0 0
        %2676 = vmatprep.subr.bf16.mxu0 0
        %2677 = vmatpush1.bf16.msra.mxu0 0
        %2678 = vmatprep.subr.bf16.mxu0 0
        %2679 = vmatpush1.bf16.msra.mxu0 0
        %2680 = vmatprep.subr.bf16.mxu0 0
        %2681 = vmatpush1.bf16.msra.mxu0 0
        %2682 = vmatprep.subr.bf16.mxu0 0
        %2683 = vmatpush1.bf16.msra.mxu0 0
        %2684 = vmatprep.subr.bf16.mxu0 0
        %2685 = vmatpush1.bf16.msra.mxu0 %v2663
        %2686 = vmatprep.subr.bf16.mxu0 0
        %2687 = vmatpush2.bf16.msra.mxu0 0
        %2688 = vmatprep.subr.bf16.mxu0 0
        %2689 = vmatpush2.bf16.msra.mxu0 0
        %2690 = vmatprep.subr.bf16.mxu0 0
        %2691 = vmatpush2.bf16.msra.mxu0 0
        %2692 = vmatprep.subr.bf16.mxu0 0
        %2693 = vmatpush2.bf16.msra.mxu0 0
        %2694 = vmatprep.subr.bf16.mxu0 0
        %2695 = vmatpush2.bf16.msra.mxu0 0
        %2696 = vmatprep.subr.bf16.mxu0 0
        %2697 = vmatpush2.bf16.msra.mxu0 0
        %2698 = vmatprep.subr.bf16.mxu0 0
        %2699 = vmatpush2.bf16.msra.mxu0 0
        %2700 = vmatprep.subr.bf16.mxu0 0
        %2701 = vmatpush2.bf16.msra.mxu0 0
        %2702 = vmatprep.mubr.bf16.mxu0 0
        %2703 = vmatmul.mubr.bf16.gmra.mxu0 %v2668
        %v2704 = vpop.f32.mrf.mxu0
        %v2705 = vadd.f32 0.0, %v2704
        %v2706 = vpop.f32.mrf.mxu0
        %v2707 = vpop.f32.mrf.mxu0
        %v2708 = vpop.f32.mrf.mxu0
        %2709 = vdwg.mxu0
        %v2711 = vsel %vm1440, %v2660, 0
        %2713 = vmatprep.subr.bf16.mxu0 0
        %2714 = vmatpush1.bf16.msra.mxu0 0
        %2715 = vmatprep.subr.bf16.mxu0 0
        %2716 = vmatpush1.bf16.msra.mxu0 0
        %2717 = vmatprep.subr.bf16.mxu0 0
        %2718 = vmatpush1.bf16.msra.mxu0 0
        %2719 = vmatprep.subr.bf16.mxu0 0
        %2720 = vmatpush1.bf16.msra.mxu0 0
        %2721 = vmatprep.subr.bf16.mxu0 0
        %2722 = vmatpush1.bf16.msra.mxu0 0
        %2723 = vmatprep.subr.bf16.mxu0 0
        %2724 = vmatpush1.bf16.msra.mxu0 0
        %2725 = vmatprep.subr.bf16.mxu0 0
        %2726 = vmatpush1.bf16.msra.mxu0 0
        %2727 = vmatprep.subr.bf16.mxu0 0
        %2728 = vmatpush1.bf16.msra.mxu0 %v2664
        %2729 = vmatprep.subr.bf16.mxu0 0
        %2730 = vmatpush2.bf16.msra.mxu0 0
        %2731 = vmatprep.subr.bf16.mxu0 0
        %2732 = vmatpush2.bf16.msra.mxu0 0
        %2733 = vmatprep.subr.bf16.mxu0 0
        %2734 = vmatpush2.bf16.msra.mxu0 0
        %2735 = vmatprep.subr.bf16.mxu0 0
        %2736 = vmatpush2.bf16.msra.mxu0 0
        %2737 = vmatprep.subr.bf16.mxu0 0
        %2738 = vmatpush2.bf16.msra.mxu0 0
        %2739 = vmatprep.subr.bf16.mxu0 0
        %2740 = vmatpush2.bf16.msra.mxu0 0
        %2741 = vmatprep.subr.bf16.mxu0 0
        %2742 = vmatpush2.bf16.msra.mxu0 0
        %2743 = vmatprep.subr.bf16.mxu0 0
        %2744 = vmatpush2.bf16.msra.mxu0 0
        %2745 = vmatprep.mubr.bf16.mxu0 0
        %2746 = vmatmul.mubr.bf16.gmra.mxu0 %v2711
        %v2747 = vpop.f32.mrf.mxu0
        %v2748 = vadd.f32 0.0, %v2747
        %v2749 = vpop.f32.mrf.mxu0
        %v2750 = vpop.f32.mrf.mxu0
        %v2751 = vpop.f32.mrf.mxu0
        %2752 = vdwg.mxu0
        %v2754 = vsel %vm1440, %v2661, 0
        %2756 = vmatprep.subr.bf16.mxu0 0
        %2757 = vmatpush1.bf16.msra.mxu0 0
        %2758 = vmatprep.subr.bf16.mxu0 0
        %2759 = vmatpush1.bf16.msra.mxu0 0
        %2760 = vmatprep.subr.bf16.mxu0 0
        %2761 = vmatpush1.bf16.msra.mxu0 0
        %2762 = vmatprep.subr.bf16.mxu0 0
        %2763 = vmatpush1.bf16.msra.mxu0 0
        %2764 = vmatprep.subr.bf16.mxu0 0
        %2765 = vmatpush1.bf16.msra.mxu0 0
        %2766 = vmatprep.subr.bf16.mxu0 0
        %2767 = vmatpush1.bf16.msra.mxu0 0
        %2768 = vmatprep.subr.bf16.mxu0 0
        %2769 = vmatpush1.bf16.msra.mxu0 0
        %2770 = vmatprep.subr.bf16.mxu0 0
        %2771 = vmatpush1.bf16.msra.mxu0 %v2665
        %2772 = vmatprep.subr.bf16.mxu0 0
        %2773 = vmatpush2.bf16.msra.mxu0 0
        %2774 = vmatprep.subr.bf16.mxu0 0
        %2775 = vmatpush2.bf16.msra.mxu0 0
        %2776 = vmatprep.subr.bf16.mxu0 0
        %2777 = vmatpush2.bf16.msra.mxu0 0
        %2778 = vmatprep.subr.bf16.mxu0 0
        %2779 = vmatpush2.bf16.msra.mxu0 0
        %2780 = vmatprep.subr.bf16.mxu0 0
        %2781 = vmatpush2.bf16.msra.mxu0 0
        %2782 = vmatprep.subr.bf16.mxu0 0
        %2783 = vmatpush2.bf16.msra.mxu0 0
        %2784 = vmatprep.subr.bf16.mxu0 0
        %2785 = vmatpush2.bf16.msra.mxu0 0
        %2786 = vmatprep.subr.bf16.mxu0 0
        %2787 = vmatpush2.bf16.msra.mxu0 0
        %2788 = vmatprep.mubr.bf16.mxu0 0
        %2789 = vmatmul.mubr.bf16.gmra.mxu0 %v2754
        %v2790 = vpop.f32.mrf.mxu0
        %v2791 = vadd.f32 0.0, %v2790
        %v2792 = vpop.f32.mrf.mxu0
        %v2793 = vpop.f32.mrf.mxu0
        %v2794 = vpop.f32.mrf.mxu0
        %2795 = vdwg.mxu0
        %v2797 = vsel %vm1440, %v2662, 0
        %2799 = vmatprep.subr.bf16.mxu0 0
        %2800 = vmatpush1.bf16.msra.mxu0 0
        %2801 = vmatprep.subr.bf16.mxu0 0
        %2802 = vmatpush1.bf16.msra.mxu0 0
        %2803 = vmatprep.subr.bf16.mxu0 0
        %2804 = vmatpush1.bf16.msra.mxu0 0
        %2805 = vmatprep.subr.bf16.mxu0 0
        %2806 = vmatpush1.bf16.msra.mxu0 0
        %2807 = vmatprep.subr.bf16.mxu0 0
        %2808 = vmatpush1.bf16.msra.mxu0 0
        %2809 = vmatprep.subr.bf16.mxu0 0
        %2810 = vmatpush1.bf16.msra.mxu0 0
        %2811 = vmatprep.subr.bf16.mxu0 0
        %2812 = vmatpush1.bf16.msra.mxu0 0
        %2813 = vmatprep.subr.bf16.mxu0 0
        %2814 = vmatpush1.bf16.msra.mxu0 %v2666
        %2815 = vmatprep.subr.bf16.mxu0 0
        %2816 = vmatpush2.bf16.msra.mxu0 0
        %2817 = vmatprep.subr.bf16.mxu0 0
        %2818 = vmatpush2.bf16.msra.mxu0 0
        %2819 = vmatprep.subr.bf16.mxu0 0
        %2820 = vmatpush2.bf16.msra.mxu0 0
        %2821 = vmatprep.subr.bf16.mxu0 0
        %2822 = vmatpush2.bf16.msra.mxu0 0
        %2823 = vmatprep.subr.bf16.mxu0 0
        %2824 = vmatpush2.bf16.msra.mxu0 0
        %2825 = vmatprep.subr.bf16.mxu0 0
        %2826 = vmatpush2.bf16.msra.mxu0 0
        %2827 = vmatprep.subr.bf16.mxu0 0
        %2828 = vmatpush2.bf16.msra.mxu0 0
        %2829 = vmatprep.subr.bf16.mxu0 0
        %2830 = vmatpush2.bf16.msra.mxu0 0
        %2831 = vmatprep.mubr.bf16.mxu0 0
        %2832 = vmatmul.mubr.bf16.gmra.mxu0 %v2797
        %v2833 = vpop.f32.mrf.mxu0
        %v2834 = vadd.f32 0.0, %v2833
        %v2835 = vpop.f32.mrf.mxu0
        %v2836 = vpop.f32.mrf.mxu0
        %v2837 = vpop.f32.mrf.mxu0
        %2838 = vdwg.mxu0
        %v2839 = vcombine.low %v2705, %v2791
        %v2840 = vcombine.high %v2705, %v2791
        %v2842 = vunpack.c.l.s4 1983009808
        %v2843 = vunpack.c.0.s8 %v2842
        %v2844 = vlaneseq
        %v2845 = vshrl.u32 %v2844, 7
        %v2846 = vsub.s32 %v2843, %v2845
        %v2847 = vrot.slane %v2839, %v2846
        %v2849 = vunpack.c.l.s4 1983009808
        %v2850 = vunpack.c.0.s8 %v2849
        %v2851 = vlaneseq
        %v2852 = vshrl.u32 %v2851, 7
        %v2853 = vsub.s32 %v2850, %v2852
        %v2854 = vrot.slane %v2840, %v2853
        %v2855 = vcombine.low %v2748, %v2834
        %v2856 = vcombine.high %v2748, %v2834
        %v2858 = vunpack.c.l.s4 1983009808
        %v2859 = vunpack.c.0.s8 %v2858
        %v2860 = vlaneseq
        %v2861 = vshrl.u32 %v2860, 7
        %v2862 = vsub.s32 %v2859, %v2861
        %v2863 = vrot.slane %v2855, %v2862
        %v2865 = vunpack.c.l.s4 1983009808
        %v2866 = vunpack.c.0.s8 %v2865
        %v2867 = vlaneseq
        %v2868 = vshrl.u32 %v2867, 7
        %v2869 = vsub.s32 %v2866, %v2868
        %v2870 = vrot.slane %v2856, %v2869
        %v2871 = vcombine.low %v2847, %v2863
        %v2872 = vcombine.high %v2847, %v2863
        %v2874 = vunpack.c.l.s4 1934713408
        %v2875 = vunpack.c.0.s8 %v2874
        %v2876 = vlaneseq
        %v2877 = vshrl.u32 %v2876, 7
        %v2878 = vsub.s32 %v2875, %v2877
        %v2879 = vrot.slane %v2871, %v2878
        %v2881 = vunpack.c.l.s4 1934713408
        %v2882 = vunpack.c.0.s8 %v2881
        %v2883 = vlaneseq
        %v2884 = vshrl.u32 %v2883, 7
        %v2885 = vsub.s32 %v2882, %v2884
        %v2886 = vrot.slane %v2872, %v2885
        %v2887 = vcombine.low %v2854, %v2870
        %v2888 = vcombine.high %v2854, %v2870
        %v2890 = vunpack.c.l.s4 1934713408
        %v2891 = vunpack.c.0.s8 %v2890
        %v2892 = vlaneseq
        %v2893 = vshrl.u32 %v2892, 7
        %v2894 = vsub.s32 %v2891, %v2893
        %v2895 = vrot.slane %v2887, %v2894
        %v2897 = vunpack.c.l.s4 1934713408
        %v2898 = vunpack.c.0.s8 %v2897
        %v2899 = vlaneseq
        %v2900 = vshrl.u32 %v2899, 7
        %v2901 = vsub.s32 %v2898, %v2900
        %v2902 = vrot.slane %v2888, %v2901
        %v2903 = vcombine.high %v2879, 0.0
        %v2904 = vcombine.high %v2886, 0.0
        %v2905 = vcombine.high %v2895, 0.0
        %v2906 = vcombine.high %v2902, 0.0
        %v2907 = vcombine.low %v2879, %v2886
        %v2909 = vunpack.c.l.s4 1983009808
        %v2910 = vunpack.c.0.s8 %v2909
        %v2911 = vlaneseq
        %v2912 = vshrl.u32 %v2911, 7
        %v2913 = vsub.s32 %v2910, %v2912
        %v2914 = vrot.slane %v2907, %v2913
        %v2915 = vcombine.low %v2903, %v2904
        %v2917 = vunpack.c.l.s4 1983009808
        %v2918 = vunpack.c.0.s8 %v2917
        %v2919 = vlaneseq
        %v2920 = vshrl.u32 %v2919, 7
        %v2921 = vsub.s32 %v2918, %v2920
        %v2922 = vrot.slane %v2915, %v2921
        %v2923 = vcombine.low %v2895, %v2902
        %v2925 = vunpack.c.l.s4 1983009808
        %v2926 = vunpack.c.0.s8 %v2925
        %v2927 = vlaneseq
        %v2928 = vshrl.u32 %v2927, 7
        %v2929 = vsub.s32 %v2926, %v2928
        %v2930 = vrot.slane %v2923, %v2929
        %v2931 = vcombine.low %v2905, %v2906
        %v2933 = vunpack.c.l.s4 1983009808
        %v2934 = vunpack.c.0.s8 %v2933
        %v2935 = vlaneseq
        %v2936 = vshrl.u32 %v2935, 7
        %v2937 = vsub.s32 %v2934, %v2936
        %v2938 = vrot.slane %v2931, %v2937
        %v2939 = vcombine.low %v2914, %v2922
        %v2940 = vcombine.high %v2914, %v2922
        %v2942 = vunpack.c.l.s4 1934713408
        %v2943 = vunpack.c.0.s8 %v2942
        %v2944 = vlaneseq
        %v2945 = vshrl.u32 %v2944, 7
        %v2946 = vsub.s32 %v2943, %v2945
        %v2947 = vrot.slane %v2939, %v2946
        %v2949 = vunpack.c.l.s4 1934713408
        %v2950 = vunpack.c.0.s8 %v2949
        %v2951 = vlaneseq
        %v2952 = vshrl.u32 %v2951, 7
        %v2953 = vsub.s32 %v2950, %v2952
        %v2954 = vrot.slane %v2940, %v2953
        %v2955 = vcombine.low %v2930, %v2938
        %v2956 = vcombine.high %v2930, %v2938
        %v2958 = vunpack.c.l.s4 1934713408
        %v2959 = vunpack.c.0.s8 %v2958
        %v2960 = vlaneseq
        %v2961 = vshrl.u32 %v2960, 7
        %v2962 = vsub.s32 %v2959, %v2961
        %v2963 = vrot.slane %v2955, %v2962
        %v2965 = vunpack.c.l.s4 1934713408
        %v2966 = vunpack.c.0.s8 %v2965
        %v2967 = vlaneseq
        %v2968 = vshrl.u32 %v2967, 7
        %v2969 = vsub.s32 %v2966, %v2968
        %v2970 = vrot.slane %v2956, %v2969
        %v2971 = vcombine.low %v2947, %v2963
        %v2972 = vcombine.high %v2947, %v2963
        %v2973 = vcombine.low %v2954, %v2970
        %v2974 = vcombine.high %v2954, %v2970
        %2976 = vrot.lane.b32.xlu0 %v2972, 8
        %v2977 = vpop.permute.xlu0 %2976
        %2980 = vrot.lane.b32.xlu0 %v2973, 16
        %v2981 = vpop.permute.xlu0 %2980
        %2984 = vrot.lane.b32.xlu0 %v2974, 24
        %v2985 = vpop.permute.xlu0 %2984
        %v2987 = vsel %vm869, %v2971, %v2977
        %v2988 = vsel %vm1440, %v2987, %v2981
        %v2989 = vsel %vm1442, %v2988, %v2985
        %v2990 = vpack.c.bf16 %v2989, %v2989
        %v2991 = vld [vmem:[#allocation2 + $0x10] sm:$0xf]
        %v2992 = vld [vmem:[#allocation2 + $0x2c] sm:$0xf]
        %v2993 = vld [vmem:[#allocation2 + $0x48] sm:$0xf]
        %v2994 = vld [vmem:[#allocation2 + $0x64] sm:$0xf]
        %v2995 = vlaneseq
        %v2996 = vshrl.u32 %v2995, 7
        %v2997 = vsub.s32 4, %v2996
        %v2998 = vrot.slane %v330, %v2997
        %v3003 = vunpack.c.l.b16 %v2991
        %v3004 = vunpack.c.l.b16 %v2992
        %v3005 = vunpack.c.l.b16 %v2993
        %v3006 = vunpack.c.l.b16 %v2994
        %v3007 = vpack.c.b16 %v3004, %v3003
        %v3008 = vpack.c.b16 %v3006, %v3005
        %v3012 = vsel %vm336, %v2990, 0
        %3014 = vmatprep.subr.bf16.mxu0 0
        %3015 = vmatpush1.bf16.msra.mxu0 0
        %3016 = vmatprep.subr.bf16.mxu0 0
        %3017 = vmatpush1.bf16.msra.mxu0 0
        %3018 = vmatprep.subr.bf16.mxu0 0
        %3019 = vmatpush1.bf16.msra.mxu0 0
        %3020 = vmatprep.subr.bf16.mxu0 0
        %3021 = vmatpush1.bf16.msra.mxu0 0
        %3022 = vmatprep.subr.bf16.mxu0 0
        %3023 = vmatpush1.bf16.msra.mxu0 0
        %3024 = vmatprep.subr.bf16.mxu0 0
        %3025 = vmatpush1.bf16.msra.mxu0 0
        %3026 = vmatprep.subr.bf16.mxu0 0
        %3027 = vmatpush1.bf16.msra.mxu0 %v3008
        %3028 = vmatprep.subr.bf16.mxu0 0
        %3029 = vmatpush1.bf16.msra.mxu0 %v3007
        %3030 = vmatprep.subr.bf16.mxu0 0
        %3031 = vmatpush2.bf16.msra.mxu0 0
        %3032 = vmatprep.subr.bf16.mxu0 0
        %3033 = vmatpush2.bf16.msra.mxu0 0
        %3034 = vmatprep.subr.bf16.mxu0 0
        %3035 = vmatpush2.bf16.msra.mxu0 0
        %3036 = vmatprep.subr.bf16.mxu0 0
        %3037 = vmatpush2.bf16.msra.mxu0 0
        %3038 = vmatprep.subr.bf16.mxu0 0
        %3039 = vmatpush2.bf16.msra.mxu0 0
        %3040 = vmatprep.subr.bf16.mxu0 0
        %3041 = vmatpush2.bf16.msra.mxu0 0
        %3042 = vmatprep.subr.bf16.mxu0 0
        %3043 = vmatpush2.bf16.msra.mxu0 0
        %3044 = vmatprep.subr.bf16.mxu0 0
        %3045 = vmatpush2.bf16.msra.mxu0 0
        %3046 = vmatprep.mubr.bf16.mxu0 0
        %3047 = vmatmul.mubr.bf16.gmra.mxu0 %v3012
        %v3048 = vpop.f32.mrf.mxu0
        %v3049 = vadd.f32 %v2998, %v3048
        %v3050 = vpop.f32.mrf.mxu0
        %v3051 = vpop.f32.mrf.mxu0
        %v3052 = vpop.f32.mrf.mxu0
        %3053 = vdwg.mxu0
        %v3054 = vadd.f32 %v1532, %v3049
        %v3055 = vsel %vm336, %v3054, 0.0
        %3056 = vadd.xlane.f32.xlu0 %v3055
        %v3057 = vpop.xlane.xlu0 %3056
        %v3058 = vmul.f32 %v3057, %v1512
        %v3059 = vsub.f32 %v3054, %v3058
        %v3060 = vmul.f32 %v3059, %v3059
        %v3061 = vsel %vm336, %v3060, 0.0
        %3062 = vadd.xlane.f32.xlu0 %v3061
        %v3063 = vpop.xlane.xlu0 %3062
        %v3064 = vmul.f32 %v3063, %v1512
        %v3065 = vadd.f32 %v3064, 1e-05
        %v3066 = vrsqrt.pop %v3065
        %v3067 = vmul.f32 %v3059, %v3066
        %v3068 = vlaneseq
        %v3069 = vshrl.u32 %v3068, 7
        %v3070 = vsub.s32 1, %v3069
        %v3071 = vrot.slane %v331, %v3070
        %v3072 = vmul.f32 %v3067, %v3071
        %v3073 = vlaneseq
        %v3074 = vshrl.u32 %v3073, 7
        %v3075 = vsub.s32 2, %v3074
        %v3076 = vrot.slane %v331, %v3075
        %v3077 = vadd.f32 %v3072, %v3076
        %v3078 = vpack.c.bf16 %v3077, %v3077
        %v3079 = vld [vmem:[#allocation2 + $0x14] sm:$0xf]
        %v3080 = vld [vmem:[#allocation2 + $0x30] sm:$0xf]
        %v3081 = vld [vmem:[#allocation2 + $0x4c] sm:$0xf]
        %v3082 = vld [vmem:[#allocation2 + $0x68] sm:$0xf]
        %v3083 = vlaneseq
        %v3084 = vshrl.u32 %v3083, 7
        %v3085 = vsub.s32 5, %v3084
        %v3086 = vrot.slane %v330, %v3085
        %v3091 = vunpack.c.l.b16 %v3079
        %v3092 = vunpack.c.l.b16 %v3080
        %v3093 = vunpack.c.l.b16 %v3081
        %v3094 = vunpack.c.l.b16 %v3082
        %v3095 = vpack.c.b16 %v3092, %v3091
        %v3096 = vpack.c.b16 %v3094, %v3093
        %v3100 = vsel %vm336, %v3078, 0
        %3102 = vmatprep.subr.bf16.mxu0 0
        %3103 = vmatpush1.bf16.msra.mxu0 0
        %3104 = vmatprep.subr.bf16.mxu0 0
        %3105 = vmatpush1.bf16.msra.mxu0 0
        %3106 = vmatprep.subr.bf16.mxu0 0
        %3107 = vmatpush1.bf16.msra.mxu0 0
        %3108 = vmatprep.subr.bf16.mxu0 0
        %3109 = vmatpush1.bf16.msra.mxu0 0
        %3110 = vmatprep.subr.bf16.mxu0 0
        %3111 = vmatpush1.bf16.msra.mxu0 0
        %3112 = vmatprep.subr.bf16.mxu0 0
        %3113 = vmatpush1.bf16.msra.mxu0 0
        %3114 = vmatprep.subr.bf16.mxu0 0
        %3115 = vmatpush1.bf16.msra.mxu0 %v3096
        %3116 = vmatprep.subr.bf16.mxu0 0
        %3117 = vmatpush1.bf16.msra.mxu0 %v3095
        %3118 = vmatprep.subr.bf16.mxu0 0
        %3119 = vmatpush2.bf16.msra.mxu0 0
        %3120 = vmatprep.subr.bf16.mxu0 0
        %3121 = vmatpush2.bf16.msra.mxu0 0
        %3122 = vmatprep.subr.bf16.mxu0 0
        %3123 = vmatpush2.bf16.msra.mxu0 0
        %3124 = vmatprep.subr.bf16.mxu0 0
        %3125 = vmatpush2.bf16.msra.mxu0 0
        %3126 = vmatprep.subr.bf16.mxu0 0
        %3127 = vmatpush2.bf16.msra.mxu0 0
        %3128 = vmatprep.subr.bf16.mxu0 0
        %3129 = vmatpush2.bf16.msra.mxu0 0
        %3130 = vmatprep.subr.bf16.mxu0 0
        %3131 = vmatpush2.bf16.msra.mxu0 0
        %3132 = vmatprep.subr.bf16.mxu0 0
        %3133 = vmatpush2.bf16.msra.mxu0 0
        %3134 = vmatprep.mubr.bf16.mxu0 0
        %3135 = vmatmul.mubr.bf16.gmra.mxu0 %v3100
        %v3136 = vpop.f32.mrf.mxu0
        %v3137 = vadd.f32 %v3086, %v3136
        %v3138 = vpop.f32.mrf.mxu0
        %v3139 = vpop.f32.mrf.mxu0
        %v3140 = vpop.f32.mrf.mxu0
        %3141 = vdwg.mxu0
        %v3142 = vmax.f32 %v3137, 0.0
        %v3143 = vpack.c.bf16 %v3142, %v3142
        %v3144 = vld [vmem:[#allocation2 + $0x18] sm:$0xf]
        %v3145 = vld [vmem:[#allocation2 + $0x34] sm:$0xf]
        %v3146 = vld [vmem:[#allocation2 + $0x50] sm:$0xf]
        %v3147 = vld [vmem:[#allocation2 + $0x6c] sm:$0xf]
        %v3148 = vld [vmem:[#allocation2 + $0x88] sm:$0xf]
        %v3149 = vld [vmem:[#allocation2 + $0xa4] sm:$0xf]
        %v3150 = vld [vmem:[#allocation2 + $0xc0] sm:$0xf]
        %v3151 = vld [vmem:[#allocation2 + $0xdc] sm:$0xf]
        %v3152 = vlaneseq
        %v3153 = vshrl.u32 %v3152, 7
        %v3154 = vsub.s32 6, %v3153
        %v3155 = vrot.slane %v330, %v3154
        %v3164 = vunpack.c.l.b16 %v3144
        %v3165 = vunpack.c.l.b16 %v3145
        %v3166 = vunpack.c.l.b16 %v3146
        %v3167 = vunpack.c.l.b16 %v3147
        %v3168 = vunpack.c.l.b16 %v3148
        %v3169 = vunpack.c.l.b16 %v3149
        %v3170 = vunpack.c.l.b16 %v3150
        %v3171 = vunpack.c.l.b16 %v3151
        %v3172 = vpack.c.b16 %v3165, %v3164
        %v3173 = vpack.c.b16 %v3167, %v3166
        %v3174 = vpack.c.b16 %v3169, %v3168
        %v3175 = vpack.c.b16 %v3171, %v3170
        %v3181 = vsel %vm375, %v3143, 0
        %3183 = vmatprep.subr.bf16.mxu0 0
        %3184 = vmatpush1.bf16.msra.mxu0 0
        %3185 = vmatprep.subr.bf16.mxu0 0
        %3186 = vmatpush1.bf16.msra.mxu0 0
        %3187 = vmatprep.subr.bf16.mxu0 0
        %3188 = vmatpush1.bf16.msra.mxu0 0
        %3189 = vmatprep.subr.bf16.mxu0 0
        %3190 = vmatpush1.bf16.msra.mxu0 0
        %3191 = vmatprep.subr.bf16.mxu0 0
        %3192 = vmatpush1.bf16.msra.mxu0 %v3175
        %3193 = vmatprep.subr.bf16.mxu0 0
        %3194 = vmatpush1.bf16.msra.mxu0 %v3174
        %3195 = vmatprep.subr.bf16.mxu0 0
        %3196 = vmatpush1.bf16.msra.mxu0 %v3173
        %3197 = vmatprep.subr.bf16.mxu0 0
        %3198 = vmatpush1.bf16.msra.mxu0 %v3172
        %3199 = vmatprep.subr.bf16.mxu0 0
        %3200 = vmatpush2.bf16.msra.mxu0 0
        %3201 = vmatprep.subr.bf16.mxu0 0
        %3202 = vmatpush2.bf16.msra.mxu0 0
        %3203 = vmatprep.subr.bf16.mxu0 0
        %3204 = vmatpush2.bf16.msra.mxu0 0
        %3205 = vmatprep.subr.bf16.mxu0 0
        %3206 = vmatpush2.bf16.msra.mxu0 0
        %3207 = vmatprep.subr.bf16.mxu0 0
        %3208 = vmatpush2.bf16.msra.mxu0 0
        %3209 = vmatprep.subr.bf16.mxu0 0
        %3210 = vmatpush2.bf16.msra.mxu0 0
        %3211 = vmatprep.subr.bf16.mxu0 0
        %3212 = vmatpush2.bf16.msra.mxu0 0
        %3213 = vmatprep.subr.bf16.mxu0 0
        %3214 = vmatpush2.bf16.msra.mxu0 0
        %3215 = vmatprep.mubr.bf16.mxu0 0
        %3216 = vmatmul.mubr.bf16.gmra.mxu0 %v3181
        %v3217 = vpop.f32.mrf.mxu0
        %v3218 = vadd.f32 %v3155, %v3217
        %v3219 = vpop.f32.mrf.mxu0
        %v3220 = vpop.f32.mrf.mxu0
        %v3221 = vpop.f32.mrf.mxu0
        %3222 = vdwg.mxu0
        %v3223 = vadd.f32 %v3077, %v3218
        %v3224 = vsel %vm336, %v3223, 0.0
        %3225 = vadd.xlane.f32.xlu0 %v3224
        %v3226 = vpop.xlane.xlu0 %3225
        %v3227 = vmul.f32 %v3226, %v1512
        %v3228 = vsub.f32 %v3223, %v3227
        %v3229 = vmul.f32 %v3228, %v3228
        %v3230 = vsel %vm336, %v3229, 0.0
        %3231 = vadd.xlane.f32.xlu0 %v3230
        %v3232 = vpop.xlane.xlu0 %3231
        %v3233 = vmul.f32 %v3232, %v1512
        %v3234 = vadd.f32 %v3233, 1e-05
        %v3235 = vrsqrt.pop %v3234
        %v3236 = vmul.f32 %v3228, %v3235
        %v3237 = vlaneseq
        %v3238 = vshrl.u32 %v3237, 7
        %v3239 = vsub.s32 3, %v3238
        %v3240 = vrot.slane %v331, %v3239
        %v3241 = vmul.f32 %v3236, %v3240
        %v3242 = vlaneseq
        %v3243 = vshrl.u32 %v3242, 7
        %v3244 = vsub.s32 4, %v3243
        %v3245 = vrot.slane %v331, %v3244
        %v3246 = vadd.f32 %v3241, %v3245
        %3247 = vst.msk [vmem:[%s322] sm:$0xff] %vm336, %v3246
        %p3248 = scmp.lt.s32.totalorder %s18, 1
        %s3249 = scalar_select %p3248, %s18, 1
        %s3250 = smul.addr %s3249, 8
        %s3251 = scalar_lea.vmem %s6, %s3250
        // Predicated region
        $region49: #{transformer_decoder_layer.1} parent=43 // pred_check
          %p3252 = pneg %p182
        $region50: #{transformer_decoder_layer.1} parent=43 // pred_check_branch
          %3254 = sbr.rel (%p3252) target = $region52
        $region51: #{transformer_decoder_layer.1} parent=43 // pred_region
          _
        $region52: #{transformer_decoder_layer.1} parent=43 // pred_fallthru
          _
      $region44: #{transformer_decoder_layer.1} parent=5 // pred_fallthru
        _
      %p3255 = scmp.le.s32.totalorder 2, %s13
      // Predicated region
      $region53: #{transformer_decoder_layer.1} parent=5 // pred_check
        %p3256 = pneg %p3255
      $region54: #{transformer_decoder_layer.1} parent=5 // pred_check_branch
        %3258 = sbr.rel (%p3256) target = $region56
      $region55: #{transformer_decoder_layer.1} parent=5 // pred_region
        %s3259 = ssub.s32 %s13, 2
        // Predicated region
        $region57: #{transformer_decoder_layer.1} parent=55 // pred_check
          %p3260 = pneg %p188
        $region58: #{transformer_decoder_layer.1} parent=55 // pred_check_branch
          %3262 = sbr.rel (%p3260) target = $region60
        $region59: #{transformer_decoder_layer.1} parent=55 // pred_region
          %p3263 = scmp.lt.s32.totalorder %s19, 1
          %s3264 = scalar_select %p3263, %s19, 1
          %s3265 = smul.addr %s3264, 8
          %s3266 = scalar_lea.vmem %s6, %s3265
        $region60: #{transformer_decoder_layer.1} parent=55 // pred_fallthru
          _
      $region56: #{transformer_decoder_layer.1} parent=5 // pred_fallthru
        _
    $region6: #{transformer_decoder_layer.1} parent=1 // loop_footer
      %s17 = sadd.s32 1, %s13
    $region7: #{transformer_decoder_layer.1} parent=1 // loop_footer_branch
      %12 = sbr.rel target = $region3
    $region8: #{transformer_decoder_layer.1} parent=1 // loop_exit
      _
    %3267 = vsyncpa [#allocation3], 1
    %s3268 = scalar_lea.sflag [#allocation3], 1
    %3269 = vsyncpa %s3268, 1

</llo_original>
